<compile_context>
chip_gen: v5e
topology: v5e:2x2
jax: 0.10.0
libtpu: 0.0.40
codegen_flags: <defaults>
</compile_context>

<pallas_src>
import math

import jax
import jax.numpy as jnp
import numpy as np
from jax import lax
from jax.experimental import pallas as pl
from jax.experimental.pallas import tpu as pltpu

_BN_EPS = 1e-5


# --------------------------------------------------------------------------- #
# Fused Pallas kernel: the whole network in one call.
# refs = [x, (L0, R0, s0), (L1, R1, s1), ..., (L9, R9, s9), out]
#   x  : (C0*H0, B*W0)                      input activation slab
#   L_i: (nk, Cout_i*Hout_i, Cin_i*Hin_i)   weights * BN-scale * row taps
#   R_i: (nk, B*Win_i, B*Wout_i)            0/1 column-tap selection
#   s_i: (Cout_i*Hout_i, 1)                 folded conv-bias + BN shift
#   out: (Cout_last*Hout_last, B*Wout_last)
# --------------------------------------------------------------------------- #
def _mask_kernel(*refs):
    x_ref, out_ref = refs[0], refs[-1]
    layer_refs = refs[1:-1]
    n_layers = len(layer_refs) // 3

    a = x_ref[...]                                    # (Cin*H, B*W)
    for li in range(n_layers):
        l_ref = layer_refs[3 * li + 0]
        r_ref = layer_refs[3 * li + 1]
        s_ref = layer_refs[3 * li + 2]
        acc = None
        for k in range(l_ref.shape[0]):               # static unroll (3 or 4 taps)
            t = jnp.dot(a, r_ref[k], preferred_element_type=jnp.float32)
            p = jnp.dot(l_ref[k], t, preferred_element_type=jnp.float32)
            acc = p if acc is None else acc + p
        a = jnp.maximum(acc + s_ref[...], 0.0)        # folded bias/BN + ReLU
        if li == n_layers - 1:                        # final Sigmoid (EUP reciprocal)
            a = pl.reciprocal(1.0 + jnp.exp(-a), approx=True)
    out_ref[...] = a.astype(out_ref.dtype)


def _fused_mask_call(x_slab, flat_params):
    vmem = pl.BlockSpec(memory_space=pltpu.MemorySpace.VMEM)
    out_rows = flat_params[-1].shape[0]               # Cout_last * H_last
    out_cols = flat_params[-2].shape[-1]              # B * W_last
    return pl.pallas_call(
        _mask_kernel,
        out_shape=jax.ShapeDtypeStruct((out_rows, out_cols), jnp.float32),
        in_specs=[vmem] * (1 + len(flat_params)),
        out_specs=vmem,
    )(x_slab, *flat_params)


# --------------------------------------------------------------------------- #
# One-time parameter folding (layout plumbing only; runs once, outside the
# per-call critical path).
# --------------------------------------------------------------------------- #
def _fold_bn(bias, gamma, beta, mean, var):
    scale = gamma / jnp.sqrt(var + _BN_EPS)
    shift = (bias - mean) * scale + beta
    return scale, shift


def _row_taps_down(H):                                # (3, OH, H): i == 2*oh + ky - 1
    OH = H // 2
    m = np.zeros((3, OH, H), np.float32)
    for ky in range(3):
        for oh in range(OH):
            i = 2 * oh + ky - 1
            if 0 <= i < H:
                m[ky, oh, i] = 1.0
    return m


def _col_taps_down(W, B):                             # (3, B*W, B*OW)
    OW = W // 2
    out = []
    for kx in range(3):
        r = np.zeros((W, OW), np.float32)
        for ow in range(OW):
            j = 2 * ow + kx - 1
            if 0 <= j < W:
                r[j, ow] = 1.0
        out.append(np.kron(np.eye(B, dtype=np.float32), r))
    return np.stack(out)


def _row_taps_up(IH):                                 # (4, 2*IH, IH): m == 2*i + ky - 1
    OH = 2 * IH
    m = np.zeros((4, OH, IH), np.float32)
    for ky in range(4):
        for i in range(IH):
            o = 2 * i + ky - 1
            if 0 <= o < OH:
                m[ky, o, i] = 1.0
    return m


def _col_taps_up(IW, B):                              # (4, B*IW, B*2IW)
    OW = 2 * IW
    out = []
    for kx in range(4):
        r = np.zeros((IW, OW), np.float32)
        for j in range(IW):
            n = 2 * j + kx - 1
            if 0 <= n < OW:
                r[j, n] = 1.0
        out.append(np.kron(np.eye(B, dtype=np.float32), r))
    return np.stack(out)


def prepare_params(params, batch, height, width):
    """Fold every layer into (L_stack, R_stack, shift) slabs; done once."""
    flat = []
    h, w = height, width
    # down: Conv2d(k=3, s=2, p=1) + BN + ReLU
    for (wt, b, gamma, beta, mean, var) in params["down"]:
        cout, cin = wt.shape[0], wt.shape[1]
        oh = h // 2
        scale, shift = _fold_bn(b, gamma, beta, mean, var)
        w_s = wt * scale[:, None, None, None]                       # fold BN scale
        mrow = jnp.asarray(_row_taps_down(h))                       # (3, OH, H)
        ls = []
        for kx in range(3):
            lt = jnp.einsum("abk,kmi->ambi", w_s[:, :, :, kx], mrow)
            ls.append(lt.reshape(cout * oh, cin * h))
        l_stack = jnp.stack(ls).astype(jnp.float32)                 # (3, Cout*OH, Cin*H)
        r_stack = jnp.asarray(_col_taps_down(w, batch))             # (3, B*W, B*OW)
        s_col = jnp.repeat(shift, oh)[:, None].astype(jnp.float32)  # (Cout*OH, 1)
        flat += [l_stack, r_stack, s_col]
        h, w = h // 2, w // 2
    # up: ConvTranspose2d(k=4, s=2, p=1) + BN + ReLU (+ Sigmoid on last)
    for (wt, b, gamma, beta, mean, var) in params["up"]:
        cin, cout = wt.shape[0], wt.shape[1]
        oh = 2 * h
        scale, shift = _fold_bn(b, gamma, beta, mean, var)
        w_s = wt * scale[None, :, None, None]                       # fold BN scale
        mrow = jnp.asarray(_row_taps_up(h))                         # (4, OH, IH)
        ls = []
        for kx in range(4):
            lt = jnp.einsum("bak,kmi->ambi", w_s[:, :, :, kx], mrow)
            ls.append(lt.reshape(cout * oh, cin * h))
        l_stack = jnp.stack(ls).astype(jnp.float32)                 # (4, Cout*OH, Cin*IH)
        r_stack = jnp.asarray(_col_taps_up(w, batch))               # (4, B*IW, B*OW)
        s_col = jnp.repeat(shift, oh)[:, None].astype(jnp.float32)
        flat += [l_stack, r_stack, s_col]
        h, w = 2 * h, 2 * w
    return tuple(flat)


def mask_forward(x, flat_params):
    """x: (B, C, H, W) -> (B, C_out, H, W); all conv/BN/ReLU/Sigmoid in ONE kernel."""
    B, C, H, W = x.shape
    a = x.transpose(1, 2, 0, 3).reshape(C * H, B * W)       # (Cin*H, B*W)
    y = _fused_mask_call(a, flat_params)                    # (Cout*H, B*W)
    cout = y.shape[0] // H                                  # symmetric net: OH == H
    return y.reshape(cout, H, B, W).transpose(2, 0, 1, 3)


# --------------------------------------------------------------------------- #
# Pure-JAX reference (lax convolutions) and deterministic parameters
# --------------------------------------------------------------------------- #
def _bn_ref(x, gamma, beta, mean, var):
    inv = gamma / jnp.sqrt(var + _BN_EPS)
    return ((x - mean[None, :, None, None]) * inv[None, :, None, None]
            + beta[None, :, None, None])


def reference(x, params):
    h = x
    for w, b, gamma, beta, mean, var in params["down"]:
        h = lax.conv_general_dilated(
            h, w, window_strides=(2, 2), padding=((1, 1), (1, 1)),
            dimension_numbers=("NCHW", "OIHW", "NCHW"),
            precision=lax.Precision.HIGHEST)
        h = h + b[None, :, None, None]
        h = jnp.maximum(_bn_ref(h, gamma, beta, mean, var), 0.0)
    for w, b, gamma, beta, mean, var in params["up"]:
        wf = jnp.flip(w, axis=(2, 3)).transpose(1, 0, 2, 3)          # (Cout,Cin,4,4)
        h = lax.conv_general_dilated(
            h, wf, window_strides=(1, 1), padding=((2, 2), (2, 2)),
            lhs_dilation=(2, 2), dimension_numbers=("NCHW", "OIHW", "NCHW"),
            precision=lax.Precision.HIGHEST)
        h = h + b[None, :, None, None]
        h = jnp.maximum(_bn_ref(h, gamma, beta, mean, var), 0.0)
    return jax.nn.sigmoid(h)


def init_params(key):
    ch_up = [24, 24, 12, 6, 6, 3]
    ch_dn = ch_up[::-1]                          # [3, 6, 6, 12, 24, 24]
    params = {"down": [], "up": []}
    for i in range(len(ch_dn) - 1):
        cin, cout = ch_dn[i], ch_dn[i + 1]
        key, kw, kb, kg, kbt, km, kv = jax.random.split(key, 7)
        bound = 1.0 / math.sqrt(cin * 9)
        w = jax.random.uniform(kw, (cout, cin, 3, 3), jnp.float32, -bound, bound)
        b = jax.random.uniform(kb, (cout,), jnp.float32, -bound, bound)
        gamma = jax.random.uniform(kg, (cout,), jnp.float32, 0.5, 1.5)
        beta = 0.1 * jax.random.normal(kbt, (cout,), jnp.float32)
        mean = 0.1 * jax.random.normal(km, (cout,), jnp.float32)
        var = jax.random.uniform(kv, (cout,), jnp.float32, 0.5, 1.5)
        params["down"].append((w, b, gamma, beta, mean, var))
    for i in range(len(ch_up) - 1):
        cin, cout = ch_up[i], ch_up[i + 1]
        key, kw, kb, kg, kbt, km, kv = jax.random.split(key, 7)
        bound = 1.0 / math.sqrt(cin * 16)
        w = jax.random.uniform(kw, (cin, cout, 4, 4), jnp.float32, -bound, bound)
        b = jax.random.uniform(kb, (cout,), jnp.float32, -bound, bound)
        gamma = jax.random.uniform(kg, (cout,), jnp.float32, 0.5, 1.5)
        beta = 0.1 * jax.random.normal(kbt, (cout,), jnp.float32)
        mean = 0.1 * jax.random.normal(km, (cout,), jnp.float32)
        var = jax.random.uniform(kv, (cout,), jnp.float32, 0.5, 1.5)
        params["up"].append((w, b, gamma, beta, mean, var))
    return params


if __name__ == "__main__":
    # Small shapes consistent with the module: 3 input channels, spatial
    # divisible by 2**5 so the up-path returns to the input resolution.
    B, C, H, W = 2, 3, 32, 32
    key = jax.random.PRNGKey(0)
    kx_, kp = jax.random.split(key)
    x = jax.random.normal(kx_, (B, C, H, W), jnp.float32)
    params = init_params(kp)

    flat = prepare_params(params, B, H, W)       # one-time weight/selection folding
    fwd = jax.jit(mask_forward)
    out = jax.block_until_ready(fwd(x, flat))

    ref = reference(x, params)
    assert out.shape == (B, 3, H, W), out.shape
    err = float(jnp.max(jnp.abs(out - ref)))
    assert jnp.allclose(out, ref, rtol=1e-3, atol=1e-3), f"max abs err {err}"
    assert 0.0 < float(jnp.min(out)) and float(jnp.max(out)) < 1.0
    print("KERNEL_OK")
</pallas_src>

<mosaic_0001>
module attributes {stable_mosaic.version = 11 : i64} {
  func.func @_mask_kernel(%arg0: memref<96x64xf32, #tpu.memory_space<vmem>>, %arg1: memref<3x96x96xf32, #tpu.memory_space<vmem>>, %arg2: memref<3x64x32xf32, #tpu.memory_space<vmem>>, %arg3: memref<96x1xf32, #tpu.memory_space<vmem>>, %arg4: memref<3x48x96xf32, #tpu.memory_space<vmem>>, %arg5: memref<3x32x16xf32, #tpu.memory_space<vmem>>, %arg6: memref<48x1xf32, #tpu.memory_space<vmem>>, %arg7: memref<3x48x48xf32, #tpu.memory_space<vmem>>, %arg8: memref<3x16x8xf32, #tpu.memory_space<vmem>>, %arg9: memref<48x1xf32, #tpu.memory_space<vmem>>, %arg10: memref<3x48x48xf32, #tpu.memory_space<vmem>>, %arg11: memref<3x8x4xf32, #tpu.memory_space<vmem>>, %arg12: memref<48x1xf32, #tpu.memory_space<vmem>>, %arg13: memref<3x24x48xf32, #tpu.memory_space<vmem>>, %arg14: memref<3x4x2xf32, #tpu.memory_space<vmem>>, %arg15: memref<24x1xf32, #tpu.memory_space<vmem>>, %arg16: memref<4x48x24xf32, #tpu.memory_space<vmem>>, %arg17: memref<4x2x4xf32, #tpu.memory_space<vmem>>, %arg18: memref<48x1xf32, #tpu.memory_space<vmem>>, %arg19: memref<4x48x48xf32, #tpu.memory_space<vmem>>, %arg20: memref<4x4x8xf32, #tpu.memory_space<vmem>>, %arg21: memref<48x1xf32, #tpu.memory_space<vmem>>, %arg22: memref<4x48x48xf32, #tpu.memory_space<vmem>>, %arg23: memref<4x8x16xf32, #tpu.memory_space<vmem>>, %arg24: memref<48x1xf32, #tpu.memory_space<vmem>>, %arg25: memref<4x96x48xf32, #tpu.memory_space<vmem>>, %arg26: memref<4x16x32xf32, #tpu.memory_space<vmem>>, %arg27: memref<96x1xf32, #tpu.memory_space<vmem>>, %arg28: memref<4x96x96xf32, #tpu.memory_space<vmem>>, %arg29: memref<4x32x64xf32, #tpu.memory_space<vmem>>, %arg30: memref<96x1xf32, #tpu.memory_space<vmem>>, %arg31: memref<96x64xf32, #tpu.memory_space<vmem>>) attributes {dimension_semantics = [], scalar_prefetch = 0 : i64, scratch_operands = 0 : i64, tpu.core_type = #tpu.core_type<tc>} {
    %c0 = arith.constant 0 : index
    %c0_0 = arith.constant 0 : index
    %0 = vector.load %arg0[%c0, %c0_0] : memref<96x64xf32, #tpu.memory_space<vmem>>, vector<96x64xf32>
    %c0_1 = arith.constant 0 : index
    %c0_2 = arith.constant 0 : index
    %c0_3 = arith.constant 0 : index
    %1 = vector.load %arg2[%c0_1, %c0_2, %c0_3] : memref<3x64x32xf32, #tpu.memory_space<vmem>>, vector<1x64x32xf32>
    %2 = vector.shape_cast %1 : vector<1x64x32xf32> to vector<64x32xf32>
    %cst = arith.constant dense<0.000000e+00> : vector<96x32xf32>
    %3 = tpu.matmul %0, %2, %cst {dimension_numbers = #tpu.dot_dimension_numbers<[1], [0], [0], [1], [0, 0, 1, 1], [], []>} : vector<96x64xf32>, vector<64x32xf32>, vector<96x32xf32> -> vector<96x32xf32>
    %c0_4 = arith.constant 0 : index
    %c0_5 = arith.constant 0 : index
    %c0_6 = arith.constant 0 : index
    %4 = vector.load %arg1[%c0_4, %c0_5, %c0_6] : memref<3x96x96xf32, #tpu.memory_space<vmem>>, vector<1x96x96xf32>
    %5 = vector.shape_cast %4 : vector<1x96x96xf32> to vector<96x96xf32>
    %cst_7 = arith.constant dense<0.000000e+00> : vector<96x32xf32>
    %6 = tpu.matmul %5, %3, %cst_7 {dimension_numbers = #tpu.dot_dimension_numbers<[1], [0], [0], [1], [0, 0, 1, 1], [], []>} : vector<96x96xf32>, vector<96x32xf32>, vector<96x32xf32> -> vector<96x32xf32>
    %c1 = arith.constant 1 : index
    %c0_8 = arith.constant 0 : index
    %c0_9 = arith.constant 0 : index
    %7 = vector.load %arg2[%c1, %c0_8, %c0_9] : memref<3x64x32xf32, #tpu.memory_space<vmem>>, vector<1x64x32xf32>
    %8 = vector.shape_cast %7 : vector<1x64x32xf32> to vector<64x32xf32>
    %cst_10 = arith.constant dense<0.000000e+00> : vector<96x32xf32>
    %9 = tpu.matmul %0, %8, %cst_10 {dimension_numbers = #tpu.dot_dimension_numbers<[1], [0], [0], [1], [0, 0, 1, 1], [], []>} : vector<96x64xf32>, vector<64x32xf32>, vector<96x32xf32> -> vector<96x32xf32>
    %c1_11 = arith.constant 1 : index
    %c0_12 = arith.constant 0 : index
    %c0_13 = arith.constant 0 : index
    %10 = vector.load %arg1[%c1_11, %c0_12, %c0_13] : memref<3x96x96xf32, #tpu.memory_space<vmem>>, vector<1x96x96xf32>
    %11 = vector.shape_cast %10 : vector<1x96x96xf32> to vector<96x96xf32>
    %cst_14 = arith.constant dense<0.000000e+00> : vector<96x32xf32>
    %12 = tpu.matmul %11, %9, %cst_14 {dimension_numbers = #tpu.dot_dimension_numbers<[1], [0], [0], [1], [0, 0, 1, 1], [], []>} : vector<96x96xf32>, vector<96x32xf32>, vector<96x32xf32> -> vector<96x32xf32>
    %13 = arith.addf %6, %12 : vector<96x32xf32>
    %c2 = arith.constant 2 : index
    %c0_15 = arith.constant 0 : index
    %c0_16 = arith.constant 0 : index
    %14 = vector.load %arg2[%c2, %c0_15, %c0_16] : memref<3x64x32xf32, #tpu.memory_space<vmem>>, vector<1x64x32xf32>
    %15 = vector.shape_cast %14 : vector<1x64x32xf32> to vector<64x32xf32>
    %cst_17 = arith.constant dense<0.000000e+00> : vector<96x32xf32>
    %16 = tpu.matmul %0, %15, %cst_17 {dimension_numbers = #tpu.dot_dimension_numbers<[1], [0], [0], [1], [0, 0, 1, 1], [], []>} : vector<96x64xf32>, vector<64x32xf32>, vector<96x32xf32> -> vector<96x32xf32>
    %c2_18 = arith.constant 2 : index
    %c0_19 = arith.constant 0 : index
    %c0_20 = arith.constant 0 : index
    %17 = vector.load %arg1[%c2_18, %c0_19, %c0_20] : memref<3x96x96xf32, #tpu.memory_space<vmem>>, vector<1x96x96xf32>
    %18 = vector.shape_cast %17 : vector<1x96x96xf32> to vector<96x96xf32>
    %cst_21 = arith.constant dense<0.000000e+00> : vector<96x32xf32>
    %19 = tpu.matmul %18, %16, %cst_21 {dimension_numbers = #tpu.dot_dimension_numbers<[1], [0], [0], [1], [0, 0, 1, 1], [], []>} : vector<96x96xf32>, vector<96x32xf32>, vector<96x32xf32> -> vector<96x32xf32>
    %20 = arith.addf %13, %19 : vector<96x32xf32>
    %c0_22 = arith.constant 0 : index
    %c0_23 = arith.constant 0 : index
    %21 = vector.load %arg3[%c0_22, %c0_23] : memref<96x1xf32, #tpu.memory_space<vmem>>, vector<96x1xf32>
    %22 = vector.broadcast %21 : vector<96x1xf32> to vector<96x32xf32>
    %23 = arith.addf %20, %22 : vector<96x32xf32>
    %cst_24 = arith.constant 0.000000e+00 : f32
    %24 = vector.broadcast %cst_24 : f32 to vector<96x32xf32>
    %25 = arith.maximumf %23, %24 : vector<96x32xf32>
    %c0_25 = arith.constant 0 : index
    %c0_26 = arith.constant 0 : index
    %c0_27 = arith.constant 0 : index
    %26 = vector.load %arg5[%c0_25, %c0_26, %c0_27] : memref<3x32x16xf32, #tpu.memory_space<vmem>>, vector<1x32x16xf32>
    %27 = vector.shape_cast %26 : vector<1x32x16xf32> to vector<32x16xf32>
    %cst_28 = arith.constant dense<0.000000e+00> : vector<96x16xf32>
    %28 = tpu.matmul %25, %27, %cst_28 {dimension_numbers = #tpu.dot_dimension_numbers<[1], [0], [0], [1], [0, 0, 1, 1], [], []>} : vector<96x32xf32>, vector<32x16xf32>, vector<96x16xf32> -> vector<96x16xf32>
    %c0_29 = arith.constant 0 : index
    %c0_30 = arith.constant 0 : index
    %c0_31 = arith.constant 0 : index
    %29 = vector.load %arg4[%c0_29, %c0_30, %c0_31] : memref<3x48x96xf32, #tpu.memory_space<vmem>>, vector<1x48x96xf32>
    %30 = vector.shape_cast %29 : vector<1x48x96xf32> to vector<48x96xf32>
    %cst_32 = arith.constant dense<0.000000e+00> : vector<48x16xf32>
    %31 = tpu.matmul %30, %28, %cst_32 {dimension_numbers = #tpu.dot_dimension_numbers<[1], [0], [0], [1], [0, 0, 1, 1], [], []>} : vector<48x96xf32>, vector<96x16xf32>, vector<48x16xf32> -> vector<48x16xf32>
    %c1_33 = arith.constant 1 : index
    %c0_34 = arith.constant 0 : index
    %c0_35 = arith.constant 0 : index
    %32 = vector.load %arg5[%c1_33, %c0_34, %c0_35] : memref<3x32x16xf32, #tpu.memory_space<vmem>>, vector<1x32x16xf32>
    %33 = vector.shape_cast %32 : vector<1x32x16xf32> to vector<32x16xf32>
    %cst_36 = arith.constant dense<0.000000e+00> : vector<96x16xf32>
    %34 = tpu.matmul %25, %33, %cst_36 {dimension_numbers = #tpu.dot_dimension_numbers<[1], [0], [0], [1], [0, 0, 1, 1], [], []>} : vector<96x32xf32>, vector<32x16xf32>, vector<96x16xf32> -> vector<96x16xf32>
    %c1_37 = arith.constant 1 : index
    %c0_38 = arith.constant 0 : index
    %c0_39 = arith.constant 0 : index
    %35 = vector.load %arg4[%c1_37, %c0_38, %c0_39] : memref<3x48x96xf32, #tpu.memory_space<vmem>>, vector<1x48x96xf32>
    %36 = vector.shape_cast %35 : vector<1x48x96xf32> to vector<48x96xf32>
    %cst_40 = arith.constant dense<0.000000e+00> : vector<48x16xf32>
    %37 = tpu.matmul %36, %34, %cst_40 {dimension_numbers = #tpu.dot_dimension_numbers<[1], [0], [0], [1], [0, 0, 1, 1], [], []>} : vector<48x96xf32>, vector<96x16xf32>, vector<48x16xf32> -> vector<48x16xf32>
    %38 = arith.addf %31, %37 : vector<48x16xf32>
    %c2_41 = arith.constant 2 : index
    %c0_42 = arith.constant 0 : index
    %c0_43 = arith.constant 0 : index
    %39 = vector.load %arg5[%c2_41, %c0_42, %c0_43] : memref<3x32x16xf32, #tpu.memory_space<vmem>>, vector<1x32x16xf32>
    %40 = vector.shape_cast %39 : vector<1x32x16xf32> to vector<32x16xf32>
    %cst_44 = arith.constant dense<0.000000e+00> : vector<96x16xf32>
    %41 = tpu.matmul %25, %40, %cst_44 {dimension_numbers = #tpu.dot_dimension_numbers<[1], [0], [0], [1], [0, 0, 1, 1], [], []>} : vector<96x32xf32>, vector<32x16xf32>, vector<96x16xf32> -> vector<96x16xf32>
    %c2_45 = arith.constant 2 : index
    %c0_46 = arith.constant 0 : index
    %c0_47 = arith.constant 0 : index
    %42 = vector.load %arg4[%c2_45, %c0_46, %c0_47] : memref<3x48x96xf32, #tpu.memory_space<vmem>>, vector<1x48x96xf32>
    %43 = vector.shape_cast %42 : vector<1x48x96xf32> to vector<48x96xf32>
    %cst_48 = arith.constant dense<0.000000e+00> : vector<48x16xf32>
    %44 = tpu.matmul %43, %41, %cst_48 {dimension_numbers = #tpu.dot_dimension_numbers<[1], [0], [0], [1], [0, 0, 1, 1], [], []>} : vector<48x96xf32>, vector<96x16xf32>, vector<48x16xf32> -> vector<48x16xf32>
    %45 = arith.addf %38, %44 : vector<48x16xf32>
    %c0_49 = arith.constant 0 : index
    %c0_50 = arith.constant 0 : index
    %46 = vector.load %arg6[%c0_49, %c0_50] : memref<48x1xf32, #tpu.memory_space<vmem>>, vector<48x1xf32>
    %47 = vector.broadcast %46 : vector<48x1xf32> to vector<48x16xf32>
    %48 = arith.addf %45, %47 : vector<48x16xf32>
    %cst_51 = arith.constant 0.000000e+00 : f32
    %49 = vector.broadcast %cst_51 : f32 to vector<48x16xf32>
    %50 = arith.maximumf %48, %49 : vector<48x16xf32>
    %c0_52 = arith.constant 0 : index
    %c0_53 = arith.constant 0 : index
    %c0_54 = arith.constant 0 : index
    %51 = vector.load %arg8[%c0_52, %c0_53, %c0_54] : memref<3x16x8xf32, #tpu.memory_space<vmem>>, vector<1x16x8xf32>
    %52 = vector.shape_cast %51 : vector<1x16x8xf32> to vector<16x8xf32>
    %cst_55 = arith.constant dense<0.000000e+00> : vector<48x8xf32>
    %53 = tpu.matmul %50, %52, %cst_55 {dimension_numbers = #tpu.dot_dimension_numbers<[1], [0], [0], [1], [0, 0, 1, 1], [], []>} : vector<48x16xf32>, vector<16x8xf32>, vector<48x8xf32> -> vector<48x8xf32>
    %c0_56 = arith.constant 0 : index
    %c0_57 = arith.constant 0 : index
    %c0_58 = arith.constant 0 : index
    %54 = vector.load %arg7[%c0_56, %c0_57, %c0_58] : memref<3x48x48xf32, #tpu.memory_space<vmem>>, vector<1x48x48xf32>
    %55 = vector.shape_cast %54 : vector<1x48x48xf32> to vector<48x48xf32>
    %cst_59 = arith.constant dense<0.000000e+00> : vector<48x8xf32>
    %56 = tpu.matmul %55, %53, %cst_59 {dimension_numbers = #tpu.dot_dimension_numbers<[1], [0], [0], [1], [0, 0, 1, 1], [], []>} : vector<48x48xf32>, vector<48x8xf32>, vector<48x8xf32> -> vector<48x8xf32>
    %c1_60 = arith.constant 1 : index
    %c0_61 = arith.constant 0 : index
    %c0_62 = arith.constant 0 : index
    %57 = vector.load %arg8[%c1_60, %c0_61, %c0_62] : memref<3x16x8xf32, #tpu.memory_space<vmem>>, vector<1x16x8xf32>
    %58 = vector.shape_cast %57 : vector<1x16x8xf32> to vector<16x8xf32>
    %cst_63 = arith.constant dense<0.000000e+00> : vector<48x8xf32>
    %59 = tpu.matmul %50, %58, %cst_63 {dimension_numbers = #tpu.dot_dimension_numbers<[1], [0], [0], [1], [0, 0, 1, 1], [], []>} : vector<48x16xf32>, vector<16x8xf32>, vector<48x8xf32> -> vector<48x8xf32>
    %c1_64 = arith.constant 1 : index
    %c0_65 = arith.constant 0 : index
    %c0_66 = arith.constant 0 : index
    %60 = vector.load %arg7[%c1_64, %c0_65, %c0_66] : memref<3x48x48xf32, #tpu.memory_space<vmem>>, vector<1x48x48xf32>
    %61 = vector.shape_cast %60 : vector<1x48x48xf32> to vector<48x48xf32>
    %cst_67 = arith.constant dense<0.000000e+00> : vector<48x8xf32>
    %62 = tpu.matmul %61, %59, %cst_67 {dimension_numbers = #tpu.dot_dimension_numbers<[1], [0], [0], [1], [0, 0, 1, 1], [], []>} : vector<48x48xf32>, vector<48x8xf32>, vector<48x8xf32> -> vector<48x8xf32>
    %63 = arith.addf %56, %62 : vector<48x8xf32>
    %c2_68 = arith.constant 2 : index
    %c0_69 = arith.constant 0 : index
    %c0_70 = arith.constant 0 : index
    %64 = vector.load %arg8[%c2_68, %c0_69, %c0_70] : memref<3x16x8xf32, #tpu.memory_space<vmem>>, vector<1x16x8xf32>
    %65 = vector.shape_cast %64 : vector<1x16x8xf32> to vector<16x8xf32>
    %cst_71 = arith.constant dense<0.000000e+00> : vector<48x8xf32>
    %66 = tpu.matmul %50, %65, %cst_71 {dimension_numbers = #tpu.dot_dimension_numbers<[1], [0], [0], [1], [0, 0, 1, 1], [], []>} : vector<48x16xf32>, vector<16x8xf32>, vector<48x8xf32> -> vector<48x8xf32>
    %c2_72 = arith.constant 2 : index
    %c0_73 = arith.constant 0 : index
    %c0_74 = arith.constant 0 : index
    %67 = vector.load %arg7[%c2_72, %c0_73, %c0_74] : memref<3x48x48xf32, #tpu.memory_space<vmem>>, vector<1x48x48xf32>
    %68 = vector.shape_cast %67 : vector<1x48x48xf32> to vector<48x48xf32>
    %cst_75 = arith.constant dense<0.000000e+00> : vector<48x8xf32>
    %69 = tpu.matmul %68, %66, %cst_75 {dimension_numbers = #tpu.dot_dimension_numbers<[1], [0], [0], [1], [0, 0, 1, 1], [], []>} : vector<48x48xf32>, vector<48x8xf32>, vector<48x8xf32> -> vector<48x8xf32>
    %70 = arith.addf %63, %69 : vector<48x8xf32>
    %c0_76 = arith.constant 0 : index
    %c0_77 = arith.constant 0 : index
    %71 = vector.load %arg9[%c0_76, %c0_77] : memref<48x1xf32, #tpu.memory_space<vmem>>, vector<48x1xf32>
    %72 = vector.broadcast %71 : vector<48x1xf32> to vector<48x8xf32>
    %73 = arith.addf %70, %72 : vector<48x8xf32>
    %cst_78 = arith.constant 0.000000e+00 : f32
    %74 = vector.broadcast %cst_78 : f32 to vector<48x8xf32>
    %75 = arith.maximumf %73, %74 : vector<48x8xf32>
    %c0_79 = arith.constant 0 : index
    %c0_80 = arith.constant 0 : index
    %c0_81 = arith.constant 0 : index
    %76 = vector.load %arg11[%c0_79, %c0_80, %c0_81] : memref<3x8x4xf32, #tpu.memory_space<vmem>>, vector<1x8x4xf32>
    %77 = vector.shape_cast %76 : vector<1x8x4xf32> to vector<8x4xf32>
    %cst_82 = arith.constant dense<0.000000e+00> : vector<48x4xf32>
    %78 = tpu.matmul %75, %77, %cst_82 {dimension_numbers = #tpu.dot_dimension_numbers<[1], [0], [0], [1], [0, 0, 1, 1], [], []>} : vector<48x8xf32>, vector<8x4xf32>, vector<48x4xf32> -> vector<48x4xf32>
    %c0_83 = arith.constant 0 : index
    %c0_84 = arith.constant 0 : index
    %c0_85 = arith.constant 0 : index
    %79 = vector.load %arg10[%c0_83, %c0_84, %c0_85] : memref<3x48x48xf32, #tpu.memory_space<vmem>>, vector<1x48x48xf32>
    %80 = vector.shape_cast %79 : vector<1x48x48xf32> to vector<48x48xf32>
    %cst_86 = arith.constant dense<0.000000e+00> : vector<48x4xf32>
    %81 = tpu.matmul %80, %78, %cst_86 {dimension_numbers = #tpu.dot_dimension_numbers<[1], [0], [0], [1], [0, 0, 1, 1], [], []>} : vector<48x48xf32>, vector<48x4xf32>, vector<48x4xf32> -> vector<48x4xf32>
    %c1_87 = arith.constant 1 : index
    %c0_88 = arith.constant 0 : index
    %c0_89 = arith.constant 0 : index
    %82 = vector.load %arg11[%c1_87, %c0_88, %c0_89] : memref<3x8x4xf32, #tpu.memory_space<vmem>>, vector<1x8x4xf32>
    %83 = vector.shape_cast %82 : vector<1x8x4xf32> to vector<8x4xf32>
    %cst_90 = arith.constant dense<0.000000e+00> : vector<48x4xf32>
    %84 = tpu.matmul %75, %83, %cst_90 {dimension_numbers = #tpu.dot_dimension_numbers<[1], [0], [0], [1], [0, 0, 1, 1], [], []>} : vector<48x8xf32>, vector<8x4xf32>, vector<48x4xf32> -> vector<48x4xf32>
    %c1_91 = arith.constant 1 : index
    %c0_92 = arith.constant 0 : index
    %c0_93 = arith.constant 0 : index
    %85 = vector.load %arg10[%c1_91, %c0_92, %c0_93] : memref<3x48x48xf32, #tpu.memory_space<vmem>>, vector<1x48x48xf32>
    %86 = vector.shape_cast %85 : vector<1x48x48xf32> to vector<48x48xf32>
    %cst_94 = arith.constant dense<0.000000e+00> : vector<48x4xf32>
    %87 = tpu.matmul %86, %84, %cst_94 {dimension_numbers = #tpu.dot_dimension_numbers<[1], [0], [0], [1], [0, 0, 1, 1], [], []>} : vector<48x48xf32>, vector<48x4xf32>, vector<48x4xf32> -> vector<48x4xf32>
    %88 = arith.addf %81, %87 : vector<48x4xf32>
    %c2_95 = arith.constant 2 : index
    %c0_96 = arith.constant 0 : index
    %c0_97 = arith.constant 0 : index
    %89 = vector.load %arg11[%c2_95, %c0_96, %c0_97] : memref<3x8x4xf32, #tpu.memory_space<vmem>>, vector<1x8x4xf32>
    %90 = vector.shape_cast %89 : vector<1x8x4xf32> to vector<8x4xf32>
    %cst_98 = arith.constant dense<0.000000e+00> : vector<48x4xf32>
    %91 = tpu.matmul %75, %90, %cst_98 {dimension_numbers = #tpu.dot_dimension_numbers<[1], [0], [0], [1], [0, 0, 1, 1], [], []>} : vector<48x8xf32>, vector<8x4xf32>, vector<48x4xf32> -> vector<48x4xf32>
    %c2_99 = arith.constant 2 : index
    %c0_100 = arith.constant 0 : index
    %c0_101 = arith.constant 0 : index
    %92 = vector.load %arg10[%c2_99, %c0_100, %c0_101] : memref<3x48x48xf32, #tpu.memory_space<vmem>>, vector<1x48x48xf32>
    %93 = vector.shape_cast %92 : vector<1x48x48xf32> to vector<48x48xf32>
    %cst_102 = arith.constant dense<0.000000e+00> : vector<48x4xf32>
    %94 = tpu.matmul %93, %91, %cst_102 {dimension_numbers = #tpu.dot_dimension_numbers<[1], [0], [0], [1], [0, 0, 1, 1], [], []>} : vector<48x48xf32>, vector<48x4xf32>, vector<48x4xf32> -> vector<48x4xf32>
    %95 = arith.addf %88, %94 : vector<48x4xf32>
    %c0_103 = arith.constant 0 : index
    %c0_104 = arith.constant 0 : index
    %96 = vector.load %arg12[%c0_103, %c0_104] : memref<48x1xf32, #tpu.memory_space<vmem>>, vector<48x1xf32>
    %97 = vector.broadcast %96 : vector<48x1xf32> to vector<48x4xf32>
    %98 = arith.addf %95, %97 : vector<48x4xf32>
    %cst_105 = arith.constant 0.000000e+00 : f32
    %99 = vector.broadcast %cst_105 : f32 to vector<48x4xf32>
    %100 = arith.maximumf %98, %99 : vector<48x4xf32>
    %c0_106 = arith.constant 0 : index
    %c0_107 = arith.constant 0 : index
    %c0_108 = arith.constant 0 : index
    %101 = vector.load %arg14[%c0_106, %c0_107, %c0_108] : memref<3x4x2xf32, #tpu.memory_space<vmem>>, vector<1x4x2xf32>
    %102 = vector.shape_cast %101 : vector<1x4x2xf32> to vector<4x2xf32>
    %cst_109 = arith.constant dense<0.000000e+00> : vector<48x2xf32>
    %103 = tpu.matmul %100, %102, %cst_109 {dimension_numbers = #tpu.dot_dimension_numbers<[1], [0], [0], [1], [0, 0, 1, 1], [], []>} : vector<48x4xf32>, vector<4x2xf32>, vector<48x2xf32> -> vector<48x2xf32>
    %c0_110 = arith.constant 0 : index
    %c0_111 = arith.constant 0 : index
    %c0_112 = arith.constant 0 : index
    %104 = vector.load %arg13[%c0_110, %c0_111, %c0_112] : memref<3x24x48xf32, #tpu.memory_space<vmem>>, vector<1x24x48xf32>
    %105 = vector.shape_cast %104 : vector<1x24x48xf32> to vector<24x48xf32>
    %cst_113 = arith.constant dense<0.000000e+00> : vector<24x2xf32>
    %106 = tpu.matmul %105, %103, %cst_113 {dimension_numbers = #tpu.dot_dimension_numbers<[1], [0], [0], [1], [0, 0, 1, 1], [], []>} : vector<24x48xf32>, vector<48x2xf32>, vector<24x2xf32> -> vector<24x2xf32>
    %c1_114 = arith.constant 1 : index
    %c0_115 = arith.constant 0 : index
    %c0_116 = arith.constant 0 : index
    %107 = vector.load %arg14[%c1_114, %c0_115, %c0_116] : memref<3x4x2xf32, #tpu.memory_space<vmem>>, vector<1x4x2xf32>
    %108 = vector.shape_cast %107 : vector<1x4x2xf32> to vector<4x2xf32>
    %cst_117 = arith.constant dense<0.000000e+00> : vector<48x2xf32>
    %109 = tpu.matmul %100, %108, %cst_117 {dimension_numbers = #tpu.dot_dimension_numbers<[1], [0], [0], [1], [0, 0, 1, 1], [], []>} : vector<48x4xf32>, vector<4x2xf32>, vector<48x2xf32> -> vector<48x2xf32>
    %c1_118 = arith.constant 1 : index
    %c0_119 = arith.constant 0 : index
    %c0_120 = arith.constant 0 : index
    %110 = vector.load %arg13[%c1_118, %c0_119, %c0_120] : memref<3x24x48xf32, #tpu.memory_space<vmem>>, vector<1x24x48xf32>
    %111 = vector.shape_cast %110 : vector<1x24x48xf32> to vector<24x48xf32>
    %cst_121 = arith.constant dense<0.000000e+00> : vector<24x2xf32>
    %112 = tpu.matmul %111, %109, %cst_121 {dimension_numbers = #tpu.dot_dimension_numbers<[1], [0], [0], [1], [0, 0, 1, 1], [], []>} : vector<24x48xf32>, vector<48x2xf32>, vector<24x2xf32> -> vector<24x2xf32>
    %113 = arith.addf %106, %112 : vector<24x2xf32>
    %c2_122 = arith.constant 2 : index
    %c0_123 = arith.constant 0 : index
    %c0_124 = arith.constant 0 : index
    %114 = vector.load %arg14[%c2_122, %c0_123, %c0_124] : memref<3x4x2xf32, #tpu.memory_space<vmem>>, vector<1x4x2xf32>
    %115 = vector.shape_cast %114 : vector<1x4x2xf32> to vector<4x2xf32>
    %cst_125 = arith.constant dense<0.000000e+00> : vector<48x2xf32>
    %116 = tpu.matmul %100, %115, %cst_125 {dimension_numbers = #tpu.dot_dimension_numbers<[1], [0], [0], [1], [0, 0, 1, 1], [], []>} : vector<48x4xf32>, vector<4x2xf32>, vector<48x2xf32> -> vector<48x2xf32>
    %c2_126 = arith.constant 2 : index
    %c0_127 = arith.constant 0 : index
    %c0_128 = arith.constant 0 : index
    %117 = vector.load %arg13[%c2_126, %c0_127, %c0_128] : memref<3x24x48xf32, #tpu.memory_space<vmem>>, vector<1x24x48xf32>
    %118 = vector.shape_cast %117 : vector<1x24x48xf32> to vector<24x48xf32>
    %cst_129 = arith.constant dense<0.000000e+00> : vector<24x2xf32>
    %119 = tpu.matmul %118, %116, %cst_129 {dimension_numbers = #tpu.dot_dimension_numbers<[1], [0], [0], [1], [0, 0, 1, 1], [], []>} : vector<24x48xf32>, vector<48x2xf32>, vector<24x2xf32> -> vector<24x2xf32>
    %120 = arith.addf %113, %119 : vector<24x2xf32>
    %c0_130 = arith.constant 0 : index
    %c0_131 = arith.constant 0 : index
    %121 = vector.load %arg15[%c0_130, %c0_131] : memref<24x1xf32, #tpu.memory_space<vmem>>, vector<24x1xf32>
    %122 = vector.broadcast %121 : vector<24x1xf32> to vector<24x2xf32>
    %123 = arith.addf %120, %122 : vector<24x2xf32>
    %cst_132 = arith.constant 0.000000e+00 : f32
    %124 = vector.broadcast %cst_132 : f32 to vector<24x2xf32>
    %125 = arith.maximumf %123, %124 : vector<24x2xf32>
    %c0_133 = arith.constant 0 : index
    %c0_134 = arith.constant 0 : index
    %c0_135 = arith.constant 0 : index
    %126 = vector.load %arg17[%c0_133, %c0_134, %c0_135] : memref<4x2x4xf32, #tpu.memory_space<vmem>>, vector<1x2x4xf32>
    %127 = vector.shape_cast %126 : vector<1x2x4xf32> to vector<2x4xf32>
    %cst_136 = arith.constant dense<0.000000e+00> : vector<24x4xf32>
    %128 = tpu.matmul %125, %127, %cst_136 {dimension_numbers = #tpu.dot_dimension_numbers<[1], [0], [0], [1], [0, 0, 1, 1], [], []>} : vector<24x2xf32>, vector<2x4xf32>, vector<24x4xf32> -> vector<24x4xf32>
    %c0_137 = arith.constant 0 : index
    %c0_138 = arith.constant 0 : index
    %c0_139 = arith.constant 0 : index
    %129 = vector.load %arg16[%c0_137, %c0_138, %c0_139] : memref<4x48x24xf32, #tpu.memory_space<vmem>>, vector<1x48x24xf32>
    %130 = vector.shape_cast %129 : vector<1x48x24xf32> to vector<48x24xf32>
    %cst_140 = arith.constant dense<0.000000e+00> : vector<48x4xf32>
    %131 = tpu.matmul %130, %128, %cst_140 {dimension_numbers = #tpu.dot_dimension_numbers<[1], [0], [0], [1], [0, 0, 1, 1], [], []>} : vector<48x24xf32>, vector<24x4xf32>, vector<48x4xf32> -> vector<48x4xf32>
    %c1_141 = arith.constant 1 : index
    %c0_142 = arith.constant 0 : index
    %c0_143 = arith.constant 0 : index
    %132 = vector.load %arg17[%c1_141, %c0_142, %c0_143] : memref<4x2x4xf32, #tpu.memory_space<vmem>>, vector<1x2x4xf32>
    %133 = vector.shape_cast %132 : vector<1x2x4xf32> to vector<2x4xf32>
    %cst_144 = arith.constant dense<0.000000e+00> : vector<24x4xf32>
    %134 = tpu.matmul %125, %133, %cst_144 {dimension_numbers = #tpu.dot_dimension_numbers<[1], [0], [0], [1], [0, 0, 1, 1], [], []>} : vector<24x2xf32>, vector<2x4xf32>, vector<24x4xf32> -> vector<24x4xf32>
    %c1_145 = arith.constant 1 : index
    %c0_146 = arith.constant 0 : index
    %c0_147 = arith.constant 0 : index
    %135 = vector.load %arg16[%c1_145, %c0_146, %c0_147] : memref<4x48x24xf32, #tpu.memory_space<vmem>>, vector<1x48x24xf32>
    %136 = vector.shape_cast %135 : vector<1x48x24xf32> to vector<48x24xf32>
    %cst_148 = arith.constant dense<0.000000e+00> : vector<48x4xf32>
    %137 = tpu.matmul %136, %134, %cst_148 {dimension_numbers = #tpu.dot_dimension_numbers<[1], [0], [0], [1], [0, 0, 1, 1], [], []>} : vector<48x24xf32>, vector<24x4xf32>, vector<48x4xf32> -> vector<48x4xf32>
    %138 = arith.addf %131, %137 : vector<48x4xf32>
    %c2_149 = arith.constant 2 : index
    %c0_150 = arith.constant 0 : index
    %c0_151 = arith.constant 0 : index
    %139 = vector.load %arg17[%c2_149, %c0_150, %c0_151] : memref<4x2x4xf32, #tpu.memory_space<vmem>>, vector<1x2x4xf32>
    %140 = vector.shape_cast %139 : vector<1x2x4xf32> to vector<2x4xf32>
    %cst_152 = arith.constant dense<0.000000e+00> : vector<24x4xf32>
    %141 = tpu.matmul %125, %140, %cst_152 {dimension_numbers = #tpu.dot_dimension_numbers<[1], [0], [0], [1], [0, 0, 1, 1], [], []>} : vector<24x2xf32>, vector<2x4xf32>, vector<24x4xf32> -> vector<24x4xf32>
    %c2_153 = arith.constant 2 : index
    %c0_154 = arith.constant 0 : index
    %c0_155 = arith.constant 0 : index
    %142 = vector.load %arg16[%c2_153, %c0_154, %c0_155] : memref<4x48x24xf32, #tpu.memory_space<vmem>>, vector<1x48x24xf32>
    %143 = vector.shape_cast %142 : vector<1x48x24xf32> to vector<48x24xf32>
    %cst_156 = arith.constant dense<0.000000e+00> : vector<48x4xf32>
    %144 = tpu.matmul %143, %141, %cst_156 {dimension_numbers = #tpu.dot_dimension_numbers<[1], [0], [0], [1], [0, 0, 1, 1], [], []>} : vector<48x24xf32>, vector<24x4xf32>, vector<48x4xf32> -> vector<48x4xf32>
    %145 = arith.addf %138, %144 : vector<48x4xf32>
    %c3 = arith.constant 3 : index
    %c0_157 = arith.constant 0 : index
    %c0_158 = arith.constant 0 : index
    %146 = vector.load %arg17[%c3, %c0_157, %c0_158] : memref<4x2x4xf32, #tpu.memory_space<vmem>>, vector<1x2x4xf32>
    %147 = vector.shape_cast %146 : vector<1x2x4xf32> to vector<2x4xf32>
    %cst_159 = arith.constant dense<0.000000e+00> : vector<24x4xf32>
    %148 = tpu.matmul %125, %147, %cst_159 {dimension_numbers = #tpu.dot_dimension_numbers<[1], [0], [0], [1], [0, 0, 1, 1], [], []>} : vector<24x2xf32>, vector<2x4xf32>, vector<24x4xf32> -> vector<24x4xf32>
    %c3_160 = arith.constant 3 : index
    %c0_161 = arith.constant 0 : index
    %c0_162 = arith.constant 0 : index
    %149 = vector.load %arg16[%c3_160, %c0_161, %c0_162] : memref<4x48x24xf32, #tpu.memory_space<vmem>>, vector<1x48x24xf32>
    %150 = vector.shape_cast %149 : vector<1x48x24xf32> to vector<48x24xf32>
    %cst_163 = arith.constant dense<0.000000e+00> : vector<48x4xf32>
    %151 = tpu.matmul %150, %148, %cst_163 {dimension_numbers = #tpu.dot_dimension_numbers<[1], [0], [0], [1], [0, 0, 1, 1], [], []>} : vector<48x24xf32>, vector<24x4xf32>, vector<48x4xf32> -> vector<48x4xf32>
    %152 = arith.addf %145, %151 : vector<48x4xf32>
    %c0_164 = arith.constant 0 : index
    %c0_165 = arith.constant 0 : index
    %153 = vector.load %arg18[%c0_164, %c0_165] : memref<48x1xf32, #tpu.memory_space<vmem>>, vector<48x1xf32>
    %154 = vector.broadcast %153 : vector<48x1xf32> to vector<48x4xf32>
    %155 = arith.addf %152, %154 : vector<48x4xf32>
    %cst_166 = arith.constant 0.000000e+00 : f32
    %156 = vector.broadcast %cst_166 : f32 to vector<48x4xf32>
    %157 = arith.maximumf %155, %156 : vector<48x4xf32>
    %c0_167 = arith.constant 0 : index
    %c0_168 = arith.constant 0 : index
    %c0_169 = arith.constant 0 : index
    %158 = vector.load %arg20[%c0_167, %c0_168, %c0_169] : memref<4x4x8xf32, #tpu.memory_space<vmem>>, vector<1x4x8xf32>
    %159 = vector.shape_cast %158 : vector<1x4x8xf32> to vector<4x8xf32>
    %cst_170 = arith.constant dense<0.000000e+00> : vector<48x8xf32>
    %160 = tpu.matmul %157, %159, %cst_170 {dimension_numbers = #tpu.dot_dimension_numbers<[1], [0], [0], [1], [0, 0, 1, 1], [], []>} : vector<48x4xf32>, vector<4x8xf32>, vector<48x8xf32> -> vector<48x8xf32>
    %c0_171 = arith.constant 0 : index
    %c0_172 = arith.constant 0 : index
    %c0_173 = arith.constant 0 : index
    %161 = vector.load %arg19[%c0_171, %c0_172, %c0_173] : memref<4x48x48xf32, #tpu.memory_space<vmem>>, vector<1x48x48xf32>
    %162 = vector.shape_cast %161 : vector<1x48x48xf32> to vector<48x48xf32>
    %cst_174 = arith.constant dense<0.000000e+00> : vector<48x8xf32>
    %163 = tpu.matmul %162, %160, %cst_174 {dimension_numbers = #tpu.dot_dimension_numbers<[1], [0], [0], [1], [0, 0, 1, 1], [], []>} : vector<48x48xf32>, vector<48x8xf32>, vector<48x8xf32> -> vector<48x8xf32>
    %c1_175 = arith.constant 1 : index
    %c0_176 = arith.constant 0 : index
    %c0_177 = arith.constant 0 : index
    %164 = vector.load %arg20[%c1_175, %c0_176, %c0_177] : memref<4x4x8xf32, #tpu.memory_space<vmem>>, vector<1x4x8xf32>
    %165 = vector.shape_cast %164 : vector<1x4x8xf32> to vector<4x8xf32>
    %cst_178 = arith.constant dense<0.000000e+00> : vector<48x8xf32>
    %166 = tpu.matmul %157, %165, %cst_178 {dimension_numbers = #tpu.dot_dimension_numbers<[1], [0], [0], [1], [0, 0, 1, 1], [], []>} : vector<48x4xf32>, vector<4x8xf32>, vector<48x8xf32> -> vector<48x8xf32>
    %c1_179 = arith.constant 1 : index
    %c0_180 = arith.constant 0 : index
    %c0_181 = arith.constant 0 : index
    %167 = vector.load %arg19[%c1_179, %c0_180, %c0_181] : memref<4x48x48xf32, #tpu.memory_space<vmem>>, vector<1x48x48xf32>
    %168 = vector.shape_cast %167 : vector<1x48x48xf32> to vector<48x48xf32>
    %cst_182 = arith.constant dense<0.000000e+00> : vector<48x8xf32>
    %169 = tpu.matmul %168, %166, %cst_182 {dimension_numbers = #tpu.dot_dimension_numbers<[1], [0], [0], [1], [0, 0, 1, 1], [], []>} : vector<48x48xf32>, vector<48x8xf32>, vector<48x8xf32> -> vector<48x8xf32>
    %170 = arith.addf %163, %169 : vector<48x8xf32>
    %c2_183 = arith.constant 2 : index
    %c0_184 = arith.constant 0 : index
    %c0_185 = arith.constant 0 : index
    %171 = vector.load %arg20[%c2_183, %c0_184, %c0_185] : memref<4x4x8xf32, #tpu.memory_space<vmem>>, vector<1x4x8xf32>
    %172 = vector.shape_cast %171 : vector<1x4x8xf32> to vector<4x8xf32>
    %cst_186 = arith.constant dense<0.000000e+00> : vector<48x8xf32>
    %173 = tpu.matmul %157, %172, %cst_186 {dimension_numbers = #tpu.dot_dimension_numbers<[1], [0], [0], [1], [0, 0, 1, 1], [], []>} : vector<48x4xf32>, vector<4x8xf32>, vector<48x8xf32> -> vector<48x8xf32>
    %c2_187 = arith.constant 2 : index
    %c0_188 = arith.constant 0 : index
    %c0_189 = arith.constant 0 : index
    %174 = vector.load %arg19[%c2_187, %c0_188, %c0_189] : memref<4x48x48xf32, #tpu.memory_space<vmem>>, vector<1x48x48xf32>
    %175 = vector.shape_cast %174 : vector<1x48x48xf32> to vector<48x48xf32>
    %cst_190 = arith.constant dense<0.000000e+00> : vector<48x8xf32>
    %176 = tpu.matmul %175, %173, %cst_190 {dimension_numbers = #tpu.dot_dimension_numbers<[1], [0], [0], [1], [0, 0, 1, 1], [], []>} : vector<48x48xf32>, vector<48x8xf32>, vector<48x8xf32> -> vector<48x8xf32>
    %177 = arith.addf %170, %176 : vector<48x8xf32>
    %c3_191 = arith.constant 3 : index
    %c0_192 = arith.constant 0 : index
    %c0_193 = arith.constant 0 : index
    %178 = vector.load %arg20[%c3_191, %c0_192, %c0_193] : memref<4x4x8xf32, #tpu.memory_space<vmem>>, vector<1x4x8xf32>
    %179 = vector.shape_cast %178 : vector<1x4x8xf32> to vector<4x8xf32>
    %cst_194 = arith.constant dense<0.000000e+00> : vector<48x8xf32>
    %180 = tpu.matmul %157, %179, %cst_194 {dimension_numbers = #tpu.dot_dimension_numbers<[1], [0], [0], [1], [0, 0, 1, 1], [], []>} : vector<48x4xf32>, vector<4x8xf32>, vector<48x8xf32> -> vector<48x8xf32>
    %c3_195 = arith.constant 3 : index
    %c0_196 = arith.constant 0 : index
    %c0_197 = arith.constant 0 : index
    %181 = vector.load %arg19[%c3_195, %c0_196, %c0_197] : memref<4x48x48xf32, #tpu.memory_space<vmem>>, vector<1x48x48xf32>
    %182 = vector.shape_cast %181 : vector<1x48x48xf32> to vector<48x48xf32>
    %cst_198 = arith.constant dense<0.000000e+00> : vector<48x8xf32>
    %183 = tpu.matmul %182, %180, %cst_198 {dimension_numbers = #tpu.dot_dimension_numbers<[1], [0], [0], [1], [0, 0, 1, 1], [], []>} : vector<48x48xf32>, vector<48x8xf32>, vector<48x8xf32> -> vector<48x8xf32>
    %184 = arith.addf %177, %183 : vector<48x8xf32>
    %c0_199 = arith.constant 0 : index
    %c0_200 = arith.constant 0 : index
    %185 = vector.load %arg21[%c0_199, %c0_200] : memref<48x1xf32, #tpu.memory_space<vmem>>, vector<48x1xf32>
    %186 = vector.broadcast %185 : vector<48x1xf32> to vector<48x8xf32>
    %187 = arith.addf %184, %186 : vector<48x8xf32>
    %cst_201 = arith.constant 0.000000e+00 : f32
    %188 = vector.broadcast %cst_201 : f32 to vector<48x8xf32>
    %189 = arith.maximumf %187, %188 : vector<48x8xf32>
    %c0_202 = arith.constant 0 : index
    %c0_203 = arith.constant 0 : index
    %c0_204 = arith.constant 0 : index
    %190 = vector.load %arg23[%c0_202, %c0_203, %c0_204] : memref<4x8x16xf32, #tpu.memory_space<vmem>>, vector<1x8x16xf32>
    %191 = vector.shape_cast %190 : vector<1x8x16xf32> to vector<8x16xf32>
    %cst_205 = arith.constant dense<0.000000e+00> : vector<48x16xf32>
    %192 = tpu.matmul %189, %191, %cst_205 {dimension_numbers = #tpu.dot_dimension_numbers<[1], [0], [0], [1], [0, 0, 1, 1], [], []>} : vector<48x8xf32>, vector<8x16xf32>, vector<48x16xf32> -> vector<48x16xf32>
    %c0_206 = arith.constant 0 : index
    %c0_207 = arith.constant 0 : index
    %c0_208 = arith.constant 0 : index
    %193 = vector.load %arg22[%c0_206, %c0_207, %c0_208] : memref<4x48x48xf32, #tpu.memory_space<vmem>>, vector<1x48x48xf32>
    %194 = vector.shape_cast %193 : vector<1x48x48xf32> to vector<48x48xf32>
    %cst_209 = arith.constant dense<0.000000e+00> : vector<48x16xf32>
    %195 = tpu.matmul %194, %192, %cst_209 {dimension_numbers = #tpu.dot_dimension_numbers<[1], [0], [0], [1], [0, 0, 1, 1], [], []>} : vector<48x48xf32>, vector<48x16xf32>, vector<48x16xf32> -> vector<48x16xf32>
    %c1_210 = arith.constant 1 : index
    %c0_211 = arith.constant 0 : index
    %c0_212 = arith.constant 0 : index
    %196 = vector.load %arg23[%c1_210, %c0_211, %c0_212] : memref<4x8x16xf32, #tpu.memory_space<vmem>>, vector<1x8x16xf32>
    %197 = vector.shape_cast %196 : vector<1x8x16xf32> to vector<8x16xf32>
    %cst_213 = arith.constant dense<0.000000e+00> : vector<48x16xf32>
    %198 = tpu.matmul %189, %197, %cst_213 {dimension_numbers = #tpu.dot_dimension_numbers<[1], [0], [0], [1], [0, 0, 1, 1], [], []>} : vector<48x8xf32>, vector<8x16xf32>, vector<48x16xf32> -> vector<48x16xf32>
    %c1_214 = arith.constant 1 : index
    %c0_215 = arith.constant 0 : index
    %c0_216 = arith.constant 0 : index
    %199 = vector.load %arg22[%c1_214, %c0_215, %c0_216] : memref<4x48x48xf32, #tpu.memory_space<vmem>>, vector<1x48x48xf32>
    %200 = vector.shape_cast %199 : vector<1x48x48xf32> to vector<48x48xf32>
    %cst_217 = arith.constant dense<0.000000e+00> : vector<48x16xf32>
    %201 = tpu.matmul %200, %198, %cst_217 {dimension_numbers = #tpu.dot_dimension_numbers<[1], [0], [0], [1], [0, 0, 1, 1], [], []>} : vector<48x48xf32>, vector<48x16xf32>, vector<48x16xf32> -> vector<48x16xf32>
    %202 = arith.addf %195, %201 : vector<48x16xf32>
    %c2_218 = arith.constant 2 : index
    %c0_219 = arith.constant 0 : index
    %c0_220 = arith.constant 0 : index
    %203 = vector.load %arg23[%c2_218, %c0_219, %c0_220] : memref<4x8x16xf32, #tpu.memory_space<vmem>>, vector<1x8x16xf32>
    %204 = vector.shape_cast %203 : vector<1x8x16xf32> to vector<8x16xf32>
    %cst_221 = arith.constant dense<0.000000e+00> : vector<48x16xf32>
    %205 = tpu.matmul %189, %204, %cst_221 {dimension_numbers = #tpu.dot_dimension_numbers<[1], [0], [0], [1], [0, 0, 1, 1], [], []>} : vector<48x8xf32>, vector<8x16xf32>, vector<48x16xf32> -> vector<48x16xf32>
    %c2_222 = arith.constant 2 : index
    %c0_223 = arith.constant 0 : index
    %c0_224 = arith.constant 0 : index
    %206 = vector.load %arg22[%c2_222, %c0_223, %c0_224] : memref<4x48x48xf32, #tpu.memory_space<vmem>>, vector<1x48x48xf32>
    %207 = vector.shape_cast %206 : vector<1x48x48xf32> to vector<48x48xf32>
    %cst_225 = arith.constant dense<0.000000e+00> : vector<48x16xf32>
    %208 = tpu.matmul %207, %205, %cst_225 {dimension_numbers = #tpu.dot_dimension_numbers<[1], [0], [0], [1], [0, 0, 1, 1], [], []>} : vector<48x48xf32>, vector<48x16xf32>, vector<48x16xf32> -> vector<48x16xf32>
    %209 = arith.addf %202, %208 : vector<48x16xf32>
    %c3_226 = arith.constant 3 : index
    %c0_227 = arith.constant 0 : index
    %c0_228 = arith.constant 0 : index
    %210 = vector.load %arg23[%c3_226, %c0_227, %c0_228] : memref<4x8x16xf32, #tpu.memory_space<vmem>>, vector<1x8x16xf32>
    %211 = vector.shape_cast %210 : vector<1x8x16xf32> to vector<8x16xf32>
    %cst_229 = arith.constant dense<0.000000e+00> : vector<48x16xf32>
    %212 = tpu.matmul %189, %211, %cst_229 {dimension_numbers = #tpu.dot_dimension_numbers<[1], [0], [0], [1], [0, 0, 1, 1], [], []>} : vector<48x8xf32>, vector<8x16xf32>, vector<48x16xf32> -> vector<48x16xf32>
    %c3_230 = arith.constant 3 : index
    %c0_231 = arith.constant 0 : index
    %c0_232 = arith.constant 0 : index
    %213 = vector.load %arg22[%c3_230, %c0_231, %c0_232] : memref<4x48x48xf32, #tpu.memory_space<vmem>>, vector<1x48x48xf32>
    %214 = vector.shape_cast %213 : vector<1x48x48xf32> to vector<48x48xf32>
    %cst_233 = arith.constant dense<0.000000e+00> : vector<48x16xf32>
    %215 = tpu.matmul %214, %212, %cst_233 {dimension_numbers = #tpu.dot_dimension_numbers<[1], [0], [0], [1], [0, 0, 1, 1], [], []>} : vector<48x48xf32>, vector<48x16xf32>, vector<48x16xf32> -> vector<48x16xf32>
    %216 = arith.addf %209, %215 : vector<48x16xf32>
    %c0_234 = arith.constant 0 : index
    %c0_235 = arith.constant 0 : index
    %217 = vector.load %arg24[%c0_234, %c0_235] : memref<48x1xf32, #tpu.memory_space<vmem>>, vector<48x1xf32>
    %218 = vector.broadcast %217 : vector<48x1xf32> to vector<48x16xf32>
    %219 = arith.addf %216, %218 : vector<48x16xf32>
    %cst_236 = arith.constant 0.000000e+00 : f32
    %220 = vector.broadcast %cst_236 : f32 to vector<48x16xf32>
    %221 = arith.maximumf %219, %220 : vector<48x16xf32>
    %c0_237 = arith.constant 0 : index
    %c0_238 = arith.constant 0 : index
    %c0_239 = arith.constant 0 : index
    %222 = vector.load %arg26[%c0_237, %c0_238, %c0_239] : memref<4x16x32xf32, #tpu.memory_space<vmem>>, vector<1x16x32xf32>
    %223 = vector.shape_cast %222 : vector<1x16x32xf32> to vector<16x32xf32>
    %cst_240 = arith.constant dense<0.000000e+00> : vector<48x32xf32>
    %224 = tpu.matmul %221, %223, %cst_240 {dimension_numbers = #tpu.dot_dimension_numbers<[1], [0], [0], [1], [0, 0, 1, 1], [], []>} : vector<48x16xf32>, vector<16x32xf32>, vector<48x32xf32> -> vector<48x32xf32>
    %c0_241 = arith.constant 0 : index
    %c0_242 = arith.constant 0 : index
    %c0_243 = arith.constant 0 : index
    %225 = vector.load %arg25[%c0_241, %c0_242, %c0_243] : memref<4x96x48xf32, #tpu.memory_space<vmem>>, vector<1x96x48xf32>
    %226 = vector.shape_cast %225 : vector<1x96x48xf32> to vector<96x48xf32>
    %cst_244 = arith.constant dense<0.000000e+00> : vector<96x32xf32>
    %227 = tpu.matmul %226, %224, %cst_244 {dimension_numbers = #tpu.dot_dimension_numbers<[1], [0], [0], [1], [0, 0, 1, 1], [], []>} : vector<96x48xf32>, vector<48x32xf32>, vector<96x32xf32> -> vector<96x32xf32>
    %c1_245 = arith.constant 1 : index
    %c0_246 = arith.constant 0 : index
    %c0_247 = arith.constant 0 : index
    %228 = vector.load %arg26[%c1_245, %c0_246, %c0_247] : memref<4x16x32xf32, #tpu.memory_space<vmem>>, vector<1x16x32xf32>
    %229 = vector.shape_cast %228 : vector<1x16x32xf32> to vector<16x32xf32>
    %cst_248 = arith.constant dense<0.000000e+00> : vector<48x32xf32>
    %230 = tpu.matmul %221, %229, %cst_248 {dimension_numbers = #tpu.dot_dimension_numbers<[1], [0], [0], [1], [0, 0, 1, 1], [], []>} : vector<48x16xf32>, vector<16x32xf32>, vector<48x32xf32> -> vector<48x32xf32>
    %c1_249 = arith.constant 1 : index
    %c0_250 = arith.constant 0 : index
    %c0_251 = arith.constant 0 : index
    %231 = vector.load %arg25[%c1_249, %c0_250, %c0_251] : memref<4x96x48xf32, #tpu.memory_space<vmem>>, vector<1x96x48xf32>
    %232 = vector.shape_cast %231 : vector<1x96x48xf32> to vector<96x48xf32>
    %cst_252 = arith.constant dense<0.000000e+00> : vector<96x32xf32>
    %233 = tpu.matmul %232, %230, %cst_252 {dimension_numbers = #tpu.dot_dimension_numbers<[1], [0], [0], [1], [0, 0, 1, 1], [], []>} : vector<96x48xf32>, vector<48x32xf32>, vector<96x32xf32> -> vector<96x32xf32>
    %234 = arith.addf %227, %233 : vector<96x32xf32>
    %c2_253 = arith.constant 2 : index
    %c0_254 = arith.constant 0 : index
    %c0_255 = arith.constant 0 : index
    %235 = vector.load %arg26[%c2_253, %c0_254, %c0_255] : memref<4x16x32xf32, #tpu.memory_space<vmem>>, vector<1x16x32xf32>
    %236 = vector.shape_cast %235 : vector<1x16x32xf32> to vector<16x32xf32>
    %cst_256 = arith.constant dense<0.000000e+00> : vector<48x32xf32>
    %237 = tpu.matmul %221, %236, %cst_256 {dimension_numbers = #tpu.dot_dimension_numbers<[1], [0], [0], [1], [0, 0, 1, 1], [], []>} : vector<48x16xf32>, vector<16x32xf32>, vector<48x32xf32> -> vector<48x32xf32>
    %c2_257 = arith.constant 2 : index
    %c0_258 = arith.constant 0 : index
    %c0_259 = arith.constant 0 : index
    %238 = vector.load %arg25[%c2_257, %c0_258, %c0_259] : memref<4x96x48xf32, #tpu.memory_space<vmem>>, vector<1x96x48xf32>
    %239 = vector.shape_cast %238 : vector<1x96x48xf32> to vector<96x48xf32>
    %cst_260 = arith.constant dense<0.000000e+00> : vector<96x32xf32>
    %240 = tpu.matmul %239, %237, %cst_260 {dimension_numbers = #tpu.dot_dimension_numbers<[1], [0], [0], [1], [0, 0, 1, 1], [], []>} : vector<96x48xf32>, vector<48x32xf32>, vector<96x32xf32> -> vector<96x32xf32>
    %241 = arith.addf %234, %240 : vector<96x32xf32>
    %c3_261 = arith.constant 3 : index
    %c0_262 = arith.constant 0 : index
    %c0_263 = arith.constant 0 : index
    %242 = vector.load %arg26[%c3_261, %c0_262, %c0_263] : memref<4x16x32xf32, #tpu.memory_space<vmem>>, vector<1x16x32xf32>
    %243 = vector.shape_cast %242 : vector<1x16x32xf32> to vector<16x32xf32>
    %cst_264 = arith.constant dense<0.000000e+00> : vector<48x32xf32>
    %244 = tpu.matmul %221, %243, %cst_264 {dimension_numbers = #tpu.dot_dimension_numbers<[1], [0], [0], [1], [0, 0, 1, 1], [], []>} : vector<48x16xf32>, vector<16x32xf32>, vector<48x32xf32> -> vector<48x32xf32>
    %c3_265 = arith.constant 3 : index
    %c0_266 = arith.constant 0 : index
    %c0_267 = arith.constant 0 : index
    %245 = vector.load %arg25[%c3_265, %c0_266, %c0_267] : memref<4x96x48xf32, #tpu.memory_space<vmem>>, vector<1x96x48xf32>
    %246 = vector.shape_cast %245 : vector<1x96x48xf32> to vector<96x48xf32>
    %cst_268 = arith.constant dense<0.000000e+00> : vector<96x32xf32>
    %247 = tpu.matmul %246, %244, %cst_268 {dimension_numbers = #tpu.dot_dimension_numbers<[1], [0], [0], [1], [0, 0, 1, 1], [], []>} : vector<96x48xf32>, vector<48x32xf32>, vector<96x32xf32> -> vector<96x32xf32>
    %248 = arith.addf %241, %247 : vector<96x32xf32>
    %c0_269 = arith.constant 0 : index
    %c0_270 = arith.constant 0 : index
    %249 = vector.load %arg27[%c0_269, %c0_270] : memref<96x1xf32, #tpu.memory_space<vmem>>, vector<96x1xf32>
    %250 = vector.broadcast %249 : vector<96x1xf32> to vector<96x32xf32>
    %251 = arith.addf %248, %250 : vector<96x32xf32>
    %cst_271 = arith.constant 0.000000e+00 : f32
    %252 = vector.broadcast %cst_271 : f32 to vector<96x32xf32>
    %253 = arith.maximumf %251, %252 : vector<96x32xf32>
    %c0_272 = arith.constant 0 : index
    %c0_273 = arith.constant 0 : index
    %c0_274 = arith.constant 0 : index
    %254 = vector.load %arg29[%c0_272, %c0_273, %c0_274] : memref<4x32x64xf32, #tpu.memory_space<vmem>>, vector<1x32x64xf32>
    %255 = vector.shape_cast %254 : vector<1x32x64xf32> to vector<32x64xf32>
    %cst_275 = arith.constant dense<0.000000e+00> : vector<96x64xf32>
    %256 = tpu.matmul %253, %255, %cst_275 {dimension_numbers = #tpu.dot_dimension_numbers<[1], [0], [0], [1], [0, 0, 1, 1], [], []>} : vector<96x32xf32>, vector<32x64xf32>, vector<96x64xf32> -> vector<96x64xf32>
    %c0_276 = arith.constant 0 : index
    %c0_277 = arith.constant 0 : index
    %c0_278 = arith.constant 0 : index
    %257 = vector.load %arg28[%c0_276, %c0_277, %c0_278] : memref<4x96x96xf32, #tpu.memory_space<vmem>>, vector<1x96x96xf32>
    %258 = vector.shape_cast %257 : vector<1x96x96xf32> to vector<96x96xf32>
    %cst_279 = arith.constant dense<0.000000e+00> : vector<96x64xf32>
    %259 = tpu.matmul %258, %256, %cst_279 {dimension_numbers = #tpu.dot_dimension_numbers<[1], [0], [0], [1], [0, 0, 1, 1], [], []>} : vector<96x96xf32>, vector<96x64xf32>, vector<96x64xf32> -> vector<96x64xf32>
    %c1_280 = arith.constant 1 : index
    %c0_281 = arith.constant 0 : index
    %c0_282 = arith.constant 0 : index
    %260 = vector.load %arg29[%c1_280, %c0_281, %c0_282] : memref<4x32x64xf32, #tpu.memory_space<vmem>>, vector<1x32x64xf32>
    %261 = vector.shape_cast %260 : vector<1x32x64xf32> to vector<32x64xf32>
    %cst_283 = arith.constant dense<0.000000e+00> : vector<96x64xf32>
    %262 = tpu.matmul %253, %261, %cst_283 {dimension_numbers = #tpu.dot_dimension_numbers<[1], [0], [0], [1], [0, 0, 1, 1], [], []>} : vector<96x32xf32>, vector<32x64xf32>, vector<96x64xf32> -> vector<96x64xf32>
    %c1_284 = arith.constant 1 : index
    %c0_285 = arith.constant 0 : index
    %c0_286 = arith.constant 0 : index
    %263 = vector.load %arg28[%c1_284, %c0_285, %c0_286] : memref<4x96x96xf32, #tpu.memory_space<vmem>>, vector<1x96x96xf32>
    %264 = vector.shape_cast %263 : vector<1x96x96xf32> to vector<96x96xf32>
    %cst_287 = arith.constant dense<0.000000e+00> : vector<96x64xf32>
    %265 = tpu.matmul %264, %262, %cst_287 {dimension_numbers = #tpu.dot_dimension_numbers<[1], [0], [0], [1], [0, 0, 1, 1], [], []>} : vector<96x96xf32>, vector<96x64xf32>, vector<96x64xf32> -> vector<96x64xf32>
    %266 = arith.addf %259, %265 : vector<96x64xf32>
    %c2_288 = arith.constant 2 : index
    %c0_289 = arith.constant 0 : index
    %c0_290 = arith.constant 0 : index
    %267 = vector.load %arg29[%c2_288, %c0_289, %c0_290] : memref<4x32x64xf32, #tpu.memory_space<vmem>>, vector<1x32x64xf32>
    %268 = vector.shape_cast %267 : vector<1x32x64xf32> to vector<32x64xf32>
    %cst_291 = arith.constant dense<0.000000e+00> : vector<96x64xf32>
    %269 = tpu.matmul %253, %268, %cst_291 {dimension_numbers = #tpu.dot_dimension_numbers<[1], [0], [0], [1], [0, 0, 1, 1], [], []>} : vector<96x32xf32>, vector<32x64xf32>, vector<96x64xf32> -> vector<96x64xf32>
    %c2_292 = arith.constant 2 : index
    %c0_293 = arith.constant 0 : index
    %c0_294 = arith.constant 0 : index
    %270 = vector.load %arg28[%c2_292, %c0_293, %c0_294] : memref<4x96x96xf32, #tpu.memory_space<vmem>>, vector<1x96x96xf32>
    %271 = vector.shape_cast %270 : vector<1x96x96xf32> to vector<96x96xf32>
    %cst_295 = arith.constant dense<0.000000e+00> : vector<96x64xf32>
    %272 = tpu.matmul %271, %269, %cst_295 {dimension_numbers = #tpu.dot_dimension_numbers<[1], [0], [0], [1], [0, 0, 1, 1], [], []>} : vector<96x96xf32>, vector<96x64xf32>, vector<96x64xf32> -> vector<96x64xf32>
    %273 = arith.addf %266, %272 : vector<96x64xf32>
    %c3_296 = arith.constant 3 : index
    %c0_297 = arith.constant 0 : index
    %c0_298 = arith.constant 0 : index
    %274 = vector.load %arg29[%c3_296, %c0_297, %c0_298] : memref<4x32x64xf32, #tpu.memory_space<vmem>>, vector<1x32x64xf32>
    %275 = vector.shape_cast %274 : vector<1x32x64xf32> to vector<32x64xf32>
    %cst_299 = arith.constant dense<0.000000e+00> : vector<96x64xf32>
    %276 = tpu.matmul %253, %275, %cst_299 {dimension_numbers = #tpu.dot_dimension_numbers<[1], [0], [0], [1], [0, 0, 1, 1], [], []>} : vector<96x32xf32>, vector<32x64xf32>, vector<96x64xf32> -> vector<96x64xf32>
    %c3_300 = arith.constant 3 : index
    %c0_301 = arith.constant 0 : index
    %c0_302 = arith.constant 0 : index
    %277 = vector.load %arg28[%c3_300, %c0_301, %c0_302] : memref<4x96x96xf32, #tpu.memory_space<vmem>>, vector<1x96x96xf32>
    %278 = vector.shape_cast %277 : vector<1x96x96xf32> to vector<96x96xf32>
    %cst_303 = arith.constant dense<0.000000e+00> : vector<96x64xf32>
    %279 = tpu.matmul %278, %276, %cst_303 {dimension_numbers = #tpu.dot_dimension_numbers<[1], [0], [0], [1], [0, 0, 1, 1], [], []>} : vector<96x96xf32>, vector<96x64xf32>, vector<96x64xf32> -> vector<96x64xf32>
    %280 = arith.addf %273, %279 : vector<96x64xf32>
    %c0_304 = arith.constant 0 : index
    %c0_305 = arith.constant 0 : index
    %281 = vector.load %arg30[%c0_304, %c0_305] : memref<96x1xf32, #tpu.memory_space<vmem>>, vector<96x1xf32>
    %282 = vector.broadcast %281 : vector<96x1xf32> to vector<96x64xf32>
    %283 = arith.addf %280, %282 : vector<96x64xf32>
    %cst_306 = arith.constant 0.000000e+00 : f32
    %284 = vector.broadcast %cst_306 : f32 to vector<96x64xf32>
    %285 = arith.maximumf %283, %284 : vector<96x64xf32>
    %cst_307 = arith.constant 0.000000e+00 : f32
    %286 = vector.broadcast %cst_307 : f32 to vector<96x64xf32>
    %287 = arith.subf %286, %285 : vector<96x64xf32>
    %288 = math.exp %287 : vector<96x64xf32>
    %cst_308 = arith.constant 1.000000e+00 : f32
    %289 = vector.broadcast %cst_308 : f32 to vector<96x64xf32>
    %290 = arith.addf %289, %288 : vector<96x64xf32>
    %291 = tpu.reciprocal %290 {approx = true} : vector<96x64xf32> -> vector<96x64xf32>
    %c0_309 = arith.constant 0 : index
    %c0_310 = arith.constant 0 : index
    %292 = vector.load %arg31[%c0_309, %c0_310] : memref<96x64xf32, #tpu.memory_space<vmem>>, vector<96x64xf32>
    tpu.vector_store %arg31[%c0_309, %c0_310], %291 {strides = array<i32>} : memref<96x64xf32, #tpu.memory_space<vmem>>, vector<96x64xf32>,
    return
  }
}

</mosaic_0001>

<llo_original>
// kernel: mask_forward.1
$region0: #{mask_forward.1}
  #allocation0 [shape = 'u32[]', space=smem, size = 0x4, offset = 0x4, fixed_abs, tag = 'smem constant byte address 0x4 - core index']
  #allocation1 [shape = 'u32[72,128]{1,0:T(1,128)}', space=vmem, size = 0x9000, scoped, tag = 'internal scratch']
  %s0 = inlined_call_operand.smem [shape: u32[32], index: -1, kind: input, shape index: {}]
  %s1 = sld [smem:[%s0]]
  %s2 = scalar_lea.smem %s0, 1
  %s3 = sld [smem:[%s2]]
  %s4 = scalar_lea.smem %s0, 2
  %s5 = sld [smem:[%s4]]
  %s6 = scalar_lea.smem %s0, 3
  %s7 = sld [smem:[%s6]]
  %s8 = scalar_lea.smem %s0, 4
  %s9 = sld [smem:[%s8]]
  %s10 = scalar_lea.smem %s0, 5
  %s11 = sld [smem:[%s10]]
  %s12 = scalar_lea.smem %s0, 6
  %s13 = sld [smem:[%s12]]
  %s14 = scalar_lea.smem %s0, 7
  %s15 = sld [smem:[%s14]]
  %s16 = scalar_lea.smem %s0, 8
  %s17 = sld [smem:[%s16]]
  %s18 = scalar_lea.smem %s0, 9
  %s19 = sld [smem:[%s18]]
  %s20 = scalar_lea.smem %s0, 10
  %s21 = sld [smem:[%s20]]
  %s22 = scalar_lea.smem %s0, 11
  %s23 = sld [smem:[%s22]]
  %s24 = scalar_lea.smem %s0, 12
  %s25 = sld [smem:[%s24]]
  %s26 = scalar_lea.smem %s0, 13
  %s27 = sld [smem:[%s26]]
  %s28 = scalar_lea.smem %s0, 14
  %s29 = sld [smem:[%s28]]
  %s30 = scalar_lea.smem %s0, 15
  %s31 = sld [smem:[%s30]]
  %s32 = scalar_lea.smem %s0, 16
  %s33 = sld [smem:[%s32]]
  %s34 = scalar_lea.smem %s0, 17
  %s35 = sld [smem:[%s34]]
  %s36 = scalar_lea.smem %s0, 18
  %s37 = sld [smem:[%s36]]
  %s38 = scalar_lea.smem %s0, 19
  %s39 = sld [smem:[%s38]]
  %s40 = scalar_lea.smem %s0, 20
  %s41 = sld [smem:[%s40]]
  %s42 = scalar_lea.smem %s0, 21
  %s43 = sld [smem:[%s42]]
  %s44 = scalar_lea.smem %s0, 22
  %s45 = sld [smem:[%s44]]
  %s46 = scalar_lea.smem %s0, 23
  %s47 = sld [smem:[%s46]]
  %s48 = scalar_lea.smem %s0, 24
  %s49 = sld [smem:[%s48]]
  %s50 = scalar_lea.smem %s0, 25
  %s51 = sld [smem:[%s50]]
  %s52 = scalar_lea.smem %s0, 26
  %s53 = sld [smem:[%s52]]
  %s54 = scalar_lea.smem %s0, 27
  %s55 = sld [smem:[%s54]]
  %s56 = scalar_lea.smem %s0, 28
  %s57 = sld [smem:[%s56]]
  %s58 = scalar_lea.smem %s0, 29
  %s59 = sld [smem:[%s58]]
  %s60 = scalar_lea.smem %s0, 30
  %s61 = sld [smem:[%s60]]
  %s62 = scalar_lea.smem %s0, 31
  %s63 = sld [smem:[%s62]]
  %s64 = sld [smem:[#allocation0]]
  $region138: #{mask_forward.1} parent=0
    _
  %s66 = ssub.s32 1, %s64
  %s67 = scalar_select 0, %s66, %s64
  $region1: #{mask_forward.1} parent=0
    #allocation2 [shape = 'u8[65536]{0}', space=vmem, size = 0x10000, scoped, tag = 'input window, operand 29, single buffered']
    #allocation3 [shape = 's32[1]{0}', space=sflag, size = 0x4, scoped, tag = 'scoped memory for mask_forward.1']
    %68 = vsyncpa [#allocation3], 0
    // Predicated region
    $region2: #{mask_forward.1} parent=1 // pred_check
      _
    $region3: #{mask_forward.1} parent=1 // pred_check_branch
      %70 = sbr.rel (0) target = $region5
    $region4: #{mask_forward.1} parent=1 // pred_region
      _
    $region5: #{mask_forward.1} parent=1 // pred_fallthru
      _
    // Predicated region
    $region6: #{mask_forward.1} parent=1 // pred_check
      _
    $region7: #{mask_forward.1} parent=1 // pred_check_branch
      %72 = sbr.rel (0) target = $region9
    $region8: #{mask_forward.1} parent=1 // pred_region
      _
    $region9: #{mask_forward.1} parent=1 // pred_fallthru
      _
    // Predicated region
    $region10: #{mask_forward.1} parent=1 // pred_check
      _
    $region11: #{mask_forward.1} parent=1 // pred_check_branch
      %74 = sbr.rel (0) target = $region13
    $region12: #{mask_forward.1} parent=1 // pred_region
      _
    $region13: #{mask_forward.1} parent=1 // pred_fallthru
      _
    // Predicated region
    $region14: #{mask_forward.1} parent=1 // pred_check
      _
    $region15: #{mask_forward.1} parent=1 // pred_check_branch
      %76 = sbr.rel (0) target = $region17
    $region16: #{mask_forward.1} parent=1 // pred_region
      _
    $region17: #{mask_forward.1} parent=1 // pred_fallthru
      _
    // Predicated region
    $region18: #{mask_forward.1} parent=1 // pred_check
      _
    $region19: #{mask_forward.1} parent=1 // pred_check_branch
      %78 = sbr.rel (0) target = $region21
    $region20: #{mask_forward.1} parent=1 // pred_region
      _
    $region21: #{mask_forward.1} parent=1 // pred_fallthru
      _
    // Predicated region
    $region22: #{mask_forward.1} parent=1 // pred_check
      _
    $region23: #{mask_forward.1} parent=1 // pred_check_branch
      %80 = sbr.rel (0) target = $region25
    $region24: #{mask_forward.1} parent=1 // pred_region
      _
    $region25: #{mask_forward.1} parent=1 // pred_fallthru
      _
    // Predicated region
    $region26: #{mask_forward.1} parent=1 // pred_check
      _
    $region27: #{mask_forward.1} parent=1 // pred_check_branch
      %82 = sbr.rel (0) target = $region29
    $region28: #{mask_forward.1} parent=1 // pred_region
      _
    $region29: #{mask_forward.1} parent=1 // pred_fallthru
      _
    // Predicated region
    $region30: #{mask_forward.1} parent=1 // pred_check
      _
    $region31: #{mask_forward.1} parent=1 // pred_check_branch
      %84 = sbr.rel (0) target = $region33
    $region32: #{mask_forward.1} parent=1 // pred_region
      _
    $region33: #{mask_forward.1} parent=1 // pred_fallthru
      _
    // Predicated region
    $region34: #{mask_forward.1} parent=1 // pred_check
      _
    $region35: #{mask_forward.1} parent=1 // pred_check_branch
      %86 = sbr.rel (0) target = $region37
    $region36: #{mask_forward.1} parent=1 // pred_region
      _
    $region37: #{mask_forward.1} parent=1 // pred_fallthru
      _
    // Predicated region
    $region38: #{mask_forward.1} parent=1 // pred_check
      _
    $region39: #{mask_forward.1} parent=1 // pred_check_branch
      %88 = sbr.rel (0) target = $region41
    $region40: #{mask_forward.1} parent=1 // pred_region
      _
    $region41: #{mask_forward.1} parent=1 // pred_fallthru
      _
    // Predicated region
    $region42: #{mask_forward.1} parent=1 // pred_check
      _
    $region43: #{mask_forward.1} parent=1 // pred_check_branch
      %90 = sbr.rel (0) target = $region45
    $region44: #{mask_forward.1} parent=1 // pred_region
      _
    $region45: #{mask_forward.1} parent=1 // pred_fallthru
      _
    // Predicated region
    $region46: #{mask_forward.1} parent=1 // pred_check
      _
    $region47: #{mask_forward.1} parent=1 // pred_check_branch
      %92 = sbr.rel (0) target = $region49
    $region48: #{mask_forward.1} parent=1 // pred_region
      _
    $region49: #{mask_forward.1} parent=1 // pred_fallthru
      _
    // Predicated region
    $region50: #{mask_forward.1} parent=1 // pred_check
      _
    $region51: #{mask_forward.1} parent=1 // pred_check_branch
      %94 = sbr.rel (0) target = $region53
    $region52: #{mask_forward.1} parent=1 // pred_region
      _
    $region53: #{mask_forward.1} parent=1 // pred_fallthru
      _
    // Predicated region
    $region54: #{mask_forward.1} parent=1 // pred_check
      _
    $region55: #{mask_forward.1} parent=1 // pred_check_branch
      %96 = sbr.rel (0) target = $region57
    $region56: #{mask_forward.1} parent=1 // pred_region
      _
    $region57: #{mask_forward.1} parent=1 // pred_fallthru
      _
    // Predicated region
    $region58: #{mask_forward.1} parent=1 // pred_check
      _
    $region59: #{mask_forward.1} parent=1 // pred_check_branch
      %98 = sbr.rel (0) target = $region61
    $region60: #{mask_forward.1} parent=1 // pred_region
      _
    $region61: #{mask_forward.1} parent=1 // pred_fallthru
      _
    // Predicated region
    $region62: #{mask_forward.1} parent=1 // pred_check
      _
    $region63: #{mask_forward.1} parent=1 // pred_check_branch
      %100 = sbr.rel (0) target = $region65
    $region64: #{mask_forward.1} parent=1 // pred_region
      _
    $region65: #{mask_forward.1} parent=1 // pred_fallthru
      _
    // Predicated region
    $region66: #{mask_forward.1} parent=1 // pred_check
      _
    $region67: #{mask_forward.1} parent=1 // pred_check_branch
      %102 = sbr.rel (0) target = $region69
    $region68: #{mask_forward.1} parent=1 // pred_region
      _
    $region69: #{mask_forward.1} parent=1 // pred_fallthru
      _
    // Predicated region
    $region70: #{mask_forward.1} parent=1 // pred_check
      _
    $region71: #{mask_forward.1} parent=1 // pred_check_branch
      %104 = sbr.rel (0) target = $region73
    $region72: #{mask_forward.1} parent=1 // pred_region
      _
    $region73: #{mask_forward.1} parent=1 // pred_fallthru
      _
    // Predicated region
    $region74: #{mask_forward.1} parent=1 // pred_check
      _
    $region75: #{mask_forward.1} parent=1 // pred_check_branch
      %106 = sbr.rel (0) target = $region77
    $region76: #{mask_forward.1} parent=1 // pred_region
      _
    $region77: #{mask_forward.1} parent=1 // pred_fallthru
      _
    // Predicated region
    $region78: #{mask_forward.1} parent=1 // pred_check
      _
    $region79: #{mask_forward.1} parent=1 // pred_check_branch
      %108 = sbr.rel (0) target = $region81
    $region80: #{mask_forward.1} parent=1 // pred_region
      _
    $region81: #{mask_forward.1} parent=1 // pred_fallthru
      _
    // Predicated region
    $region82: #{mask_forward.1} parent=1 // pred_check
      _
    $region83: #{mask_forward.1} parent=1 // pred_check_branch
      %110 = sbr.rel (0) target = $region85
    $region84: #{mask_forward.1} parent=1 // pred_region
      _
    $region85: #{mask_forward.1} parent=1 // pred_fallthru
      _
    // Predicated region
    $region86: #{mask_forward.1} parent=1 // pred_check
      _
    $region87: #{mask_forward.1} parent=1 // pred_check_branch
      %112 = sbr.rel (0) target = $region89
    $region88: #{mask_forward.1} parent=1 // pred_region
      _
    $region89: #{mask_forward.1} parent=1 // pred_fallthru
      _
    // Predicated region
    $region90: #{mask_forward.1} parent=1 // pred_check
      _
    $region91: #{mask_forward.1} parent=1 // pred_check_branch
      %114 = sbr.rel (0) target = $region93
    $region92: #{mask_forward.1} parent=1 // pred_region
      _
    $region93: #{mask_forward.1} parent=1 // pred_fallthru
      _
    // Predicated region
    $region94: #{mask_forward.1} parent=1 // pred_check
      _
    $region95: #{mask_forward.1} parent=1 // pred_check_branch
      %116 = sbr.rel (0) target = $region97
    $region96: #{mask_forward.1} parent=1 // pred_region
      _
    $region97: #{mask_forward.1} parent=1 // pred_fallthru
      _
    // Predicated region
    $region98: #{mask_forward.1} parent=1 // pred_check
      _
    $region99: #{mask_forward.1} parent=1 // pred_check_branch
      %118 = sbr.rel (0) target = $region101
    $region100: #{mask_forward.1} parent=1 // pred_region
      _
    $region101: #{mask_forward.1} parent=1 // pred_fallthru
      _
    // Predicated region
    $region102: #{mask_forward.1} parent=1 // pred_check
      _
    $region103: #{mask_forward.1} parent=1 // pred_check_branch
      %120 = sbr.rel (0) target = $region105
    $region104: #{mask_forward.1} parent=1 // pred_region
      _
    $region105: #{mask_forward.1} parent=1 // pred_fallthru
      _
    // Predicated region
    $region106: #{mask_forward.1} parent=1 // pred_check
      _
    $region107: #{mask_forward.1} parent=1 // pred_check_branch
      %122 = sbr.rel (0) target = $region109
    $region108: #{mask_forward.1} parent=1 // pred_region
      _
    $region109: #{mask_forward.1} parent=1 // pred_fallthru
      _
    // Predicated region
    $region110: #{mask_forward.1} parent=1 // pred_check
      _
    $region111: #{mask_forward.1} parent=1 // pred_check_branch
      %124 = sbr.rel (0) target = $region113
    $region112: #{mask_forward.1} parent=1 // pred_region
      _
    $region113: #{mask_forward.1} parent=1 // pred_fallthru
      _
    // Predicated region
    $region114: #{mask_forward.1} parent=1 // pred_check
      _
    $region115: #{mask_forward.1} parent=1 // pred_check_branch
      %126 = sbr.rel (0) target = $region117
    $region116: #{mask_forward.1} parent=1 // pred_region
      _
    $region117: #{mask_forward.1} parent=1 // pred_fallthru
      _
    // Predicated region
    $region118: #{mask_forward.1} parent=1 // pred_check
      _
    $region119: #{mask_forward.1} parent=1 // pred_check_branch
      %128 = sbr.rel (0) target = $region121
    $region120: #{mask_forward.1} parent=1 // pred_region
      %130 = vsyncadd [#allocation3], 0
      %s131 = sshll.u32 %s59, 4
      %s132 = int_to_ptr.hbm [resolvable:$true] %s131
      %s133 = sshll.u32 [#allocation2], 4
      %s134 = int_to_ptr.vmem [resolvable:$true] %s133
      %139 = dma.hbm_to_vmem [thread:$0]  %s132, 2048, %s134, [#allocation3], 128, 128, 8
    $region121: #{mask_forward.1} parent=1 // pred_fallthru
      _
    // Predicated region
    $region122: #{mask_forward.1} parent=1 // pred_check
      _
    $region123: #{mask_forward.1} parent=1 // pred_check_branch
      %141 = sbr.rel (0) target = $region125
    $region124: #{mask_forward.1} parent=1 // pred_region
      _
    $region125: #{mask_forward.1} parent=1 // pred_fallthru
      _
    // Predicated region
    $region126: #{mask_forward.1} parent=1 // pred_check
      _
    $region127: #{mask_forward.1} parent=1 // pred_check_branch
      %143 = sbr.rel (0) target = $region129
    $region128: #{mask_forward.1} parent=1 // pred_region
      %145 = dma.done [#allocation3], 2048
    $region129: #{mask_forward.1} parent=1 // pred_fallthru
      _
    %v146 = vld [vmem:[%s1] sm:$0xff]
    %v147 = vld [vmem:[%s1 + $0x8] sm:$0xff]
    %v148 = vld [vmem:[%s1 + $0x10] sm:$0xff]
    %v149 = vld [vmem:[%s1 + $0x18] sm:$0xff]
    %v150 = vld [vmem:[%s1 + $0x20] sm:$0xff]
    %v151 = vld [vmem:[%s1 + $0x28] sm:$0xff]
    %v152 = vld [vmem:[%s1 + $0x30] sm:$0xff]
    %v153 = vld [vmem:[%s1 + $0x38] sm:$0xff]
    %v154 = vld [vmem:[%s1 + $0x40] sm:$0xff]
    %v155 = vld [vmem:[%s1 + $0x48] sm:$0xff]
    %v156 = vld [vmem:[%s1 + $0x50] sm:$0xff]
    %v157 = vld [vmem:[%s1 + $0x58] sm:$0xff]
    %v158 = vld [vmem:[%s5] sm:$0xff]
    %v159 = vld [vmem:[%s5 + $0x8] sm:$0xff]
    %v160 = vld [vmem:[%s5 + $0x10] sm:$0xff]
    %v161 = vld [vmem:[%s5 + $0x18] sm:$0xff]
    %v162 = vld [vmem:[%s5 + $0x20] sm:$0xff]
    %v163 = vld [vmem:[%s5 + $0x28] sm:$0xff]
    %v164 = vld [vmem:[%s5 + $0x30] sm:$0xff]
    %v165 = vld [vmem:[%s5 + $0x38] sm:$0xff]
    %vm166 = vcmask 523264
    %v168 = vsel %vm166, %v146, 0
    %v171 = vsel %vm166, %v147, 0
    %v174 = vsel %vm166, %v148, 0
    %v177 = vsel %vm166, %v149, 0
    %v180 = vsel %vm166, %v150, 0
    %v183 = vsel %vm166, %v151, 0
    %v186 = vsel %vm166, %v152, 0
    %v189 = vsel %vm166, %v153, 0
    %v192 = vsel %vm166, %v154, 0
    %v195 = vsel %vm166, %v155, 0
    %v198 = vsel %vm166, %v156, 0
    %v201 = vsel %vm166, %v157, 0
    %203 = vmatpush.msra.mxu0 0.0
    %204 = vmatpush.msra.mxu0 0.0
    %205 = vmatpush.msra.mxu0 0.0
    %206 = vmatpush.msra.mxu0 0.0
    %207 = vmatpush.msra.mxu0 0.0
    %208 = vmatpush.msra.mxu0 0.0
    %209 = vmatpush.msra.mxu0 0.0
    %210 = vmatpush.msra.mxu0 0.0
    %211 = vmatpush.msra.mxu0 %v165
    %212 = vmatpush.msra.mxu0 %v164
    %213 = vmatpush.msra.mxu0 %v163
    %214 = vmatpush.msra.mxu0 %v162
    %215 = vmatpush.msra.mxu0 %v161
    %216 = vmatpush.msra.mxu0 %v160
    %217 = vmatpush.msra.mxu0 %v159
    %218 = vmatpush.msra.mxu0 %v158
    %219 = vmatmul.f32.gmra.mxu0 %v168
    %v220 = vpop.f32.mrf.mxu0
    %v221 = vadd.f32 0.0, %v220
    %222 = vmatmul.f32.gmra.mxu0 %v171
    %v223 = vpop.f32.mrf.mxu0
    %v224 = vadd.f32 0.0, %v223
    %225 = vmatmul.f32.gmra.mxu0 %v174
    %v226 = vpop.f32.mrf.mxu0
    %v227 = vadd.f32 0.0, %v226
    %228 = vmatmul.f32.gmra.mxu0 %v177
    %v229 = vpop.f32.mrf.mxu0
    %v230 = vadd.f32 0.0, %v229
    %231 = vmatmul.f32.gmra.mxu0 %v180
    %v232 = vpop.f32.mrf.mxu0
    %v233 = vadd.f32 0.0, %v232
    %234 = vmatmul.f32.gmra.mxu0 %v183
    %v235 = vpop.f32.mrf.mxu0
    %v236 = vadd.f32 0.0, %v235
    %237 = vmatmul.f32.gmra.mxu0 %v186
    %v238 = vpop.f32.mrf.mxu0
    %v239 = vadd.f32 0.0, %v238
    %240 = vmatmul.f32.gmra.mxu0 %v189
    %v241 = vpop.f32.mrf.mxu0
    %v242 = vadd.f32 0.0, %v241
    %243 = vmatmul.f32.gmra.mxu0 %v192
    %v244 = vpop.f32.mrf.mxu0
    %v245 = vadd.f32 0.0, %v244
    %246 = vmatmul.f32.gmra.mxu0 %v195
    %v247 = vpop.f32.mrf.mxu0
    %v248 = vadd.f32 0.0, %v247
    %249 = vmatmul.f32.gmra.mxu0 %v198
    %v250 = vpop.f32.mrf.mxu0
    %v251 = vadd.f32 0.0, %v250
    %252 = vmatmul.f32.gmra.mxu0 %v201
    %v253 = vpop.f32.mrf.mxu0
    %v254 = vadd.f32 0.0, %v253
    %255 = vdwg.mxu0
    %v256 = vld [vmem:[%s3] sm:$0xff]
    %v257 = vld [vmem:[%s3 + $0x8] sm:$0xff]
    %v258 = vld [vmem:[%s3 + $0x10] sm:$0xff]
    %v259 = vld [vmem:[%s3 + $0x18] sm:$0xff]
    %v260 = vld [vmem:[%s3 + $0x20] sm:$0xff]
    %v261 = vld [vmem:[%s3 + $0x28] sm:$0xff]
    %v262 = vld [vmem:[%s3 + $0x30] sm:$0xff]
    %v263 = vld [vmem:[%s3 + $0x38] sm:$0xff]
    %v264 = vld [vmem:[%s3 + $0x40] sm:$0xff]
    %v265 = vld [vmem:[%s3 + $0x48] sm:$0xff]
    %v266 = vld [vmem:[%s3 + $0x50] sm:$0xff]
    %v267 = vld [vmem:[%s3 + $0x58] sm:$0xff]
    %s268 = scalar_lea.vmem %s5, 64
    %v269 = vld [vmem:[%s268] sm:$0xff]
    %v270 = vld [vmem:[%s268 + $0x8] sm:$0xff]
    %v271 = vld [vmem:[%s268 + $0x10] sm:$0xff]
    %v272 = vld [vmem:[%s268 + $0x18] sm:$0xff]
    %v273 = vld [vmem:[%s268 + $0x20] sm:$0xff]
    %v274 = vld [vmem:[%s268 + $0x28] sm:$0xff]
    %v275 = vld [vmem:[%s268 + $0x30] sm:$0xff]
    %v276 = vld [vmem:[%s268 + $0x38] sm:$0xff]
    %277 = vmatpush.msra.mxu0 0.0
    %278 = vmatpush.msra.mxu0 0.0
    %279 = vmatpush.msra.mxu0 0.0
    %280 = vmatpush.msra.mxu0 0.0
    %281 = vmatpush.msra.mxu0 0.0
    %282 = vmatpush.msra.mxu0 0.0
    %283 = vmatpush.msra.mxu0 0.0
    %284 = vmatpush.msra.mxu0 0.0
    %285 = vmatpush.msra.mxu0 %v276
    %286 = vmatpush.msra.mxu0 %v275
    %287 = vmatpush.msra.mxu0 %v274
    %288 = vmatpush.msra.mxu0 %v273
    %289 = vmatpush.msra.mxu0 %v272
    %290 = vmatpush.msra.mxu0 %v271
    %291 = vmatpush.msra.mxu0 %v270
    %292 = vmatpush.msra.mxu0 %v269
    %293 = vmatmul.f32.gmra.mxu0 %v168
    %v294 = vpop.f32.mrf.mxu0
    %v295 = vadd.f32 0.0, %v294
    %296 = vmatmul.f32.gmra.mxu0 %v171
    %v297 = vpop.f32.mrf.mxu0
    %v298 = vadd.f32 0.0, %v297
    %299 = vmatmul.f32.gmra.mxu0 %v174
    %v300 = vpop.f32.mrf.mxu0
    %v301 = vadd.f32 0.0, %v300
    %302 = vmatmul.f32.gmra.mxu0 %v177
    %v303 = vpop.f32.mrf.mxu0
    %v304 = vadd.f32 0.0, %v303
    %305 = vmatmul.f32.gmra.mxu0 %v180
    %v306 = vpop.f32.mrf.mxu0
    %v307 = vadd.f32 0.0, %v306
    %308 = vmatmul.f32.gmra.mxu0 %v183
    %v309 = vpop.f32.mrf.mxu0
    %v310 = vadd.f32 0.0, %v309
    %311 = vmatmul.f32.gmra.mxu0 %v186
    %v312 = vpop.f32.mrf.mxu0
    %v313 = vadd.f32 0.0, %v312
    %314 = vmatmul.f32.gmra.mxu0 %v189
    %v315 = vpop.f32.mrf.mxu0
    %v316 = vadd.f32 0.0, %v315
    %317 = vmatmul.f32.gmra.mxu0 %v192
    %v318 = vpop.f32.mrf.mxu0
    %v319 = vadd.f32 0.0, %v318
    %320 = vmatmul.f32.gmra.mxu0 %v195
    %v321 = vpop.f32.mrf.mxu0
    %v322 = vadd.f32 0.0, %v321
    %323 = vmatmul.f32.gmra.mxu0 %v198
    %v324 = vpop.f32.mrf.mxu0
    %v325 = vadd.f32 0.0, %v324
    %326 = vmatmul.f32.gmra.mxu0 %v201
    %v327 = vpop.f32.mrf.mxu0
    %v328 = vadd.f32 0.0, %v327
    %329 = vdwg.mxu0
    %s330 = scalar_lea.vmem %s3, 96
    %v331 = vld [vmem:[%s330] sm:$0xff]
    %v332 = vld [vmem:[%s330 + $0x8] sm:$0xff]
    %v333 = vld [vmem:[%s330 + $0x10] sm:$0xff]
    %v334 = vld [vmem:[%s330 + $0x18] sm:$0xff]
    %v335 = vld [vmem:[%s330 + $0x20] sm:$0xff]
    %v336 = vld [vmem:[%s330 + $0x28] sm:$0xff]
    %v337 = vld [vmem:[%s330 + $0x30] sm:$0xff]
    %v338 = vld [vmem:[%s330 + $0x38] sm:$0xff]
    %v339 = vld [vmem:[%s330 + $0x40] sm:$0xff]
    %v340 = vld [vmem:[%s330 + $0x48] sm:$0xff]
    %v341 = vld [vmem:[%s330 + $0x50] sm:$0xff]
    %v342 = vld [vmem:[%s330 + $0x58] sm:$0xff]
    %vm343 = vcmask 785408
    %v345 = vsel %vm343, %v331, 0
    %v348 = vsel %vm343, %v332, 0
    %v351 = vsel %vm343, %v333, 0
    %v354 = vsel %vm343, %v334, 0
    %v357 = vsel %vm343, %v335, 0
    %v360 = vsel %vm343, %v336, 0
    %v363 = vsel %vm343, %v337, 0
    %v366 = vsel %vm343, %v338, 0
    %v369 = vsel %vm343, %v339, 0
    %v372 = vsel %vm343, %v340, 0
    %v375 = vsel %vm343, %v341, 0
    %v378 = vsel %vm343, %v342, 0
    %380 = vmatpush.msra.mxu0 0.0
    %381 = vmatpush.msra.mxu0 0.0
    %382 = vmatpush.msra.mxu0 0.0
    %383 = vmatpush.msra.mxu0 0.0
    %384 = vmatpush.msra.mxu0 %v328
    %385 = vmatpush.msra.mxu0 %v325
    %386 = vmatpush.msra.mxu0 %v322
    %387 = vmatpush.msra.mxu0 %v319
    %388 = vmatpush.msra.mxu0 %v316
    %389 = vmatpush.msra.mxu0 %v313
    %390 = vmatpush.msra.mxu0 %v310
    %391 = vmatpush.msra.mxu0 %v307
    %392 = vmatpush.msra.mxu0 %v304
    %393 = vmatpush.msra.mxu0 %v301
    %394 = vmatpush.msra.mxu0 %v298
    %395 = vmatpush.msra.mxu0 %v295
    %396 = vmatmul.f32.gmra.mxu0 %v345
    %v397 = vpop.f32.mrf.mxu0
    %v398 = vadd.f32 0.0, %v397
    %399 = vmatmul.f32.gmra.mxu0 %v348
    %v400 = vpop.f32.mrf.mxu0
    %v401 = vadd.f32 0.0, %v400
    %402 = vmatmul.f32.gmra.mxu0 %v351
    %v403 = vpop.f32.mrf.mxu0
    %v404 = vadd.f32 0.0, %v403
    %405 = vmatmul.f32.gmra.mxu0 %v354
    %v406 = vpop.f32.mrf.mxu0
    %v407 = vadd.f32 0.0, %v406
    %408 = vmatmul.f32.gmra.mxu0 %v357
    %v409 = vpop.f32.mrf.mxu0
    %v410 = vadd.f32 0.0, %v409
    %411 = vmatmul.f32.gmra.mxu0 %v360
    %v412 = vpop.f32.mrf.mxu0
    %v413 = vadd.f32 0.0, %v412
    %414 = vmatmul.f32.gmra.mxu0 %v363
    %v415 = vpop.f32.mrf.mxu0
    %v416 = vadd.f32 0.0, %v415
    %417 = vmatmul.f32.gmra.mxu0 %v366
    %v418 = vpop.f32.mrf.mxu0
    %v419 = vadd.f32 0.0, %v418
    %420 = vmatmul.f32.gmra.mxu0 %v369
    %v421 = vpop.f32.mrf.mxu0
    %v422 = vadd.f32 0.0, %v421
    %423 = vmatmul.f32.gmra.mxu0 %v372
    %v424 = vpop.f32.mrf.mxu0
    %v425 = vadd.f32 0.0, %v424
    %426 = vmatmul.f32.gmra.mxu0 %v375
    %v427 = vpop.f32.mrf.mxu0
    %v428 = vadd.f32 0.0, %v427
    %429 = vmatmul.f32.gmra.mxu0 %v378
    %v430 = vpop.f32.mrf.mxu0
    %v431 = vadd.f32 0.0, %v430
    %432 = vdwg.mxu0
    %v434 = vsel %vm343, %v256, 0
    %v437 = vsel %vm343, %v257, 0
    %v440 = vsel %vm343, %v258, 0
    %v443 = vsel %vm343, %v259, 0
    %v446 = vsel %vm343, %v260, 0
    %v449 = vsel %vm343, %v261, 0
    %v452 = vsel %vm343, %v262, 0
    %v455 = vsel %vm343, %v263, 0
    %v458 = vsel %vm343, %v264, 0
    %v461 = vsel %vm343, %v265, 0
    %v464 = vsel %vm343, %v266, 0
    %v467 = vsel %vm343, %v267, 0
    %469 = vmatpush.msra.mxu0 0.0
    %470 = vmatpush.msra.mxu0 0.0
    %471 = vmatpush.msra.mxu0 0.0
    %472 = vmatpush.msra.mxu0 0.0
    %473 = vmatpush.msra.mxu0 %v254
    %474 = vmatpush.msra.mxu0 %v251
    %475 = vmatpush.msra.mxu0 %v248
    %476 = vmatpush.msra.mxu0 %v245
    %477 = vmatpush.msra.mxu0 %v242
    %478 = vmatpush.msra.mxu0 %v239
    %479 = vmatpush.msra.mxu0 %v236
    %480 = vmatpush.msra.mxu0 %v233
    %481 = vmatpush.msra.mxu0 %v230
    %482 = vmatpush.msra.mxu0 %v227
    %483 = vmatpush.msra.mxu0 %v224
    %484 = vmatpush.msra.mxu0 %v221
    %485 = vmatmul.f32.gmra.mxu0 %v434
    %v486 = vpop.f32.mrf.mxu0
    %v487 = vadd.f32 %v398, %v486
    %488 = vmatmul.f32.gmra.mxu0 %v437
    %v489 = vpop.f32.mrf.mxu0
    %v490 = vadd.f32 %v401, %v489
    %491 = vmatmul.f32.gmra.mxu0 %v440
    %v492 = vpop.f32.mrf.mxu0
    %v493 = vadd.f32 %v404, %v492
    %494 = vmatmul.f32.gmra.mxu0 %v443
    %v495 = vpop.f32.mrf.mxu0
    %v496 = vadd.f32 %v407, %v495
    %497 = vmatmul.f32.gmra.mxu0 %v446
    %v498 = vpop.f32.mrf.mxu0
    %v499 = vadd.f32 %v410, %v498
    %500 = vmatmul.f32.gmra.mxu0 %v449
    %v501 = vpop.f32.mrf.mxu0
    %v502 = vadd.f32 %v413, %v501
    %503 = vmatmul.f32.gmra.mxu0 %v452
    %v504 = vpop.f32.mrf.mxu0
    %v505 = vadd.f32 %v416, %v504
    %506 = vmatmul.f32.gmra.mxu0 %v455
    %v507 = vpop.f32.mrf.mxu0
    %v508 = vadd.f32 %v419, %v507
    %509 = vmatmul.f32.gmra.mxu0 %v458
    %v510 = vpop.f32.mrf.mxu0
    %v511 = vadd.f32 %v422, %v510
    %512 = vmatmul.f32.gmra.mxu0 %v461
    %v513 = vpop.f32.mrf.mxu0
    %v514 = vadd.f32 %v425, %v513
    %515 = vmatmul.f32.gmra.mxu0 %v464
    %v516 = vpop.f32.mrf.mxu0
    %v517 = vadd.f32 %v428, %v516
    %518 = vmatmul.f32.gmra.mxu0 %v467
    %v519 = vpop.f32.mrf.mxu0
    %v520 = vadd.f32 %v431, %v519
    %521 = vdwg.mxu0
    %s522 = scalar_lea.vmem %s5, 128
    %v523 = vld [vmem:[%s522] sm:$0xff]
    %v524 = vld [vmem:[%s522 + $0x8] sm:$0xff]
    %v525 = vld [vmem:[%s522 + $0x10] sm:$0xff]
    %v526 = vld [vmem:[%s522 + $0x18] sm:$0xff]
    %v527 = vld [vmem:[%s522 + $0x20] sm:$0xff]
    %v528 = vld [vmem:[%s522 + $0x28] sm:$0xff]
    %v529 = vld [vmem:[%s522 + $0x30] sm:$0xff]
    %v530 = vld [vmem:[%s522 + $0x38] sm:$0xff]
    %531 = vmatpush.msra.mxu0 0.0
    %532 = vmatpush.msra.mxu0 0.0
    %533 = vmatpush.msra.mxu0 0.0
    %534 = vmatpush.msra.mxu0 0.0
    %535 = vmatpush.msra.mxu0 0.0
    %536 = vmatpush.msra.mxu0 0.0
    %537 = vmatpush.msra.mxu0 0.0
    %538 = vmatpush.msra.mxu0 0.0
    %539 = vmatpush.msra.mxu0 %v530
    %540 = vmatpush.msra.mxu0 %v529
    %541 = vmatpush.msra.mxu0 %v528
    %542 = vmatpush.msra.mxu0 %v527
    %543 = vmatpush.msra.mxu0 %v526
    %544 = vmatpush.msra.mxu0 %v525
    %545 = vmatpush.msra.mxu0 %v524
    %546 = vmatpush.msra.mxu0 %v523
    %547 = vmatmul.f32.gmra.mxu0 %v168
    %v548 = vpop.f32.mrf.mxu0
    %v549 = vadd.f32 0.0, %v548
    %550 = vmatmul.f32.gmra.mxu0 %v171
    %v551 = vpop.f32.mrf.mxu0
    %v552 = vadd.f32 0.0, %v551
    %553 = vmatmul.f32.gmra.mxu0 %v174
    %v554 = vpop.f32.mrf.mxu0
    %v555 = vadd.f32 0.0, %v554
    %556 = vmatmul.f32.gmra.mxu0 %v177
    %v557 = vpop.f32.mrf.mxu0
    %v558 = vadd.f32 0.0, %v557
    %559 = vmatmul.f32.gmra.mxu0 %v180
    %v560 = vpop.f32.mrf.mxu0
    %v561 = vadd.f32 0.0, %v560
    %562 = vmatmul.f32.gmra.mxu0 %v183
    %v563 = vpop.f32.mrf.mxu0
    %v564 = vadd.f32 0.0, %v563
    %565 = vmatmul.f32.gmra.mxu0 %v186
    %v566 = vpop.f32.mrf.mxu0
    %v567 = vadd.f32 0.0, %v566
    %568 = vmatmul.f32.gmra.mxu0 %v189
    %v569 = vpop.f32.mrf.mxu0
    %v570 = vadd.f32 0.0, %v569
    %571 = vmatmul.f32.gmra.mxu0 %v192
    %v572 = vpop.f32.mrf.mxu0
    %v573 = vadd.f32 0.0, %v572
    %574 = vmatmul.f32.gmra.mxu0 %v195
    %v575 = vpop.f32.mrf.mxu0
    %v576 = vadd.f32 0.0, %v575
    %577 = vmatmul.f32.gmra.mxu0 %v198
    %v578 = vpop.f32.mrf.mxu0
    %v579 = vadd.f32 0.0, %v578
    %580 = vmatmul.f32.gmra.mxu0 %v201
    %v581 = vpop.f32.mrf.mxu0
    %v582 = vadd.f32 0.0, %v581
    %583 = vdwg.mxu0
    %s584 = scalar_lea.vmem %s3, 192
    %v585 = vld [vmem:[%s584] sm:$0xff]
    %v586 = vld [vmem:[%s584 + $0x8] sm:$0xff]
    %v587 = vld [vmem:[%s584 + $0x10] sm:$0xff]
    %v588 = vld [vmem:[%s584 + $0x18] sm:$0xff]
    %v589 = vld [vmem:[%s584 + $0x20] sm:$0xff]
    %v590 = vld [vmem:[%s584 + $0x28] sm:$0xff]
    %v591 = vld [vmem:[%s584 + $0x30] sm:$0xff]
    %v592 = vld [vmem:[%s584 + $0x38] sm:$0xff]
    %v593 = vld [vmem:[%s584 + $0x40] sm:$0xff]
    %v594 = vld [vmem:[%s584 + $0x48] sm:$0xff]
    %v595 = vld [vmem:[%s584 + $0x50] sm:$0xff]
    %v596 = vld [vmem:[%s584 + $0x58] sm:$0xff]
    %v598 = vsel %vm343, %v585, 0
    %v601 = vsel %vm343, %v586, 0
    %v604 = vsel %vm343, %v587, 0
    %v607 = vsel %vm343, %v588, 0
    %v610 = vsel %vm343, %v589, 0
    %v613 = vsel %vm343, %v590, 0
    %v616 = vsel %vm343, %v591, 0
    %v619 = vsel %vm343, %v592, 0
    %v622 = vsel %vm343, %v593, 0
    %v625 = vsel %vm343, %v594, 0
    %v628 = vsel %vm343, %v595, 0
    %v631 = vsel %vm343, %v596, 0
    %633 = vmatpush.msra.mxu0 0.0
    %634 = vmatpush.msra.mxu0 0.0
    %635 = vmatpush.msra.mxu0 0.0
    %636 = vmatpush.msra.mxu0 0.0
    %637 = vmatpush.msra.mxu0 %v582
    %638 = vmatpush.msra.mxu0 %v579
    %639 = vmatpush.msra.mxu0 %v576
    %640 = vmatpush.msra.mxu0 %v573
    %641 = vmatpush.msra.mxu0 %v570
    %642 = vmatpush.msra.mxu0 %v567
    %643 = vmatpush.msra.mxu0 %v564
    %644 = vmatpush.msra.mxu0 %v561
    %645 = vmatpush.msra.mxu0 %v558
    %646 = vmatpush.msra.mxu0 %v555
    %647 = vmatpush.msra.mxu0 %v552
    %648 = vmatpush.msra.mxu0 %v549
    %649 = vmatmul.f32.gmra.mxu0 %v598
    %v650 = vpop.f32.mrf.mxu0
    %v651 = vadd.f32 0.0, %v650
    %652 = vmatmul.f32.gmra.mxu0 %v601
    %v653 = vpop.f32.mrf.mxu0
    %v654 = vadd.f32 0.0, %v653
    %655 = vmatmul.f32.gmra.mxu0 %v604
    %v656 = vpop.f32.mrf.mxu0
    %v657 = vadd.f32 0.0, %v656
    %658 = vmatmul.f32.gmra.mxu0 %v607
    %v659 = vpop.f32.mrf.mxu0
    %v660 = vadd.f32 0.0, %v659
    %661 = vmatmul.f32.gmra.mxu0 %v610
    %v662 = vpop.f32.mrf.mxu0
    %v663 = vadd.f32 0.0, %v662
    %664 = vmatmul.f32.gmra.mxu0 %v613
    %v665 = vpop.f32.mrf.mxu0
    %v666 = vadd.f32 0.0, %v665
    %667 = vmatmul.f32.gmra.mxu0 %v616
    %v668 = vpop.f32.mrf.mxu0
    %v669 = vadd.f32 0.0, %v668
    %670 = vmatmul.f32.gmra.mxu0 %v619
    %v671 = vpop.f32.mrf.mxu0
    %v672 = vadd.f32 0.0, %v671
    %673 = vmatmul.f32.gmra.mxu0 %v622
    %v674 = vpop.f32.mrf.mxu0
    %v675 = vadd.f32 0.0, %v674
    %676 = vmatmul.f32.gmra.mxu0 %v625
    %v677 = vpop.f32.mrf.mxu0
    %v678 = vadd.f32 0.0, %v677
    %679 = vmatmul.f32.gmra.mxu0 %v628
    %v680 = vpop.f32.mrf.mxu0
    %v681 = vadd.f32 0.0, %v680
    %682 = vmatmul.f32.gmra.mxu0 %v631
    %v683 = vpop.f32.mrf.mxu0
    %v684 = vadd.f32 0.0, %v683
    %685 = vdwg.mxu0
    %v686 = vadd.f32 %v487, %v651
    %v687 = vadd.f32 %v490, %v654
    %v688 = vadd.f32 %v493, %v657
    %v689 = vadd.f32 %v496, %v660
    %v690 = vadd.f32 %v499, %v663
    %v691 = vadd.f32 %v502, %v666
    %v692 = vadd.f32 %v505, %v669
    %v693 = vadd.f32 %v508, %v672
    %v694 = vadd.f32 %v511, %v675
    %v695 = vadd.f32 %v514, %v678
    %v696 = vadd.f32 %v517, %v681
    %v697 = vadd.f32 %v520, %v684
    %v698 = vld [vmem:[%s7] sm:$0xff]
    %v699 = vld [vmem:[%s7 + $0x8] sm:$0xff]
    %v700 = vld [vmem:[%s7 + $0x10] sm:$0xff]
    %v701 = vld [vmem:[%s7 + $0x18] sm:$0xff]
    %v702 = vld [vmem:[%s7 + $0x20] sm:$0xff]
    %v703 = vld [vmem:[%s7 + $0x28] sm:$0xff]
    %v704 = vld [vmem:[%s7 + $0x30] sm:$0xff]
    %v705 = vld [vmem:[%s7 + $0x38] sm:$0xff]
    %v706 = vld [vmem:[%s7 + $0x40] sm:$0xff]
    %v707 = vld [vmem:[%s7 + $0x48] sm:$0xff]
    %v708 = vld [vmem:[%s7 + $0x50] sm:$0xff]
    %v709 = vld [vmem:[%s7 + $0x58] sm:$0xff]
    %711 = vset.pattern.permute.xlu0 0
    %712 = vperm.xlu0 %711, %v698
    %v713 = vpop.permute.xlu0 %712
    %716 = vset.pattern.permute.xlu0 0
    %717 = vperm.xlu0 %716, %v699
    %v718 = vpop.permute.xlu0 %717
    %721 = vset.pattern.permute.xlu0 0
    %722 = vperm.xlu0 %721, %v700
    %v723 = vpop.permute.xlu0 %722
    %726 = vset.pattern.permute.xlu0 0
    %727 = vperm.xlu0 %726, %v701
    %v728 = vpop.permute.xlu0 %727
    %731 = vset.pattern.permute.xlu0 0
    %732 = vperm.xlu0 %731, %v702
    %v733 = vpop.permute.xlu0 %732
    %736 = vset.pattern.permute.xlu0 0
    %737 = vperm.xlu0 %736, %v703
    %v738 = vpop.permute.xlu0 %737
    %741 = vset.pattern.permute.xlu0 0
    %742 = vperm.xlu0 %741, %v704
    %v743 = vpop.permute.xlu0 %742
    %746 = vset.pattern.permute.xlu0 0
    %747 = vperm.xlu0 %746, %v705
    %v748 = vpop.permute.xlu0 %747
    %751 = vset.pattern.permute.xlu0 0
    %752 = vperm.xlu0 %751, %v706
    %v753 = vpop.permute.xlu0 %752
    %756 = vset.pattern.permute.xlu0 0
    %757 = vperm.xlu0 %756, %v707
    %v758 = vpop.permute.xlu0 %757
    %761 = vset.pattern.permute.xlu0 0
    %762 = vperm.xlu0 %761, %v708
    %v763 = vpop.permute.xlu0 %762
    %766 = vset.pattern.permute.xlu0 0
    %767 = vperm.xlu0 %766, %v709
    %v768 = vpop.permute.xlu0 %767
    %v770 = vadd.f32 %v686, %v713
    %v771 = vadd.f32 %v687, %v718
    %v772 = vadd.f32 %v688, %v723
    %v773 = vadd.f32 %v689, %v728
    %v774 = vadd.f32 %v690, %v733
    %v775 = vadd.f32 %v691, %v738
    %v776 = vadd.f32 %v692, %v743
    %v777 = vadd.f32 %v693, %v748
    %v778 = vadd.f32 %v694, %v753
    %v779 = vadd.f32 %v695, %v758
    %v780 = vadd.f32 %v696, %v763
    %v781 = vadd.f32 %v697, %v768
    %v782 = vmax.f32 %v770, 0.0
    %v783 = vmax.f32 %v771, 0.0
    %v784 = vmax.f32 %v772, 0.0
    %v785 = vmax.f32 %v773, 0.0
    %v786 = vmax.f32 %v774, 0.0
    %v787 = vmax.f32 %v775, 0.0
    %v788 = vmax.f32 %v776, 0.0
    %v789 = vmax.f32 %v777, 0.0
    %v790 = vmax.f32 %v778, 0.0
    %v791 = vmax.f32 %v779, 0.0
    %v792 = vmax.f32 %v780, 0.0
    %v793 = vmax.f32 %v781, 0.0
    %v794 = vld [vmem:[%s11] sm:$0xff]
    %v795 = vld [vmem:[%s11 + $0x8] sm:$0xff]
    %v796 = vld [vmem:[%s11 + $0x10] sm:$0xff]
    %v797 = vld [vmem:[%s11 + $0x18] sm:$0xff]
    %vm798 = vcmask 261120
    %v800 = vsel %vm798, %v782, 0
    %v803 = vsel %vm798, %v783, 0
    %v806 = vsel %vm798, %v784, 0
    %v809 = vsel %vm798, %v785, 0
    %v812 = vsel %vm798, %v786, 0
    %v815 = vsel %vm798, %v787, 0
    %v818 = vsel %vm798, %v788, 0
    %v821 = vsel %vm798, %v789, 0
    %v824 = vsel %vm798, %v790, 0
    %v827 = vsel %vm798, %v791, 0
    %v830 = vsel %vm798, %v792, 0
    %v833 = vsel %vm798, %v793, 0
    %835 = vmatpush.msra.mxu0 0.0
    %836 = vmatpush.msra.mxu0 0.0
    %837 = vmatpush.msra.mxu0 0.0
    %838 = vmatpush.msra.mxu0 0.0
    %839 = vmatpush.msra.mxu0 0.0
    %840 = vmatpush.msra.mxu0 0.0
    %841 = vmatpush.msra.mxu0 0.0
    %842 = vmatpush.msra.mxu0 0.0
    %843 = vmatpush.msra.mxu0 0.0
    %844 = vmatpush.msra.mxu0 0.0
    %845 = vmatpush.msra.mxu0 0.0
    %846 = vmatpush.msra.mxu0 0.0
    %847 = vmatpush.msra.mxu0 %v797
    %848 = vmatpush.msra.mxu0 %v796
    %849 = vmatpush.msra.mxu0 %v795
    %850 = vmatpush.msra.mxu0 %v794
    %851 = vmatmul.f32.gmra.mxu0 %v800
    %v852 = vpop.f32.mrf.mxu0
    %v853 = vadd.f32 0.0, %v852
    %854 = vmatmul.f32.gmra.mxu0 %v803
    %v855 = vpop.f32.mrf.mxu0
    %v856 = vadd.f32 0.0, %v855
    %857 = vmatmul.f32.gmra.mxu0 %v806
    %v858 = vpop.f32.mrf.mxu0
    %v859 = vadd.f32 0.0, %v858
    %860 = vmatmul.f32.gmra.mxu0 %v809
    %v861 = vpop.f32.mrf.mxu0
    %v862 = vadd.f32 0.0, %v861
    %863 = vmatmul.f32.gmra.mxu0 %v812
    %v864 = vpop.f32.mrf.mxu0
    %v865 = vadd.f32 0.0, %v864
    %866 = vmatmul.f32.gmra.mxu0 %v815
    %v867 = vpop.f32.mrf.mxu0
    %v868 = vadd.f32 0.0, %v867
    %869 = vmatmul.f32.gmra.mxu0 %v818
    %v870 = vpop.f32.mrf.mxu0
    %v871 = vadd.f32 0.0, %v870
    %872 = vmatmul.f32.gmra.mxu0 %v821
    %v873 = vpop.f32.mrf.mxu0
    %v874 = vadd.f32 0.0, %v873
    %875 = vmatmul.f32.gmra.mxu0 %v824
    %v876 = vpop.f32.mrf.mxu0
    %v877 = vadd.f32 0.0, %v876
    %878 = vmatmul.f32.gmra.mxu0 %v827
    %v879 = vpop.f32.mrf.mxu0
    %v880 = vadd.f32 0.0, %v879
    %881 = vmatmul.f32.gmra.mxu0 %v830
    %v882 = vpop.f32.mrf.mxu0
    %v883 = vadd.f32 0.0, %v882
    %884 = vmatmul.f32.gmra.mxu0 %v833
    %v885 = vpop.f32.mrf.mxu0
    %v886 = vadd.f32 0.0, %v885
    %887 = vdwg.mxu0
    %v888 = vld [vmem:[%s9] sm:$0xff]
    %v889 = vld [vmem:[%s9 + $0x8] sm:$0xff]
    %v890 = vld [vmem:[%s9 + $0x10] sm:$0xff]
    %v891 = vld [vmem:[%s9 + $0x18] sm:$0xff]
    %v892 = vld [vmem:[%s9 + $0x20] sm:$0xff]
    %v893 = vld [vmem:[%s9 + $0x28] sm:$0xff]
    %s894 = scalar_lea.vmem %s11, 32
    %v895 = vld [vmem:[%s894] sm:$0xff]
    %v896 = vld [vmem:[%s894 + $0x8] sm:$0xff]
    %v897 = vld [vmem:[%s894 + $0x10] sm:$0xff]
    %v898 = vld [vmem:[%s894 + $0x18] sm:$0xff]
    %899 = vmatpush.msra.mxu0 0.0
    %900 = vmatpush.msra.mxu0 0.0
    %901 = vmatpush.msra.mxu0 0.0
    %902 = vmatpush.msra.mxu0 0.0
    %903 = vmatpush.msra.mxu0 0.0
    %904 = vmatpush.msra.mxu0 0.0
    %905 = vmatpush.msra.mxu0 0.0
    %906 = vmatpush.msra.mxu0 0.0
    %907 = vmatpush.msra.mxu0 0.0
    %908 = vmatpush.msra.mxu0 0.0
    %909 = vmatpush.msra.mxu0 0.0
    %910 = vmatpush.msra.mxu0 0.0
    %911 = vmatpush.msra.mxu0 %v898
    %912 = vmatpush.msra.mxu0 %v897
    %913 = vmatpush.msra.mxu0 %v896
    %914 = vmatpush.msra.mxu0 %v895
    %915 = vmatmul.f32.gmra.mxu0 %v800
    %v916 = vpop.f32.mrf.mxu0
    %v917 = vadd.f32 0.0, %v916
    %918 = vmatmul.f32.gmra.mxu0 %v803
    %v919 = vpop.f32.mrf.mxu0
    %v920 = vadd.f32 0.0, %v919
    %921 = vmatmul.f32.gmra.mxu0 %v806
    %v922 = vpop.f32.mrf.mxu0
    %v923 = vadd.f32 0.0, %v922
    %924 = vmatmul.f32.gmra.mxu0 %v809
    %v925 = vpop.f32.mrf.mxu0
    %v926 = vadd.f32 0.0, %v925
    %927 = vmatmul.f32.gmra.mxu0 %v812
    %v928 = vpop.f32.mrf.mxu0
    %v929 = vadd.f32 0.0, %v928
    %930 = vmatmul.f32.gmra.mxu0 %v815
    %v931 = vpop.f32.mrf.mxu0
    %v932 = vadd.f32 0.0, %v931
    %933 = vmatmul.f32.gmra.mxu0 %v818
    %v934 = vpop.f32.mrf.mxu0
    %v935 = vadd.f32 0.0, %v934
    %936 = vmatmul.f32.gmra.mxu0 %v821
    %v937 = vpop.f32.mrf.mxu0
    %v938 = vadd.f32 0.0, %v937
    %939 = vmatmul.f32.gmra.mxu0 %v824
    %v940 = vpop.f32.mrf.mxu0
    %v941 = vadd.f32 0.0, %v940
    %942 = vmatmul.f32.gmra.mxu0 %v827
    %v943 = vpop.f32.mrf.mxu0
    %v944 = vadd.f32 0.0, %v943
    %945 = vmatmul.f32.gmra.mxu0 %v830
    %v946 = vpop.f32.mrf.mxu0
    %v947 = vadd.f32 0.0, %v946
    %948 = vmatmul.f32.gmra.mxu0 %v833
    %v949 = vpop.f32.mrf.mxu0
    %v950 = vadd.f32 0.0, %v949
    %951 = vdwg.mxu0
    %s952 = scalar_lea.vmem %s9, 48
    %v953 = vld [vmem:[%s952] sm:$0xff]
    %v954 = vld [vmem:[%s952 + $0x8] sm:$0xff]
    %v955 = vld [vmem:[%s952 + $0x10] sm:$0xff]
    %v956 = vld [vmem:[%s952 + $0x18] sm:$0xff]
    %v957 = vld [vmem:[%s952 + $0x20] sm:$0xff]
    %v958 = vld [vmem:[%s952 + $0x28] sm:$0xff]
    %v960 = vsel %vm343, %v953, 0
    %v963 = vsel %vm343, %v954, 0
    %v966 = vsel %vm343, %v955, 0
    %v969 = vsel %vm343, %v956, 0
    %v972 = vsel %vm343, %v957, 0
    %v975 = vsel %vm343, %v958, 0
    %977 = vmatpush.msra.mxu0 0.0
    %978 = vmatpush.msra.mxu0 0.0
    %979 = vmatpush.msra.mxu0 0.0
    %980 = vmatpush.msra.mxu0 0.0
    %981 = vmatpush.msra.mxu0 %v950
    %982 = vmatpush.msra.mxu0 %v947
    %983 = vmatpush.msra.mxu0 %v944
    %984 = vmatpush.msra.mxu0 %v941
    %985 = vmatpush.msra.mxu0 %v938
    %986 = vmatpush.msra.mxu0 %v935
    %987 = vmatpush.msra.mxu0 %v932
    %988 = vmatpush.msra.mxu0 %v929
    %989 = vmatpush.msra.mxu0 %v926
    %990 = vmatpush.msra.mxu0 %v923
    %991 = vmatpush.msra.mxu0 %v920
    %992 = vmatpush.msra.mxu0 %v917
    %993 = vmatmul.f32.gmra.mxu0 %v960
    %v994 = vpop.f32.mrf.mxu0
    %v995 = vadd.f32 0.0, %v994
    %996 = vmatmul.f32.gmra.mxu0 %v963
    %v997 = vpop.f32.mrf.mxu0
    %v998 = vadd.f32 0.0, %v997
    %999 = vmatmul.f32.gmra.mxu0 %v966
    %v1000 = vpop.f32.mrf.mxu0
    %v1001 = vadd.f32 0.0, %v1000
    %1002 = vmatmul.f32.gmra.mxu0 %v969
    %v1003 = vpop.f32.mrf.mxu0
    %v1004 = vadd.f32 0.0, %v1003
    %1005 = vmatmul.f32.gmra.mxu0 %v972
    %v1006 = vpop.f32.mrf.mxu0
    %v1007 = vadd.f32 0.0, %v1006
    %1008 = vmatmul.f32.gmra.mxu0 %v975
    %v1009 = vpop.f32.mrf.mxu0
    %v1010 = vadd.f32 0.0, %v1009
    %1011 = vdwg.mxu0
    %v1013 = vsel %vm343, %v888, 0
    %v1016 = vsel %vm343, %v889, 0
    %v1019 = vsel %vm343, %v890, 0
    %v1022 = vsel %vm343, %v891, 0
    %v1025 = vsel %vm343, %v892, 0
    %v1028 = vsel %vm343, %v893, 0
    %1030 = vmatpush.msra.mxu0 0.0
    %1031 = vmatpush.msra.mxu0 0.0
    %1032 = vmatpush.msra.mxu0 0.0
    %1033 = vmatpush.msra.mxu0 0.0
    %1034 = vmatpush.msra.mxu0 %v886
    %1035 = vmatpush.msra.mxu0 %v883
    %1036 = vmatpush.msra.mxu0 %v880
    %1037 = vmatpush.msra.mxu0 %v877
    %1038 = vmatpush.msra.mxu0 %v874
    %1039 = vmatpush.msra.mxu0 %v871
    %1040 = vmatpush.msra.mxu0 %v868
    %1041 = vmatpush.msra.mxu0 %v865
    %1042 = vmatpush.msra.mxu0 %v862
    %1043 = vmatpush.msra.mxu0 %v859
    %1044 = vmatpush.msra.mxu0 %v856
    %1045 = vmatpush.msra.mxu0 %v853
    %1046 = vmatmul.f32.gmra.mxu0 %v1013
    %v1047 = vpop.f32.mrf.mxu0
    %v1048 = vadd.f32 %v995, %v1047
    %1049 = vmatmul.f32.gmra.mxu0 %v1016
    %v1050 = vpop.f32.mrf.mxu0
    %v1051 = vadd.f32 %v998, %v1050
    %1052 = vmatmul.f32.gmra.mxu0 %v1019
    %v1053 = vpop.f32.mrf.mxu0
    %v1054 = vadd.f32 %v1001, %v1053
    %1055 = vmatmul.f32.gmra.mxu0 %v1022
    %v1056 = vpop.f32.mrf.mxu0
    %v1057 = vadd.f32 %v1004, %v1056
    %1058 = vmatmul.f32.gmra.mxu0 %v1025
    %v1059 = vpop.f32.mrf.mxu0
    %v1060 = vadd.f32 %v1007, %v1059
    %1061 = vmatmul.f32.gmra.mxu0 %v1028
    %v1062 = vpop.f32.mrf.mxu0
    %v1063 = vadd.f32 %v1010, %v1062
    %1064 = vdwg.mxu0
    %s1065 = scalar_lea.vmem %s11, 64
    %v1066 = vld [vmem:[%s1065] sm:$0xff]
    %v1067 = vld [vmem:[%s1065 + $0x8] sm:$0xff]
    %v1068 = vld [vmem:[%s1065 + $0x10] sm:$0xff]
    %v1069 = vld [vmem:[%s1065 + $0x18] sm:$0xff]
    %1070 = vmatpush.msra.mxu0 0.0
    %1071 = vmatpush.msra.mxu0 0.0
    %1072 = vmatpush.msra.mxu0 0.0
    %1073 = vmatpush.msra.mxu0 0.0
    %1074 = vmatpush.msra.mxu0 0.0
    %1075 = vmatpush.msra.mxu0 0.0
    %1076 = vmatpush.msra.mxu0 0.0
    %1077 = vmatpush.msra.mxu0 0.0
    %1078 = vmatpush.msra.mxu0 0.0
    %1079 = vmatpush.msra.mxu0 0.0
    %1080 = vmatpush.msra.mxu0 0.0
    %1081 = vmatpush.msra.mxu0 0.0
    %1082 = vmatpush.msra.mxu0 %v1069
    %1083 = vmatpush.msra.mxu0 %v1068
    %1084 = vmatpush.msra.mxu0 %v1067
    %1085 = vmatpush.msra.mxu0 %v1066
    %1086 = vmatmul.f32.gmra.mxu0 %v800
    %v1087 = vpop.f32.mrf.mxu0
    %v1088 = vadd.f32 0.0, %v1087
    %1089 = vmatmul.f32.gmra.mxu0 %v803
    %v1090 = vpop.f32.mrf.mxu0
    %v1091 = vadd.f32 0.0, %v1090
    %1092 = vmatmul.f32.gmra.mxu0 %v806
    %v1093 = vpop.f32.mrf.mxu0
    %v1094 = vadd.f32 0.0, %v1093
    %1095 = vmatmul.f32.gmra.mxu0 %v809
    %v1096 = vpop.f32.mrf.mxu0
    %v1097 = vadd.f32 0.0, %v1096
    %1098 = vmatmul.f32.gmra.mxu0 %v812
    %v1099 = vpop.f32.mrf.mxu0
    %v1100 = vadd.f32 0.0, %v1099
    %1101 = vmatmul.f32.gmra.mxu0 %v815
    %v1102 = vpop.f32.mrf.mxu0
    %v1103 = vadd.f32 0.0, %v1102
    %1104 = vmatmul.f32.gmra.mxu0 %v818
    %v1105 = vpop.f32.mrf.mxu0
    %v1106 = vadd.f32 0.0, %v1105
    %1107 = vmatmul.f32.gmra.mxu0 %v821
    %v1108 = vpop.f32.mrf.mxu0
    %v1109 = vadd.f32 0.0, %v1108
    %1110 = vmatmul.f32.gmra.mxu0 %v824
    %v1111 = vpop.f32.mrf.mxu0
    %v1112 = vadd.f32 0.0, %v1111
    %1113 = vmatmul.f32.gmra.mxu0 %v827
    %v1114 = vpop.f32.mrf.mxu0
    %v1115 = vadd.f32 0.0, %v1114
    %1116 = vmatmul.f32.gmra.mxu0 %v830
    %v1117 = vpop.f32.mrf.mxu0
    %v1118 = vadd.f32 0.0, %v1117
    %1119 = vmatmul.f32.gmra.mxu0 %v833
    %v1120 = vpop.f32.mrf.mxu0
    %v1121 = vadd.f32 0.0, %v1120
    %1122 = vdwg.mxu0
    %s1123 = scalar_lea.vmem %s9, 96
    %v1124 = vld [vmem:[%s1123] sm:$0xff]
    %v1125 = vld [vmem:[%s1123 + $0x8] sm:$0xff]
    %v1126 = vld [vmem:[%s1123 + $0x10] sm:$0xff]
    %v1127 = vld [vmem:[%s1123 + $0x18] sm:$0xff]
    %v1128 = vld [vmem:[%s1123 + $0x20] sm:$0xff]
    %v1129 = vld [vmem:[%s1123 + $0x28] sm:$0xff]
    %v1131 = vsel %vm343, %v1124, 0
    %v1134 = vsel %vm343, %v1125, 0
    %v1137 = vsel %vm343, %v1126, 0
    %v1140 = vsel %vm343, %v1127, 0
    %v1143 = vsel %vm343, %v1128, 0
    %v1146 = vsel %vm343, %v1129, 0
    %1148 = vmatpush.msra.mxu0 0.0
    %1149 = vmatpush.msra.mxu0 0.0
    %1150 = vmatpush.msra.mxu0 0.0
    %1151 = vmatpush.msra.mxu0 0.0
    %1152 = vmatpush.msra.mxu0 %v1121
    %1153 = vmatpush.msra.mxu0 %v1118
    %1154 = vmatpush.msra.mxu0 %v1115
    %1155 = vmatpush.msra.mxu0 %v1112
    %1156 = vmatpush.msra.mxu0 %v1109
    %1157 = vmatpush.msra.mxu0 %v1106
    %1158 = vmatpush.msra.mxu0 %v1103
    %1159 = vmatpush.msra.mxu0 %v1100
    %1160 = vmatpush.msra.mxu0 %v1097
    %1161 = vmatpush.msra.mxu0 %v1094
    %1162 = vmatpush.msra.mxu0 %v1091
    %1163 = vmatpush.msra.mxu0 %v1088
    %1164 = vmatmul.f32.gmra.mxu0 %v1131
    %v1165 = vpop.f32.mrf.mxu0
    %v1166 = vadd.f32 0.0, %v1165
    %1167 = vmatmul.f32.gmra.mxu0 %v1134
    %v1168 = vpop.f32.mrf.mxu0
    %v1169 = vadd.f32 0.0, %v1168
    %1170 = vmatmul.f32.gmra.mxu0 %v1137
    %v1171 = vpop.f32.mrf.mxu0
    %v1172 = vadd.f32 0.0, %v1171
    %1173 = vmatmul.f32.gmra.mxu0 %v1140
    %v1174 = vpop.f32.mrf.mxu0
    %v1175 = vadd.f32 0.0, %v1174
    %1176 = vmatmul.f32.gmra.mxu0 %v1143
    %v1177 = vpop.f32.mrf.mxu0
    %v1178 = vadd.f32 0.0, %v1177
    %1179 = vmatmul.f32.gmra.mxu0 %v1146
    %v1180 = vpop.f32.mrf.mxu0
    %v1181 = vadd.f32 0.0, %v1180
    %1182 = vdwg.mxu0
    %v1183 = vadd.f32 %v1048, %v1166
    %v1184 = vadd.f32 %v1051, %v1169
    %v1185 = vadd.f32 %v1054, %v1172
    %v1186 = vadd.f32 %v1057, %v1175
    %v1187 = vadd.f32 %v1060, %v1178
    %v1188 = vadd.f32 %v1063, %v1181
    %v1189 = vld [vmem:[%s13] sm:$0xff]
    %v1190 = vld [vmem:[%s13 + $0x8] sm:$0xff]
    %v1191 = vld [vmem:[%s13 + $0x10] sm:$0xff]
    %v1192 = vld [vmem:[%s13 + $0x18] sm:$0xff]
    %v1193 = vld [vmem:[%s13 + $0x20] sm:$0xff]
    %v1194 = vld [vmem:[%s13 + $0x28] sm:$0xff]
    %1196 = vset.pattern.permute.xlu0 0
    %1197 = vperm.xlu0 %1196, %v1189
    %v1198 = vpop.permute.xlu0 %1197
    %1201 = vset.pattern.permute.xlu0 0
    %1202 = vperm.xlu0 %1201, %v1190
    %v1203 = vpop.permute.xlu0 %1202
    %1206 = vset.pattern.permute.xlu0 0
    %1207 = vperm.xlu0 %1206, %v1191
    %v1208 = vpop.permute.xlu0 %1207
    %1211 = vset.pattern.permute.xlu0 0
    %1212 = vperm.xlu0 %1211, %v1192
    %v1213 = vpop.permute.xlu0 %1212
    %1216 = vset.pattern.permute.xlu0 0
    %1217 = vperm.xlu0 %1216, %v1193
    %v1218 = vpop.permute.xlu0 %1217
    %1221 = vset.pattern.permute.xlu0 0
    %1222 = vperm.xlu0 %1221, %v1194
    %v1223 = vpop.permute.xlu0 %1222
    %v1225 = vadd.f32 %v1183, %v1198
    %v1226 = vadd.f32 %v1184, %v1203
    %v1227 = vadd.f32 %v1185, %v1208
    %v1228 = vadd.f32 %v1186, %v1213
    %v1229 = vadd.f32 %v1187, %v1218
    %v1230 = vadd.f32 %v1188, %v1223
    %v1231 = vmax.f32 %v1225, 0.0
    %v1232 = vmax.f32 %v1226, 0.0
    %v1233 = vmax.f32 %v1227, 0.0
    %v1234 = vmax.f32 %v1228, 0.0
    %v1235 = vmax.f32 %v1229, 0.0
    %v1236 = vmax.f32 %v1230, 0.0
    %v1237 = vld [vmem:[%s17] sm:$0xff]
    %v1238 = vld [vmem:[%s17 + $0x8] sm:$0xff]
    %vm1239 = vcmask 130048
    %v1241 = vsel %vm1239, %v1231, 0
    %v1244 = vsel %vm1239, %v1232, 0
    %v1247 = vsel %vm1239, %v1233, 0
    %v1250 = vsel %vm1239, %v1234, 0
    %v1253 = vsel %vm1239, %v1235, 0
    %v1256 = vsel %vm1239, %v1236, 0
    %1258 = vmatpush.msra.mxu0 0.0
    %1259 = vmatpush.msra.mxu0 0.0
    %1260 = vmatpush.msra.mxu0 0.0
    %1261 = vmatpush.msra.mxu0 0.0
    %1262 = vmatpush.msra.mxu0 0.0
    %1263 = vmatpush.msra.mxu0 0.0
    %1264 = vmatpush.msra.mxu0 0.0
    %1265 = vmatpush.msra.mxu0 0.0
    %1266 = vmatpush.msra.mxu0 0.0
    %1267 = vmatpush.msra.mxu0 0.0
    %1268 = vmatpush.msra.mxu0 0.0
    %1269 = vmatpush.msra.mxu0 0.0
    %1270 = vmatpush.msra.mxu0 0.0
    %1271 = vmatpush.msra.mxu0 0.0
    %1272 = vmatpush.msra.mxu0 %v1238
    %1273 = vmatpush.msra.mxu0 %v1237
    %1274 = vmatmul.f32.gmra.mxu0 %v1241
    %v1275 = vpop.f32.mrf.mxu0
    %v1276 = vadd.f32 0.0, %v1275
    %1277 = vmatmul.f32.gmra.mxu0 %v1244
    %v1278 = vpop.f32.mrf.mxu0
    %v1279 = vadd.f32 0.0, %v1278
    %1280 = vmatmul.f32.gmra.mxu0 %v1247
    %v1281 = vpop.f32.mrf.mxu0
    %v1282 = vadd.f32 0.0, %v1281
    %1283 = vmatmul.f32.gmra.mxu0 %v1250
    %v1284 = vpop.f32.mrf.mxu0
    %v1285 = vadd.f32 0.0, %v1284
    %1286 = vmatmul.f32.gmra.mxu0 %v1253
    %v1287 = vpop.f32.mrf.mxu0
    %v1288 = vadd.f32 0.0, %v1287
    %1289 = vmatmul.f32.gmra.mxu0 %v1256
    %v1290 = vpop.f32.mrf.mxu0
    %v1291 = vadd.f32 0.0, %v1290
    %1292 = vdwg.mxu0
    %v1293 = vld [vmem:[%s15] sm:$0xff]
    %v1294 = vld [vmem:[%s15 + $0x8] sm:$0xff]
    %v1295 = vld [vmem:[%s15 + $0x10] sm:$0xff]
    %v1296 = vld [vmem:[%s15 + $0x18] sm:$0xff]
    %v1297 = vld [vmem:[%s15 + $0x20] sm:$0xff]
    %v1298 = vld [vmem:[%s15 + $0x28] sm:$0xff]
    %s1299 = scalar_lea.vmem %s17, 16
    %v1300 = vld [vmem:[%s1299] sm:$0xff]
    %v1301 = vld [vmem:[%s1299 + $0x8] sm:$0xff]
    %1302 = vmatpush.msra.mxu0 0.0
    %1303 = vmatpush.msra.mxu0 0.0
    %1304 = vmatpush.msra.mxu0 0.0
    %1305 = vmatpush.msra.mxu0 0.0
    %1306 = vmatpush.msra.mxu0 0.0
    %1307 = vmatpush.msra.mxu0 0.0
    %1308 = vmatpush.msra.mxu0 0.0
    %1309 = vmatpush.msra.mxu0 0.0
    %1310 = vmatpush.msra.mxu0 0.0
    %1311 = vmatpush.msra.mxu0 0.0
    %1312 = vmatpush.msra.mxu0 0.0
    %1313 = vmatpush.msra.mxu0 0.0
    %1314 = vmatpush.msra.mxu0 0.0
    %1315 = vmatpush.msra.mxu0 0.0
    %1316 = vmatpush.msra.mxu0 %v1301
    %1317 = vmatpush.msra.mxu0 %v1300
    %1318 = vmatmul.f32.gmra.mxu0 %v1241
    %v1319 = vpop.f32.mrf.mxu0
    %v1320 = vadd.f32 0.0, %v1319
    %1321 = vmatmul.f32.gmra.mxu0 %v1244
    %v1322 = vpop.f32.mrf.mxu0
    %v1323 = vadd.f32 0.0, %v1322
    %1324 = vmatmul.f32.gmra.mxu0 %v1247
    %v1325 = vpop.f32.mrf.mxu0
    %v1326 = vadd.f32 0.0, %v1325
    %1327 = vmatmul.f32.gmra.mxu0 %v1250
    %v1328 = vpop.f32.mrf.mxu0
    %v1329 = vadd.f32 0.0, %v1328
    %1330 = vmatmul.f32.gmra.mxu0 %v1253
    %v1331 = vpop.f32.mrf.mxu0
    %v1332 = vadd.f32 0.0, %v1331
    %1333 = vmatmul.f32.gmra.mxu0 %v1256
    %v1334 = vpop.f32.mrf.mxu0
    %v1335 = vadd.f32 0.0, %v1334
    %1336 = vdwg.mxu0
    %s1337 = scalar_lea.vmem %s15, 48
    %v1338 = vld [vmem:[%s1337] sm:$0xff]
    %v1339 = vld [vmem:[%s1337 + $0x8] sm:$0xff]
    %v1340 = vld [vmem:[%s1337 + $0x10] sm:$0xff]
    %v1341 = vld [vmem:[%s1337 + $0x18] sm:$0xff]
    %v1342 = vld [vmem:[%s1337 + $0x20] sm:$0xff]
    %v1343 = vld [vmem:[%s1337 + $0x28] sm:$0xff]
    %vm1344 = vcmask 392192
    %v1346 = vsel %vm1344, %v1338, 0
    %v1349 = vsel %vm1344, %v1339, 0
    %v1352 = vsel %vm1344, %v1340, 0
    %v1355 = vsel %vm1344, %v1341, 0
    %v1358 = vsel %vm1344, %v1342, 0
    %v1361 = vsel %vm1344, %v1343, 0
    %1363 = vmatpush.msra.mxu0 0.0
    %1364 = vmatpush.msra.mxu0 0.0
    %1365 = vmatpush.msra.mxu0 0.0
    %1366 = vmatpush.msra.mxu0 0.0
    %1367 = vmatpush.msra.mxu0 0.0
    %1368 = vmatpush.msra.mxu0 0.0
    %1369 = vmatpush.msra.mxu0 0.0
    %1370 = vmatpush.msra.mxu0 0.0
    %1371 = vmatpush.msra.mxu0 0.0
    %1372 = vmatpush.msra.mxu0 0.0
    %1373 = vmatpush.msra.mxu0 %v1335
    %1374 = vmatpush.msra.mxu0 %v1332
    %1375 = vmatpush.msra.mxu0 %v1329
    %1376 = vmatpush.msra.mxu0 %v1326
    %1377 = vmatpush.msra.mxu0 %v1323
    %1378 = vmatpush.msra.mxu0 %v1320
    %1379 = vmatmul.f32.gmra.mxu0 %v1346
    %v1380 = vpop.f32.mrf.mxu0
    %v1381 = vadd.f32 0.0, %v1380
    %1382 = vmatmul.f32.gmra.mxu0 %v1349
    %v1383 = vpop.f32.mrf.mxu0
    %v1384 = vadd.f32 0.0, %v1383
    %1385 = vmatmul.f32.gmra.mxu0 %v1352
    %v1386 = vpop.f32.mrf.mxu0
    %v1387 = vadd.f32 0.0, %v1386
    %1388 = vmatmul.f32.gmra.mxu0 %v1355
    %v1389 = vpop.f32.mrf.mxu0
    %v1390 = vadd.f32 0.0, %v1389
    %1391 = vmatmul.f32.gmra.mxu0 %v1358
    %v1392 = vpop.f32.mrf.mxu0
    %v1393 = vadd.f32 0.0, %v1392
    %1394 = vmatmul.f32.gmra.mxu0 %v1361
    %v1395 = vpop.f32.mrf.mxu0
    %v1396 = vadd.f32 0.0, %v1395
    %1397 = vdwg.mxu0
    %v1399 = vsel %vm1344, %v1293, 0
    %v1402 = vsel %vm1344, %v1294, 0
    %v1405 = vsel %vm1344, %v1295, 0
    %v1408 = vsel %vm1344, %v1296, 0
    %v1411 = vsel %vm1344, %v1297, 0
    %v1414 = vsel %vm1344, %v1298, 0
    %1416 = vmatpush.msra.mxu0 0.0
    %1417 = vmatpush.msra.mxu0 0.0
    %1418 = vmatpush.msra.mxu0 0.0
    %1419 = vmatpush.msra.mxu0 0.0
    %1420 = vmatpush.msra.mxu0 0.0
    %1421 = vmatpush.msra.mxu0 0.0
    %1422 = vmatpush.msra.mxu0 0.0
    %1423 = vmatpush.msra.mxu0 0.0
    %1424 = vmatpush.msra.mxu0 0.0
    %1425 = vmatpush.msra.mxu0 0.0
    %1426 = vmatpush.msra.mxu0 %v1291
    %1427 = vmatpush.msra.mxu0 %v1288
    %1428 = vmatpush.msra.mxu0 %v1285
    %1429 = vmatpush.msra.mxu0 %v1282
    %1430 = vmatpush.msra.mxu0 %v1279
    %1431 = vmatpush.msra.mxu0 %v1276
    %1432 = vmatmul.f32.gmra.mxu0 %v1399
    %v1433 = vpop.f32.mrf.mxu0
    %v1434 = vadd.f32 %v1381, %v1433
    %1435 = vmatmul.f32.gmra.mxu0 %v1402
    %v1436 = vpop.f32.mrf.mxu0
    %v1437 = vadd.f32 %v1384, %v1436
    %1438 = vmatmul.f32.gmra.mxu0 %v1405
    %v1439 = vpop.f32.mrf.mxu0
    %v1440 = vadd.f32 %v1387, %v1439
    %1441 = vmatmul.f32.gmra.mxu0 %v1408
    %v1442 = vpop.f32.mrf.mxu0
    %v1443 = vadd.f32 %v1390, %v1442
    %1444 = vmatmul.f32.gmra.mxu0 %v1411
    %v1445 = vpop.f32.mrf.mxu0
    %v1446 = vadd.f32 %v1393, %v1445
    %1447 = vmatmul.f32.gmra.mxu0 %v1414
    %v1448 = vpop.f32.mrf.mxu0
    %v1449 = vadd.f32 %v1396, %v1448
    %1450 = vdwg.mxu0
    %s1451 = scalar_lea.vmem %s17, 32
    %v1452 = vld [vmem:[%s1451] sm:$0xff]
    %v1453 = vld [vmem:[%s1451 + $0x8] sm:$0xff]
    %1454 = vmatpush.msra.mxu0 0.0
    %1455 = vmatpush.msra.mxu0 0.0
    %1456 = vmatpush.msra.mxu0 0.0
    %1457 = vmatpush.msra.mxu0 0.0
    %1458 = vmatpush.msra.mxu0 0.0
    %1459 = vmatpush.msra.mxu0 0.0
    %1460 = vmatpush.msra.mxu0 0.0
    %1461 = vmatpush.msra.mxu0 0.0
    %1462 = vmatpush.msra.mxu0 0.0
    %1463 = vmatpush.msra.mxu0 0.0
    %1464 = vmatpush.msra.mxu0 0.0
    %1465 = vmatpush.msra.mxu0 0.0
    %1466 = vmatpush.msra.mxu0 0.0
    %1467 = vmatpush.msra.mxu0 0.0
    %1468 = vmatpush.msra.mxu0 %v1453
    %1469 = vmatpush.msra.mxu0 %v1452
    %1470 = vmatmul.f32.gmra.mxu0 %v1241
    %v1471 = vpop.f32.mrf.mxu0
    %v1472 = vadd.f32 0.0, %v1471
    %1473 = vmatmul.f32.gmra.mxu0 %v1244
    %v1474 = vpop.f32.mrf.mxu0
    %v1475 = vadd.f32 0.0, %v1474
    %1476 = vmatmul.f32.gmra.mxu0 %v1247
    %v1477 = vpop.f32.mrf.mxu0
    %v1478 = vadd.f32 0.0, %v1477
    %1479 = vmatmul.f32.gmra.mxu0 %v1250
    %v1480 = vpop.f32.mrf.mxu0
    %v1481 = vadd.f32 0.0, %v1480
    %1482 = vmatmul.f32.gmra.mxu0 %v1253
    %v1483 = vpop.f32.mrf.mxu0
    %v1484 = vadd.f32 0.0, %v1483
    %1485 = vmatmul.f32.gmra.mxu0 %v1256
    %v1486 = vpop.f32.mrf.mxu0
    %v1487 = vadd.f32 0.0, %v1486
    %1488 = vdwg.mxu0
    %s1489 = scalar_lea.vmem %s15, 96
    %v1490 = vld [vmem:[%s1489] sm:$0xff]
    %v1491 = vld [vmem:[%s1489 + $0x8] sm:$0xff]
    %v1492 = vld [vmem:[%s1489 + $0x10] sm:$0xff]
    %v1493 = vld [vmem:[%s1489 + $0x18] sm:$0xff]
    %v1494 = vld [vmem:[%s1489 + $0x20] sm:$0xff]
    %v1495 = vld [vmem:[%s1489 + $0x28] sm:$0xff]
    %v1497 = vsel %vm1344, %v1490, 0
    %v1500 = vsel %vm1344, %v1491, 0
    %v1503 = vsel %vm1344, %v1492, 0
    %v1506 = vsel %vm1344, %v1493, 0
    %v1509 = vsel %vm1344, %v1494, 0
    %v1512 = vsel %vm1344, %v1495, 0
    %1514 = vmatpush.msra.mxu0 0.0
    %1515 = vmatpush.msra.mxu0 0.0
    %1516 = vmatpush.msra.mxu0 0.0
    %1517 = vmatpush.msra.mxu0 0.0
    %1518 = vmatpush.msra.mxu0 0.0
    %1519 = vmatpush.msra.mxu0 0.0
    %1520 = vmatpush.msra.mxu0 0.0
    %1521 = vmatpush.msra.mxu0 0.0
    %1522 = vmatpush.msra.mxu0 0.0
    %1523 = vmatpush.msra.mxu0 0.0
    %1524 = vmatpush.msra.mxu0 %v1487
    %1525 = vmatpush.msra.mxu0 %v1484
    %1526 = vmatpush.msra.mxu0 %v1481
    %1527 = vmatpush.msra.mxu0 %v1478
    %1528 = vmatpush.msra.mxu0 %v1475
    %1529 = vmatpush.msra.mxu0 %v1472
    %1530 = vmatmul.f32.gmra.mxu0 %v1497
    %v1531 = vpop.f32.mrf.mxu0
    %v1532 = vadd.f32 0.0, %v1531
    %1533 = vmatmul.f32.gmra.mxu0 %v1500
    %v1534 = vpop.f32.mrf.mxu0
    %v1535 = vadd.f32 0.0, %v1534
    %1536 = vmatmul.f32.gmra.mxu0 %v1503
    %v1537 = vpop.f32.mrf.mxu0
    %v1538 = vadd.f32 0.0, %v1537
    %1539 = vmatmul.f32.gmra.mxu0 %v1506
    %v1540 = vpop.f32.mrf.mxu0
    %v1541 = vadd.f32 0.0, %v1540
    %1542 = vmatmul.f32.gmra.mxu0 %v1509
    %v1543 = vpop.f32.mrf.mxu0
    %v1544 = vadd.f32 0.0, %v1543
    %1545 = vmatmul.f32.gmra.mxu0 %v1512
    %v1546 = vpop.f32.mrf.mxu0
    %v1547 = vadd.f32 0.0, %v1546
    %1548 = vdwg.mxu0
    %v1549 = vadd.f32 %v1434, %v1532
    %v1550 = vadd.f32 %v1437, %v1535
    %v1551 = vadd.f32 %v1440, %v1538
    %v1552 = vadd.f32 %v1443, %v1541
    %v1553 = vadd.f32 %v1446, %v1544
    %v1554 = vadd.f32 %v1449, %v1547
    %v1555 = vld [vmem:[%s19] sm:$0xff]
    %v1556 = vld [vmem:[%s19 + $0x8] sm:$0xff]
    %v1557 = vld [vmem:[%s19 + $0x10] sm:$0xff]
    %v1558 = vld [vmem:[%s19 + $0x18] sm:$0xff]
    %v1559 = vld [vmem:[%s19 + $0x20] sm:$0xff]
    %v1560 = vld [vmem:[%s19 + $0x28] sm:$0xff]
    %1562 = vset.pattern.permute.xlu0 0
    %1563 = vperm.xlu0 %1562, %v1555
    %v1564 = vpop.permute.xlu0 %1563
    %1567 = vset.pattern.permute.xlu0 0
    %1568 = vperm.xlu0 %1567, %v1556
    %v1569 = vpop.permute.xlu0 %1568
    %1572 = vset.pattern.permute.xlu0 0
    %1573 = vperm.xlu0 %1572, %v1557
    %v1574 = vpop.permute.xlu0 %1573
    %1577 = vset.pattern.permute.xlu0 0
    %1578 = vperm.xlu0 %1577, %v1558
    %v1579 = vpop.permute.xlu0 %1578
    %1582 = vset.pattern.permute.xlu0 0
    %1583 = vperm.xlu0 %1582, %v1559
    %v1584 = vpop.permute.xlu0 %1583
    %1587 = vset.pattern.permute.xlu0 0
    %1588 = vperm.xlu0 %1587, %v1560
    %v1589 = vpop.permute.xlu0 %1588
    %v1591 = vadd.f32 %v1549, %v1564
    %v1592 = vadd.f32 %v1550, %v1569
    %v1593 = vadd.f32 %v1551, %v1574
    %v1594 = vadd.f32 %v1552, %v1579
    %v1595 = vadd.f32 %v1553, %v1584
    %v1596 = vadd.f32 %v1554, %v1589
    %v1597 = vmax.f32 %v1591, 0.0
    %v1598 = vmax.f32 %v1592, 0.0
    %v1599 = vmax.f32 %v1593, 0.0
    %v1600 = vmax.f32 %v1594, 0.0
    %v1601 = vmax.f32 %v1595, 0.0
    %v1602 = vmax.f32 %v1596, 0.0
    %v1603 = vld [vmem:[%s23] sm:$0xff]
    %vm1604 = vcmask 64512
    %v1606 = vsel %vm1604, %v1597, 0
    %v1609 = vsel %vm1604, %v1598, 0
    %v1612 = vsel %vm1604, %v1599, 0
    %v1615 = vsel %vm1604, %v1600, 0
    %v1618 = vsel %vm1604, %v1601, 0
    %v1621 = vsel %vm1604, %v1602, 0
    %1623 = vmatpush.msra.mxu0 0.0
    %1624 = vmatpush.msra.mxu0 0.0
    %1625 = vmatpush.msra.mxu0 0.0
    %1626 = vmatpush.msra.mxu0 0.0
    %1627 = vmatpush.msra.mxu0 0.0
    %1628 = vmatpush.msra.mxu0 0.0
    %1629 = vmatpush.msra.mxu0 0.0
    %1630 = vmatpush.msra.mxu0 0.0
    %1631 = vmatpush.msra.mxu0 0.0
    %1632 = vmatpush.msra.mxu0 0.0
    %1633 = vmatpush.msra.mxu0 0.0
    %1634 = vmatpush.msra.mxu0 0.0
    %1635 = vmatpush.msra.mxu0 0.0
    %1636 = vmatpush.msra.mxu0 0.0
    %1637 = vmatpush.msra.mxu0 0.0
    %1638 = vmatpush.msra.mxu0 %v1603
    %1639 = vmatmul.f32.gmra.mxu0 %v1606
    %v1640 = vpop.f32.mrf.mxu0
    %v1641 = vadd.f32 0.0, %v1640
    %1642 = vmatmul.f32.gmra.mxu0 %v1609
    %v1643 = vpop.f32.mrf.mxu0
    %v1644 = vadd.f32 0.0, %v1643
    %1645 = vmatmul.f32.gmra.mxu0 %v1612
    %v1646 = vpop.f32.mrf.mxu0
    %v1647 = vadd.f32 0.0, %v1646
    %1648 = vmatmul.f32.gmra.mxu0 %v1615
    %v1649 = vpop.f32.mrf.mxu0
    %v1650 = vadd.f32 0.0, %v1649
    %1651 = vmatmul.f32.gmra.mxu0 %v1618
    %v1652 = vpop.f32.mrf.mxu0
    %v1653 = vadd.f32 0.0, %v1652
    %1654 = vmatmul.f32.gmra.mxu0 %v1621
    %v1655 = vpop.f32.mrf.mxu0
    %v1656 = vadd.f32 0.0, %v1655
    %1657 = vdwg.mxu0
    %v1658 = vld [vmem:[%s21] sm:$0xff]
    %v1659 = vld [vmem:[%s21 + $0x8] sm:$0xff]
    %v1660 = vld [vmem:[%s21 + $0x10] sm:$0xff]
    %v1661 = vld [vmem:[%s21 + $0x18] sm:$0xff]
    %v1662 = vld [vmem:[%s21 + $0x20] sm:$0xff]
    %v1663 = vld [vmem:[%s21 + $0x28] sm:$0xff]
    %s1664 = scalar_lea.vmem %s23, 8
    %v1665 = vld [vmem:[%s1664] sm:$0xff]
    %1666 = vmatpush.msra.mxu0 0.0
    %1667 = vmatpush.msra.mxu0 0.0
    %1668 = vmatpush.msra.mxu0 0.0
    %1669 = vmatpush.msra.mxu0 0.0
    %1670 = vmatpush.msra.mxu0 0.0
    %1671 = vmatpush.msra.mxu0 0.0
    %1672 = vmatpush.msra.mxu0 0.0
    %1673 = vmatpush.msra.mxu0 0.0
    %1674 = vmatpush.msra.mxu0 0.0
    %1675 = vmatpush.msra.mxu0 0.0
    %1676 = vmatpush.msra.mxu0 0.0
    %1677 = vmatpush.msra.mxu0 0.0
    %1678 = vmatpush.msra.mxu0 0.0
    %1679 = vmatpush.msra.mxu0 0.0
    %1680 = vmatpush.msra.mxu0 0.0
    %1681 = vmatpush.msra.mxu0 %v1665
    %1682 = vmatmul.f32.gmra.mxu0 %v1606
    %v1683 = vpop.f32.mrf.mxu0
    %v1684 = vadd.f32 0.0, %v1683
    %1685 = vmatmul.f32.gmra.mxu0 %v1609
    %v1686 = vpop.f32.mrf.mxu0
    %v1687 = vadd.f32 0.0, %v1686
    %1688 = vmatmul.f32.gmra.mxu0 %v1612
    %v1689 = vpop.f32.mrf.mxu0
    %v1690 = vadd.f32 0.0, %v1689
    %1691 = vmatmul.f32.gmra.mxu0 %v1615
    %v1692 = vpop.f32.mrf.mxu0
    %v1693 = vadd.f32 0.0, %v1692
    %1694 = vmatmul.f32.gmra.mxu0 %v1618
    %v1695 = vpop.f32.mrf.mxu0
    %v1696 = vadd.f32 0.0, %v1695
    %1697 = vmatmul.f32.gmra.mxu0 %v1621
    %v1698 = vpop.f32.mrf.mxu0
    %v1699 = vadd.f32 0.0, %v1698
    %1700 = vdwg.mxu0
    %s1701 = scalar_lea.vmem %s21, 48
    %v1702 = vld [vmem:[%s1701] sm:$0xff]
    %v1703 = vld [vmem:[%s1701 + $0x8] sm:$0xff]
    %v1704 = vld [vmem:[%s1701 + $0x10] sm:$0xff]
    %v1705 = vld [vmem:[%s1701 + $0x18] sm:$0xff]
    %v1706 = vld [vmem:[%s1701 + $0x20] sm:$0xff]
    %v1707 = vld [vmem:[%s1701 + $0x28] sm:$0xff]
    %v1709 = vsel %vm1344, %v1702, 0
    %v1712 = vsel %vm1344, %v1703, 0
    %v1715 = vsel %vm1344, %v1704, 0
    %v1718 = vsel %vm1344, %v1705, 0
    %v1721 = vsel %vm1344, %v1706, 0
    %v1724 = vsel %vm1344, %v1707, 0
    %1726 = vmatpush.msra.mxu0 0.0
    %1727 = vmatpush.msra.mxu0 0.0
    %1728 = vmatpush.msra.mxu0 0.0
    %1729 = vmatpush.msra.mxu0 0.0
    %1730 = vmatpush.msra.mxu0 0.0
    %1731 = vmatpush.msra.mxu0 0.0
    %1732 = vmatpush.msra.mxu0 0.0
    %1733 = vmatpush.msra.mxu0 0.0
    %1734 = vmatpush.msra.mxu0 0.0
    %1735 = vmatpush.msra.mxu0 0.0
    %1736 = vmatpush.msra.mxu0 %v1699
    %1737 = vmatpush.msra.mxu0 %v1696
    %1738 = vmatpush.msra.mxu0 %v1693
    %1739 = vmatpush.msra.mxu0 %v1690
    %1740 = vmatpush.msra.mxu0 %v1687
    %1741 = vmatpush.msra.mxu0 %v1684
    %1742 = vmatmul.f32.gmra.mxu0 %v1709
    %v1743 = vpop.f32.mrf.mxu0
    %v1744 = vadd.f32 0.0, %v1743
    %1745 = vmatmul.f32.gmra.mxu0 %v1712
    %v1746 = vpop.f32.mrf.mxu0
    %v1747 = vadd.f32 0.0, %v1746
    %1748 = vmatmul.f32.gmra.mxu0 %v1715
    %v1749 = vpop.f32.mrf.mxu0
    %v1750 = vadd.f32 0.0, %v1749
    %1751 = vmatmul.f32.gmra.mxu0 %v1718
    %v1752 = vpop.f32.mrf.mxu0
    %v1753 = vadd.f32 0.0, %v1752
    %1754 = vmatmul.f32.gmra.mxu0 %v1721
    %v1755 = vpop.f32.mrf.mxu0
    %v1756 = vadd.f32 0.0, %v1755
    %1757 = vmatmul.f32.gmra.mxu0 %v1724
    %v1758 = vpop.f32.mrf.mxu0
    %v1759 = vadd.f32 0.0, %v1758
    %1760 = vdwg.mxu0
    %v1762 = vsel %vm1344, %v1658, 0
    %v1765 = vsel %vm1344, %v1659, 0
    %v1768 = vsel %vm1344, %v1660, 0
    %v1771 = vsel %vm1344, %v1661, 0
    %v1774 = vsel %vm1344, %v1662, 0
    %v1777 = vsel %vm1344, %v1663, 0
    %1779 = vmatpush.msra.mxu0 0.0
    %1780 = vmatpush.msra.mxu0 0.0
    %1781 = vmatpush.msra.mxu0 0.0
    %1782 = vmatpush.msra.mxu0 0.0
    %1783 = vmatpush.msra.mxu0 0.0
    %1784 = vmatpush.msra.mxu0 0.0
    %1785 = vmatpush.msra.mxu0 0.0
    %1786 = vmatpush.msra.mxu0 0.0
    %1787 = vmatpush.msra.mxu0 0.0
    %1788 = vmatpush.msra.mxu0 0.0
    %1789 = vmatpush.msra.mxu0 %v1656
    %1790 = vmatpush.msra.mxu0 %v1653
    %1791 = vmatpush.msra.mxu0 %v1650
    %1792 = vmatpush.msra.mxu0 %v1647
    %1793 = vmatpush.msra.mxu0 %v1644
    %1794 = vmatpush.msra.mxu0 %v1641
    %1795 = vmatmul.f32.gmra.mxu0 %v1762
    %v1796 = vpop.f32.mrf.mxu0
    %v1797 = vadd.f32 %v1744, %v1796
    %1798 = vmatmul.f32.gmra.mxu0 %v1765
    %v1799 = vpop.f32.mrf.mxu0
    %v1800 = vadd.f32 %v1747, %v1799
    %1801 = vmatmul.f32.gmra.mxu0 %v1768
    %v1802 = vpop.f32.mrf.mxu0
    %v1803 = vadd.f32 %v1750, %v1802
    %1804 = vmatmul.f32.gmra.mxu0 %v1771
    %v1805 = vpop.f32.mrf.mxu0
    %v1806 = vadd.f32 %v1753, %v1805
    %1807 = vmatmul.f32.gmra.mxu0 %v1774
    %v1808 = vpop.f32.mrf.mxu0
    %v1809 = vadd.f32 %v1756, %v1808
    %1810 = vmatmul.f32.gmra.mxu0 %v1777
    %v1811 = vpop.f32.mrf.mxu0
    %v1812 = vadd.f32 %v1759, %v1811
    %1813 = vdwg.mxu0
    %s1814 = scalar_lea.vmem %s23, 16
    %v1815 = vld [vmem:[%s1814] sm:$0xff]
    %1816 = vmatpush.msra.mxu0 0.0
    %1817 = vmatpush.msra.mxu0 0.0
    %1818 = vmatpush.msra.mxu0 0.0
    %1819 = vmatpush.msra.mxu0 0.0
    %1820 = vmatpush.msra.mxu0 0.0
    %1821 = vmatpush.msra.mxu0 0.0
    %1822 = vmatpush.msra.mxu0 0.0
    %1823 = vmatpush.msra.mxu0 0.0
    %1824 = vmatpush.msra.mxu0 0.0
    %1825 = vmatpush.msra.mxu0 0.0
    %1826 = vmatpush.msra.mxu0 0.0
    %1827 = vmatpush.msra.mxu0 0.0
    %1828 = vmatpush.msra.mxu0 0.0
    %1829 = vmatpush.msra.mxu0 0.0
    %1830 = vmatpush.msra.mxu0 0.0
    %1831 = vmatpush.msra.mxu0 %v1815
    %1832 = vmatmul.f32.gmra.mxu0 %v1606
    %v1833 = vpop.f32.mrf.mxu0
    %v1834 = vadd.f32 0.0, %v1833
    %1835 = vmatmul.f32.gmra.mxu0 %v1609
    %v1836 = vpop.f32.mrf.mxu0
    %v1837 = vadd.f32 0.0, %v1836
    %1838 = vmatmul.f32.gmra.mxu0 %v1612
    %v1839 = vpop.f32.mrf.mxu0
    %v1840 = vadd.f32 0.0, %v1839
    %1841 = vmatmul.f32.gmra.mxu0 %v1615
    %v1842 = vpop.f32.mrf.mxu0
    %v1843 = vadd.f32 0.0, %v1842
    %1844 = vmatmul.f32.gmra.mxu0 %v1618
    %v1845 = vpop.f32.mrf.mxu0
    %v1846 = vadd.f32 0.0, %v1845
    %1847 = vmatmul.f32.gmra.mxu0 %v1621
    %v1848 = vpop.f32.mrf.mxu0
    %v1849 = vadd.f32 0.0, %v1848
    %1850 = vdwg.mxu0
    %s1851 = scalar_lea.vmem %s21, 96
    %v1852 = vld [vmem:[%s1851] sm:$0xff]
    %v1853 = vld [vmem:[%s1851 + $0x8] sm:$0xff]
    %v1854 = vld [vmem:[%s1851 + $0x10] sm:$0xff]
    %v1855 = vld [vmem:[%s1851 + $0x18] sm:$0xff]
    %v1856 = vld [vmem:[%s1851 + $0x20] sm:$0xff]
    %v1857 = vld [vmem:[%s1851 + $0x28] sm:$0xff]
    %v1859 = vsel %vm1344, %v1852, 0
    %v1862 = vsel %vm1344, %v1853, 0
    %v1865 = vsel %vm1344, %v1854, 0
    %v1868 = vsel %vm1344, %v1855, 0
    %v1871 = vsel %vm1344, %v1856, 0
    %v1874 = vsel %vm1344, %v1857, 0
    %1876 = vmatpush.msra.mxu0 0.0
    %1877 = vmatpush.msra.mxu0 0.0
    %1878 = vmatpush.msra.mxu0 0.0
    %1879 = vmatpush.msra.mxu0 0.0
    %1880 = vmatpush.msra.mxu0 0.0
    %1881 = vmatpush.msra.mxu0 0.0
    %1882 = vmatpush.msra.mxu0 0.0
    %1883 = vmatpush.msra.mxu0 0.0
    %1884 = vmatpush.msra.mxu0 0.0
    %1885 = vmatpush.msra.mxu0 0.0
    %1886 = vmatpush.msra.mxu0 %v1849
    %1887 = vmatpush.msra.mxu0 %v1846
    %1888 = vmatpush.msra.mxu0 %v1843
    %1889 = vmatpush.msra.mxu0 %v1840
    %1890 = vmatpush.msra.mxu0 %v1837
    %1891 = vmatpush.msra.mxu0 %v1834
    %1892 = vmatmul.f32.gmra.mxu0 %v1859
    %v1893 = vpop.f32.mrf.mxu0
    %v1894 = vadd.f32 0.0, %v1893
    %1895 = vmatmul.f32.gmra.mxu0 %v1862
    %v1896 = vpop.f32.mrf.mxu0
    %v1897 = vadd.f32 0.0, %v1896
    %1898 = vmatmul.f32.gmra.mxu0 %v1865
    %v1899 = vpop.f32.mrf.mxu0
    %v1900 = vadd.f32 0.0, %v1899
    %1901 = vmatmul.f32.gmra.mxu0 %v1868
    %v1902 = vpop.f32.mrf.mxu0
    %v1903 = vadd.f32 0.0, %v1902
    %1904 = vmatmul.f32.gmra.mxu0 %v1871
    %v1905 = vpop.f32.mrf.mxu0
    %v1906 = vadd.f32 0.0, %v1905
    %1907 = vmatmul.f32.gmra.mxu0 %v1874
    %v1908 = vpop.f32.mrf.mxu0
    %v1909 = vadd.f32 0.0, %v1908
    %1910 = vdwg.mxu0
    %v1911 = vadd.f32 %v1797, %v1894
    %v1912 = vadd.f32 %v1800, %v1897
    %v1913 = vadd.f32 %v1803, %v1900
    %v1914 = vadd.f32 %v1806, %v1903
    %v1915 = vadd.f32 %v1809, %v1906
    %v1916 = vadd.f32 %v1812, %v1909
    %v1917 = vld [vmem:[%s25] sm:$0xff]
    %v1918 = vld [vmem:[%s25 + $0x8] sm:$0xff]
    %v1919 = vld [vmem:[%s25 + $0x10] sm:$0xff]
    %v1920 = vld [vmem:[%s25 + $0x18] sm:$0xff]
    %v1921 = vld [vmem:[%s25 + $0x20] sm:$0xff]
    %v1922 = vld [vmem:[%s25 + $0x28] sm:$0xff]
    %1924 = vset.pattern.permute.xlu0 0
    %1925 = vperm.xlu0 %1924, %v1917
    %v1926 = vpop.permute.xlu0 %1925
    %1929 = vset.pattern.permute.xlu0 0
    %1930 = vperm.xlu0 %1929, %v1918
    %v1931 = vpop.permute.xlu0 %1930
    %1934 = vset.pattern.permute.xlu0 0
    %1935 = vperm.xlu0 %1934, %v1919
    %v1936 = vpop.permute.xlu0 %1935
    %1939 = vset.pattern.permute.xlu0 0
    %1940 = vperm.xlu0 %1939, %v1920
    %v1941 = vpop.permute.xlu0 %1940
    %1944 = vset.pattern.permute.xlu0 0
    %1945 = vperm.xlu0 %1944, %v1921
    %v1946 = vpop.permute.xlu0 %1945
    %1949 = vset.pattern.permute.xlu0 0
    %1950 = vperm.xlu0 %1949, %v1922
    %v1951 = vpop.permute.xlu0 %1950
    %v1953 = vadd.f32 %v1911, %v1926
    %v1954 = vadd.f32 %v1912, %v1931
    %v1955 = vadd.f32 %v1913, %v1936
    %v1956 = vadd.f32 %v1914, %v1941
    %v1957 = vadd.f32 %v1915, %v1946
    %v1958 = vadd.f32 %v1916, %v1951
    %v1959 = vmax.f32 %v1953, 0.0
    %v1960 = vmax.f32 %v1954, 0.0
    %v1961 = vmax.f32 %v1955, 0.0
    %v1962 = vmax.f32 %v1956, 0.0
    %v1963 = vmax.f32 %v1957, 0.0
    %v1964 = vmax.f32 %v1958, 0.0
    %v1965 = vld [vmem:[%s29] sm:$0xf]
    %vm1966 = vcmask 31744
    %v1968 = vsel %vm1966, %v1959, 0
    %v1971 = vsel %vm1966, %v1960, 0
    %v1974 = vsel %vm1966, %v1961, 0
    %v1977 = vsel %vm1966, %v1962, 0
    %v1980 = vsel %vm1966, %v1963, 0
    %v1983 = vsel %vm1966, %v1964, 0
    %vm1985 = vcmask 1043456
    %v1987 = vsel %vm1985, %v1965, 0
    %1989 = vmatpush.msra.mxu0 0.0
    %1990 = vmatpush.msra.mxu0 0.0
    %1991 = vmatpush.msra.mxu0 0.0
    %1992 = vmatpush.msra.mxu0 0.0
    %1993 = vmatpush.msra.mxu0 0.0
    %1994 = vmatpush.msra.mxu0 0.0
    %1995 = vmatpush.msra.mxu0 0.0
    %1996 = vmatpush.msra.mxu0 0.0
    %1997 = vmatpush.msra.mxu0 0.0
    %1998 = vmatpush.msra.mxu0 0.0
    %1999 = vmatpush.msra.mxu0 0.0
    %2000 = vmatpush.msra.mxu0 0.0
    %2001 = vmatpush.msra.mxu0 0.0
    %2002 = vmatpush.msra.mxu0 0.0
    %2003 = vmatpush.msra.mxu0 0.0
    %2004 = vmatpush.msra.mxu0 %v1987
    %2005 = vmatmul.f32.gmra.mxu0 %v1968
    %v2006 = vpop.f32.mrf.mxu0
    %v2007 = vadd.f32 0.0, %v2006
    %2008 = vmatmul.f32.gmra.mxu0 %v1971
    %v2009 = vpop.f32.mrf.mxu0
    %v2010 = vadd.f32 0.0, %v2009
    %2011 = vmatmul.f32.gmra.mxu0 %v1974
    %v2012 = vpop.f32.mrf.mxu0
    %v2013 = vadd.f32 0.0, %v2012
    %2014 = vmatmul.f32.gmra.mxu0 %v1977
    %v2015 = vpop.f32.mrf.mxu0
    %v2016 = vadd.f32 0.0, %v2015
    %2017 = vmatmul.f32.gmra.mxu0 %v1980
    %v2018 = vpop.f32.mrf.mxu0
    %v2019 = vadd.f32 0.0, %v2018
    %2020 = vmatmul.f32.gmra.mxu0 %v1983
    %v2021 = vpop.f32.mrf.mxu0
    %v2022 = vadd.f32 0.0, %v2021
    %2023 = vdwg.mxu0
    %v2024 = vld [vmem:[%s27] sm:$0xff]
    %v2025 = vld [vmem:[%s27 + $0x8] sm:$0xff]
    %v2026 = vld [vmem:[%s27 + $0x10] sm:$0xff]
    %s2027 = scalar_lea.vmem %s29, 4
    %v2028 = vld [vmem:[%s2027] sm:$0xf]
    %v2030 = vsel %vm1985, %v2028, 0
    %2032 = vmatpush.msra.mxu0 0.0
    %2033 = vmatpush.msra.mxu0 0.0
    %2034 = vmatpush.msra.mxu0 0.0
    %2035 = vmatpush.msra.mxu0 0.0
    %2036 = vmatpush.msra.mxu0 0.0
    %2037 = vmatpush.msra.mxu0 0.0
    %2038 = vmatpush.msra.mxu0 0.0
    %2039 = vmatpush.msra.mxu0 0.0
    %2040 = vmatpush.msra.mxu0 0.0
    %2041 = vmatpush.msra.mxu0 0.0
    %2042 = vmatpush.msra.mxu0 0.0
    %2043 = vmatpush.msra.mxu0 0.0
    %2044 = vmatpush.msra.mxu0 0.0
    %2045 = vmatpush.msra.mxu0 0.0
    %2046 = vmatpush.msra.mxu0 0.0
    %2047 = vmatpush.msra.mxu0 %v2030
    %2048 = vmatmul.f32.gmra.mxu0 %v1968
    %v2049 = vpop.f32.mrf.mxu0
    %v2050 = vadd.f32 0.0, %v2049
    %2051 = vmatmul.f32.gmra.mxu0 %v1971
    %v2052 = vpop.f32.mrf.mxu0
    %v2053 = vadd.f32 0.0, %v2052
    %2054 = vmatmul.f32.gmra.mxu0 %v1974
    %v2055 = vpop.f32.mrf.mxu0
    %v2056 = vadd.f32 0.0, %v2055
    %2057 = vmatmul.f32.gmra.mxu0 %v1977
    %v2058 = vpop.f32.mrf.mxu0
    %v2059 = vadd.f32 0.0, %v2058
    %2060 = vmatmul.f32.gmra.mxu0 %v1980
    %v2061 = vpop.f32.mrf.mxu0
    %v2062 = vadd.f32 0.0, %v2061
    %2063 = vmatmul.f32.gmra.mxu0 %v1983
    %v2064 = vpop.f32.mrf.mxu0
    %v2065 = vadd.f32 0.0, %v2064
    %2066 = vdwg.mxu0
    %s2067 = scalar_lea.vmem %s27, 24
    %v2068 = vld [vmem:[%s2067] sm:$0xff]
    %v2069 = vld [vmem:[%s2067 + $0x8] sm:$0xff]
    %v2070 = vld [vmem:[%s2067 + $0x10] sm:$0xff]
    %v2072 = vsel %vm1344, %v2068, 0
    %v2075 = vsel %vm1344, %v2069, 0
    %v2078 = vsel %vm1344, %v2070, 0
    %2080 = vmatpush.msra.mxu0 0.0
    %2081 = vmatpush.msra.mxu0 0.0
    %2082 = vmatpush.msra.mxu0 0.0
    %2083 = vmatpush.msra.mxu0 0.0
    %2084 = vmatpush.msra.mxu0 0.0
    %2085 = vmatpush.msra.mxu0 0.0
    %2086 = vmatpush.msra.mxu0 0.0
    %2087 = vmatpush.msra.mxu0 0.0
    %2088 = vmatpush.msra.mxu0 0.0
    %2089 = vmatpush.msra.mxu0 0.0
    %2090 = vmatpush.msra.mxu0 %v2065
    %2091 = vmatpush.msra.mxu0 %v2062
    %2092 = vmatpush.msra.mxu0 %v2059
    %2093 = vmatpush.msra.mxu0 %v2056
    %2094 = vmatpush.msra.mxu0 %v2053
    %2095 = vmatpush.msra.mxu0 %v2050
    %2096 = vmatmul.f32.gmra.mxu0 %v2072
    %v2097 = vpop.f32.mrf.mxu0
    %v2098 = vadd.f32 0.0, %v2097
    %2099 = vmatmul.f32.gmra.mxu0 %v2075
    %v2100 = vpop.f32.mrf.mxu0
    %v2101 = vadd.f32 0.0, %v2100
    %2102 = vmatmul.f32.gmra.mxu0 %v2078
    %v2103 = vpop.f32.mrf.mxu0
    %v2104 = vadd.f32 0.0, %v2103
    %2105 = vdwg.mxu0
    %v2107 = vsel %vm1344, %v2024, 0
    %v2110 = vsel %vm1344, %v2025, 0
    %v2113 = vsel %vm1344, %v2026, 0
    %2115 = vmatpush.msra.mxu0 0.0
    %2116 = vmatpush.msra.mxu0 0.0
    %2117 = vmatpush.msra.mxu0 0.0
    %2118 = vmatpush.msra.mxu0 0.0
    %2119 = vmatpush.msra.mxu0 0.0
    %2120 = vmatpush.msra.mxu0 0.0
    %2121 = vmatpush.msra.mxu0 0.0
    %2122 = vmatpush.msra.mxu0 0.0
    %2123 = vmatpush.msra.mxu0 0.0
    %2124 = vmatpush.msra.mxu0 0.0
    %2125 = vmatpush.msra.mxu0 %v2022
    %2126 = vmatpush.msra.mxu0 %v2019
    %2127 = vmatpush.msra.mxu0 %v2016
    %2128 = vmatpush.msra.mxu0 %v2013
    %2129 = vmatpush.msra.mxu0 %v2010
    %2130 = vmatpush.msra.mxu0 %v2007
    %2131 = vmatmul.f32.gmra.mxu0 %v2107
    %v2132 = vpop.f32.mrf.mxu0
    %v2133 = vadd.f32 %v2098, %v2132
    %2134 = vmatmul.f32.gmra.mxu0 %v2110
    %v2135 = vpop.f32.mrf.mxu0
    %v2136 = vadd.f32 %v2101, %v2135
    %2137 = vmatmul.f32.gmra.mxu0 %v2113
    %v2138 = vpop.f32.mrf.mxu0
    %v2139 = vadd.f32 %v2104, %v2138
    %2140 = vdwg.mxu0
    %s2141 = scalar_lea.vmem %s29, 8
    %v2142 = vld [vmem:[%s2141] sm:$0xf]
    %v2144 = vsel %vm1985, %v2142, 0
    %2146 = vmatpush.msra.mxu0 0.0
    %2147 = vmatpush.msra.mxu0 0.0
    %2148 = vmatpush.msra.mxu0 0.0
    %2149 = vmatpush.msra.mxu0 0.0
    %2150 = vmatpush.msra.mxu0 0.0
    %2151 = vmatpush.msra.mxu0 0.0
    %2152 = vmatpush.msra.mxu0 0.0
    %2153 = vmatpush.msra.mxu0 0.0
    %2154 = vmatpush.msra.mxu0 0.0
    %2155 = vmatpush.msra.mxu0 0.0
    %2156 = vmatpush.msra.mxu0 0.0
    %2157 = vmatpush.msra.mxu0 0.0
    %2158 = vmatpush.msra.mxu0 0.0
    %2159 = vmatpush.msra.mxu0 0.0
    %2160 = vmatpush.msra.mxu0 0.0
    %2161 = vmatpush.msra.mxu0 %v2144
    %2162 = vmatmul.f32.gmra.mxu0 %v1968
    %v2163 = vpop.f32.mrf.mxu0
    %v2164 = vadd.f32 0.0, %v2163
    %2165 = vmatmul.f32.gmra.mxu0 %v1971
    %v2166 = vpop.f32.mrf.mxu0
    %v2167 = vadd.f32 0.0, %v2166
    %2168 = vmatmul.f32.gmra.mxu0 %v1974
    %v2169 = vpop.f32.mrf.mxu0
    %v2170 = vadd.f32 0.0, %v2169
    %2171 = vmatmul.f32.gmra.mxu0 %v1977
    %v2172 = vpop.f32.mrf.mxu0
    %v2173 = vadd.f32 0.0, %v2172
    %2174 = vmatmul.f32.gmra.mxu0 %v1980
    %v2175 = vpop.f32.mrf.mxu0
    %v2176 = vadd.f32 0.0, %v2175
    %2177 = vmatmul.f32.gmra.mxu0 %v1983
    %v2178 = vpop.f32.mrf.mxu0
    %v2179 = vadd.f32 0.0, %v2178
    %2180 = vdwg.mxu0
    %s2181 = scalar_lea.vmem %s27, 48
    %v2182 = vld [vmem:[%s2181] sm:$0xff]
    %v2183 = vld [vmem:[%s2181 + $0x8] sm:$0xff]
    %v2184 = vld [vmem:[%s2181 + $0x10] sm:$0xff]
    %v2186 = vsel %vm1344, %v2182, 0
    %v2189 = vsel %vm1344, %v2183, 0
    %v2192 = vsel %vm1344, %v2184, 0
    %2194 = vmatpush.msra.mxu0 0.0
    %2195 = vmatpush.msra.mxu0 0.0
    %2196 = vmatpush.msra.mxu0 0.0
    %2197 = vmatpush.msra.mxu0 0.0
    %2198 = vmatpush.msra.mxu0 0.0
    %2199 = vmatpush.msra.mxu0 0.0
    %2200 = vmatpush.msra.mxu0 0.0
    %2201 = vmatpush.msra.mxu0 0.0
    %2202 = vmatpush.msra.mxu0 0.0
    %2203 = vmatpush.msra.mxu0 0.0
    %2204 = vmatpush.msra.mxu0 %v2179
    %2205 = vmatpush.msra.mxu0 %v2176
    %2206 = vmatpush.msra.mxu0 %v2173
    %2207 = vmatpush.msra.mxu0 %v2170
    %2208 = vmatpush.msra.mxu0 %v2167
    %2209 = vmatpush.msra.mxu0 %v2164
    %2210 = vmatmul.f32.gmra.mxu0 %v2186
    %v2211 = vpop.f32.mrf.mxu0
    %v2212 = vadd.f32 0.0, %v2211
    %2213 = vmatmul.f32.gmra.mxu0 %v2189
    %v2214 = vpop.f32.mrf.mxu0
    %v2215 = vadd.f32 0.0, %v2214
    %2216 = vmatmul.f32.gmra.mxu0 %v2192
    %v2217 = vpop.f32.mrf.mxu0
    %v2218 = vadd.f32 0.0, %v2217
    %2219 = vdwg.mxu0
    %v2220 = vadd.f32 %v2133, %v2212
    %v2221 = vadd.f32 %v2136, %v2215
    %v2222 = vadd.f32 %v2139, %v2218
    %v2223 = vld [vmem:[%s31] sm:$0xff]
    %v2224 = vld [vmem:[%s31 + $0x8] sm:$0xff]
    %v2225 = vld [vmem:[%s31 + $0x10] sm:$0xff]
    %2227 = vset.pattern.permute.xlu0 0
    %2228 = vperm.xlu0 %2227, %v2223
    %v2229 = vpop.permute.xlu0 %2228
    %2232 = vset.pattern.permute.xlu0 0
    %2233 = vperm.xlu0 %2232, %v2224
    %v2234 = vpop.permute.xlu0 %2233
    %2237 = vset.pattern.permute.xlu0 0
    %2238 = vperm.xlu0 %2237, %v2225
    %v2239 = vpop.permute.xlu0 %2238
    %v2241 = vadd.f32 %v2220, %v2229
    %v2242 = vadd.f32 %v2221, %v2234
    %v2243 = vadd.f32 %v2222, %v2239
    %v2244 = vmax.f32 %v2241, 0.0
    %v2245 = vmax.f32 %v2242, 0.0
    %v2246 = vmax.f32 %v2243, 0.0
    %v2247 = vld [vmem:[%s35] sm:$0x3]
    %vm2248 = vcmask 15360
    %v2250 = vsel %vm2248, %v2244, 0
    %v2253 = vsel %vm2248, %v2245, 0
    %v2256 = vsel %vm2248, %v2246, 0
    %vm2258 = vcmask 1041408
    %v2260 = vsel %vm2258, %v2247, 0
    %2262 = vmatpush.msra.mxu0 0.0
    %2263 = vmatpush.msra.mxu0 0.0
    %2264 = vmatpush.msra.mxu0 0.0
    %2265 = vmatpush.msra.mxu0 0.0
    %2266 = vmatpush.msra.mxu0 0.0
    %2267 = vmatpush.msra.mxu0 0.0
    %2268 = vmatpush.msra.mxu0 0.0
    %2269 = vmatpush.msra.mxu0 0.0
    %2270 = vmatpush.msra.mxu0 0.0
    %2271 = vmatpush.msra.mxu0 0.0
    %2272 = vmatpush.msra.mxu0 0.0
    %2273 = vmatpush.msra.mxu0 0.0
    %2274 = vmatpush.msra.mxu0 0.0
    %2275 = vmatpush.msra.mxu0 0.0
    %2276 = vmatpush.msra.mxu0 0.0
    %2277 = vmatpush.msra.mxu0 %v2260
    %2278 = vmatmul.f32.gmra.mxu0 %v2250
    %v2279 = vpop.f32.mrf.mxu0
    %v2280 = vadd.f32 0.0, %v2279
    %2281 = vmatmul.f32.gmra.mxu0 %v2253
    %v2282 = vpop.f32.mrf.mxu0
    %v2283 = vadd.f32 0.0, %v2282
    %2284 = vmatmul.f32.gmra.mxu0 %v2256
    %v2285 = vpop.f32.mrf.mxu0
    %v2286 = vadd.f32 0.0, %v2285
    %2287 = vdwg.mxu0
    %v2288 = vld [vmem:[%s33] sm:$0xff]
    %v2289 = vld [vmem:[%s33 + $0x8] sm:$0xff]
    %v2290 = vld [vmem:[%s33 + $0x10] sm:$0xff]
    %v2291 = vld [vmem:[%s33 + $0x18] sm:$0xff]
    %v2292 = vld [vmem:[%s33 + $0x20] sm:$0xff]
    %v2293 = vld [vmem:[%s33 + $0x28] sm:$0xff]
    %s2294 = scalar_lea.vmem %s35, 2
    %v2295 = vld [vmem:[%s2294] sm:$0x3]
    %v2297 = vsel %vm2258, %v2295, 0
    %2299 = vmatpush.msra.mxu0 0.0
    %2300 = vmatpush.msra.mxu0 0.0
    %2301 = vmatpush.msra.mxu0 0.0
    %2302 = vmatpush.msra.mxu0 0.0
    %2303 = vmatpush.msra.mxu0 0.0
    %2304 = vmatpush.msra.mxu0 0.0
    %2305 = vmatpush.msra.mxu0 0.0
    %2306 = vmatpush.msra.mxu0 0.0
    %2307 = vmatpush.msra.mxu0 0.0
    %2308 = vmatpush.msra.mxu0 0.0
    %2309 = vmatpush.msra.mxu0 0.0
    %2310 = vmatpush.msra.mxu0 0.0
    %2311 = vmatpush.msra.mxu0 0.0
    %2312 = vmatpush.msra.mxu0 0.0
    %2313 = vmatpush.msra.mxu0 0.0
    %2314 = vmatpush.msra.mxu0 %v2297
    %2315 = vmatmul.f32.gmra.mxu0 %v2250
    %v2316 = vpop.f32.mrf.mxu0
    %v2317 = vadd.f32 0.0, %v2316
    %2318 = vmatmul.f32.gmra.mxu0 %v2253
    %v2319 = vpop.f32.mrf.mxu0
    %v2320 = vadd.f32 0.0, %v2319
    %2321 = vmatmul.f32.gmra.mxu0 %v2256
    %v2322 = vpop.f32.mrf.mxu0
    %v2323 = vadd.f32 0.0, %v2322
    %2324 = vdwg.mxu0
    %s2325 = scalar_lea.vmem %s33, 48
    %v2326 = vld [vmem:[%s2325] sm:$0xff]
    %v2327 = vld [vmem:[%s2325 + $0x8] sm:$0xff]
    %v2328 = vld [vmem:[%s2325 + $0x10] sm:$0xff]
    %v2329 = vld [vmem:[%s2325 + $0x18] sm:$0xff]
    %v2330 = vld [vmem:[%s2325 + $0x20] sm:$0xff]
    %v2331 = vld [vmem:[%s2325 + $0x28] sm:$0xff]
    %vm2332 = vcmask 195584
    %v2334 = vsel %vm2332, %v2326, 0
    %v2337 = vsel %vm2332, %v2327, 0
    %v2340 = vsel %vm2332, %v2328, 0
    %v2343 = vsel %vm2332, %v2329, 0
    %v2346 = vsel %vm2332, %v2330, 0
    %v2349 = vsel %vm2332, %v2331, 0
    %2351 = vmatpush.msra.mxu0 0.0
    %2352 = vmatpush.msra.mxu0 0.0
    %2353 = vmatpush.msra.mxu0 0.0
    %2354 = vmatpush.msra.mxu0 0.0
    %2355 = vmatpush.msra.mxu0 0.0
    %2356 = vmatpush.msra.mxu0 0.0
    %2357 = vmatpush.msra.mxu0 0.0
    %2358 = vmatpush.msra.mxu0 0.0
    %2359 = vmatpush.msra.mxu0 0.0
    %2360 = vmatpush.msra.mxu0 0.0
    %2361 = vmatpush.msra.mxu0 0.0
    %2362 = vmatpush.msra.mxu0 0.0
    %2363 = vmatpush.msra.mxu0 0.0
    %2364 = vmatpush.msra.mxu0 %v2323
    %2365 = vmatpush.msra.mxu0 %v2320
    %2366 = vmatpush.msra.mxu0 %v2317
    %2367 = vmatmul.f32.gmra.mxu0 %v2334
    %v2368 = vpop.f32.mrf.mxu0
    %v2369 = vadd.f32 0.0, %v2368
    %2370 = vmatmul.f32.gmra.mxu0 %v2337
    %v2371 = vpop.f32.mrf.mxu0
    %v2372 = vadd.f32 0.0, %v2371
    %2373 = vmatmul.f32.gmra.mxu0 %v2340
    %v2374 = vpop.f32.mrf.mxu0
    %v2375 = vadd.f32 0.0, %v2374
    %2376 = vmatmul.f32.gmra.mxu0 %v2343
    %v2377 = vpop.f32.mrf.mxu0
    %v2378 = vadd.f32 0.0, %v2377
    %2379 = vmatmul.f32.gmra.mxu0 %v2346
    %v2380 = vpop.f32.mrf.mxu0
    %v2381 = vadd.f32 0.0, %v2380
    %2382 = vmatmul.f32.gmra.mxu0 %v2349
    %v2383 = vpop.f32.mrf.mxu0
    %v2384 = vadd.f32 0.0, %v2383
    %2385 = vdwg.mxu0
    %v2387 = vsel %vm2332, %v2288, 0
    %v2390 = vsel %vm2332, %v2289, 0
    %v2393 = vsel %vm2332, %v2290, 0
    %v2396 = vsel %vm2332, %v2291, 0
    %v2399 = vsel %vm2332, %v2292, 0
    %v2402 = vsel %vm2332, %v2293, 0
    %2404 = vmatpush.msra.mxu0 0.0
    %2405 = vmatpush.msra.mxu0 0.0
    %2406 = vmatpush.msra.mxu0 0.0
    %2407 = vmatpush.msra.mxu0 0.0
    %2408 = vmatpush.msra.mxu0 0.0
    %2409 = vmatpush.msra.mxu0 0.0
    %2410 = vmatpush.msra.mxu0 0.0
    %2411 = vmatpush.msra.mxu0 0.0
    %2412 = vmatpush.msra.mxu0 0.0
    %2413 = vmatpush.msra.mxu0 0.0
    %2414 = vmatpush.msra.mxu0 0.0
    %2415 = vmatpush.msra.mxu0 0.0
    %2416 = vmatpush.msra.mxu0 0.0
    %2417 = vmatpush.msra.mxu0 %v2286
    %2418 = vmatpush.msra.mxu0 %v2283
    %2419 = vmatpush.msra.mxu0 %v2280
    %2420 = vmatmul.f32.gmra.mxu0 %v2387
    %v2421 = vpop.f32.mrf.mxu0
    %v2422 = vadd.f32 %v2369, %v2421
    %2423 = vmatmul.f32.gmra.mxu0 %v2390
    %v2424 = vpop.f32.mrf.mxu0
    %v2425 = vadd.f32 %v2372, %v2424
    %2426 = vmatmul.f32.gmra.mxu0 %v2393
    %v2427 = vpop.f32.mrf.mxu0
    %v2428 = vadd.f32 %v2375, %v2427
    %2429 = vmatmul.f32.gmra.mxu0 %v2396
    %v2430 = vpop.f32.mrf.mxu0
    %v2431 = vadd.f32 %v2378, %v2430
    %2432 = vmatmul.f32.gmra.mxu0 %v2399
    %v2433 = vpop.f32.mrf.mxu0
    %v2434 = vadd.f32 %v2381, %v2433
    %2435 = vmatmul.f32.gmra.mxu0 %v2402
    %v2436 = vpop.f32.mrf.mxu0
    %v2437 = vadd.f32 %v2384, %v2436
    %2438 = vdwg.mxu0
    %s2439 = scalar_lea.vmem %s35, 4
    %v2440 = vld [vmem:[%s2439] sm:$0x3]
    %v2442 = vsel %vm2258, %v2440, 0
    %2444 = vmatpush.msra.mxu0 0.0
    %2445 = vmatpush.msra.mxu0 0.0
    %2446 = vmatpush.msra.mxu0 0.0
    %2447 = vmatpush.msra.mxu0 0.0
    %2448 = vmatpush.msra.mxu0 0.0
    %2449 = vmatpush.msra.mxu0 0.0
    %2450 = vmatpush.msra.mxu0 0.0
    %2451 = vmatpush.msra.mxu0 0.0
    %2452 = vmatpush.msra.mxu0 0.0
    %2453 = vmatpush.msra.mxu0 0.0
    %2454 = vmatpush.msra.mxu0 0.0
    %2455 = vmatpush.msra.mxu0 0.0
    %2456 = vmatpush.msra.mxu0 0.0
    %2457 = vmatpush.msra.mxu0 0.0
    %2458 = vmatpush.msra.mxu0 0.0
    %2459 = vmatpush.msra.mxu0 %v2442
    %2460 = vmatmul.f32.gmra.mxu0 %v2250
    %v2461 = vpop.f32.mrf.mxu0
    %v2462 = vadd.f32 0.0, %v2461
    %2463 = vmatmul.f32.gmra.mxu0 %v2253
    %v2464 = vpop.f32.mrf.mxu0
    %v2465 = vadd.f32 0.0, %v2464
    %2466 = vmatmul.f32.gmra.mxu0 %v2256
    %v2467 = vpop.f32.mrf.mxu0
    %v2468 = vadd.f32 0.0, %v2467
    %2469 = vdwg.mxu0
    %s2470 = scalar_lea.vmem %s33, 96
    %v2471 = vld [vmem:[%s2470] sm:$0xff]
    %v2472 = vld [vmem:[%s2470 + $0x8] sm:$0xff]
    %v2473 = vld [vmem:[%s2470 + $0x10] sm:$0xff]
    %v2474 = vld [vmem:[%s2470 + $0x18] sm:$0xff]
    %v2475 = vld [vmem:[%s2470 + $0x20] sm:$0xff]
    %v2476 = vld [vmem:[%s2470 + $0x28] sm:$0xff]
    %v2478 = vsel %vm2332, %v2471, 0
    %v2481 = vsel %vm2332, %v2472, 0
    %v2484 = vsel %vm2332, %v2473, 0
    %v2487 = vsel %vm2332, %v2474, 0
    %v2490 = vsel %vm2332, %v2475, 0
    %v2493 = vsel %vm2332, %v2476, 0
    %2495 = vmatpush.msra.mxu0 0.0
    %2496 = vmatpush.msra.mxu0 0.0
    %2497 = vmatpush.msra.mxu0 0.0
    %2498 = vmatpush.msra.mxu0 0.0
    %2499 = vmatpush.msra.mxu0 0.0
    %2500 = vmatpush.msra.mxu0 0.0
    %2501 = vmatpush.msra.mxu0 0.0
    %2502 = vmatpush.msra.mxu0 0.0
    %2503 = vmatpush.msra.mxu0 0.0
    %2504 = vmatpush.msra.mxu0 0.0
    %2505 = vmatpush.msra.mxu0 0.0
    %2506 = vmatpush.msra.mxu0 0.0
    %2507 = vmatpush.msra.mxu0 0.0
    %2508 = vmatpush.msra.mxu0 %v2468
    %2509 = vmatpush.msra.mxu0 %v2465
    %2510 = vmatpush.msra.mxu0 %v2462
    %2511 = vmatmul.f32.gmra.mxu0 %v2478
    %v2512 = vpop.f32.mrf.mxu0
    %v2513 = vadd.f32 0.0, %v2512
    %2514 = vmatmul.f32.gmra.mxu0 %v2481
    %v2515 = vpop.f32.mrf.mxu0
    %v2516 = vadd.f32 0.0, %v2515
    %2517 = vmatmul.f32.gmra.mxu0 %v2484
    %v2518 = vpop.f32.mrf.mxu0
    %v2519 = vadd.f32 0.0, %v2518
    %2520 = vmatmul.f32.gmra.mxu0 %v2487
    %v2521 = vpop.f32.mrf.mxu0
    %v2522 = vadd.f32 0.0, %v2521
    %2523 = vmatmul.f32.gmra.mxu0 %v2490
    %v2524 = vpop.f32.mrf.mxu0
    %v2525 = vadd.f32 0.0, %v2524
    %2526 = vmatmul.f32.gmra.mxu0 %v2493
    %v2527 = vpop.f32.mrf.mxu0
    %v2528 = vadd.f32 0.0, %v2527
    %2529 = vdwg.mxu0
    %v2530 = vadd.f32 %v2422, %v2513
    %v2531 = vadd.f32 %v2425, %v2516
    %v2532 = vadd.f32 %v2428, %v2519
    %v2533 = vadd.f32 %v2431, %v2522
    %v2534 = vadd.f32 %v2434, %v2525
    %v2535 = vadd.f32 %v2437, %v2528
    %s2536 = scalar_lea.vmem %s35, 6
    %v2537 = vld [vmem:[%s2536] sm:$0x3]
    %v2539 = vsel %vm2258, %v2537, 0
    %2541 = vmatpush.msra.mxu0 0.0
    %2542 = vmatpush.msra.mxu0 0.0
    %2543 = vmatpush.msra.mxu0 0.0
    %2544 = vmatpush.msra.mxu0 0.0
    %2545 = vmatpush.msra.mxu0 0.0
    %2546 = vmatpush.msra.mxu0 0.0
    %2547 = vmatpush.msra.mxu0 0.0
    %2548 = vmatpush.msra.mxu0 0.0
    %2549 = vmatpush.msra.mxu0 0.0
    %2550 = vmatpush.msra.mxu0 0.0
    %2551 = vmatpush.msra.mxu0 0.0
    %2552 = vmatpush.msra.mxu0 0.0
    %2553 = vmatpush.msra.mxu0 0.0
    %2554 = vmatpush.msra.mxu0 0.0
    %2555 = vmatpush.msra.mxu0 0.0
    %2556 = vmatpush.msra.mxu0 %v2539
    %2557 = vmatmul.f32.gmra.mxu0 %v2250
    %v2558 = vpop.f32.mrf.mxu0
    %v2559 = vadd.f32 0.0, %v2558
    %2560 = vmatmul.f32.gmra.mxu0 %v2253
    %v2561 = vpop.f32.mrf.mxu0
    %v2562 = vadd.f32 0.0, %v2561
    %2563 = vmatmul.f32.gmra.mxu0 %v2256
    %v2564 = vpop.f32.mrf.mxu0
    %v2565 = vadd.f32 0.0, %v2564
    %2566 = vdwg.mxu0
    %s2567 = scalar_lea.vmem %s33, 144
    %v2568 = vld [vmem:[%s2567] sm:$0xff]
    %v2569 = vld [vmem:[%s2567 + $0x8] sm:$0xff]
    %v2570 = vld [vmem:[%s2567 + $0x10] sm:$0xff]
    %v2571 = vld [vmem:[%s2567 + $0x18] sm:$0xff]
    %v2572 = vld [vmem:[%s2567 + $0x20] sm:$0xff]
    %v2573 = vld [vmem:[%s2567 + $0x28] sm:$0xff]
    %v2575 = vsel %vm2332, %v2568, 0
    %v2578 = vsel %vm2332, %v2569, 0
    %v2581 = vsel %vm2332, %v2570, 0
    %v2584 = vsel %vm2332, %v2571, 0
    %v2587 = vsel %vm2332, %v2572, 0
    %v2590 = vsel %vm2332, %v2573, 0
    %2592 = vmatpush.msra.mxu0 0.0
    %2593 = vmatpush.msra.mxu0 0.0
    %2594 = vmatpush.msra.mxu0 0.0
    %2595 = vmatpush.msra.mxu0 0.0
    %2596 = vmatpush.msra.mxu0 0.0
    %2597 = vmatpush.msra.mxu0 0.0
    %2598 = vmatpush.msra.mxu0 0.0
    %2599 = vmatpush.msra.mxu0 0.0
    %2600 = vmatpush.msra.mxu0 0.0
    %2601 = vmatpush.msra.mxu0 0.0
    %2602 = vmatpush.msra.mxu0 0.0
    %2603 = vmatpush.msra.mxu0 0.0
    %2604 = vmatpush.msra.mxu0 0.0
    %2605 = vmatpush.msra.mxu0 %v2565
    %2606 = vmatpush.msra.mxu0 %v2562
    %2607 = vmatpush.msra.mxu0 %v2559
    %2608 = vmatmul.f32.gmra.mxu0 %v2575
    %v2609 = vpop.f32.mrf.mxu0
    %v2610 = vadd.f32 0.0, %v2609
    %2611 = vmatmul.f32.gmra.mxu0 %v2578
    %v2612 = vpop.f32.mrf.mxu0
    %v2613 = vadd.f32 0.0, %v2612
    %2614 = vmatmul.f32.gmra.mxu0 %v2581
    %v2615 = vpop.f32.mrf.mxu0
    %v2616 = vadd.f32 0.0, %v2615
    %2617 = vmatmul.f32.gmra.mxu0 %v2584
    %v2618 = vpop.f32.mrf.mxu0
    %v2619 = vadd.f32 0.0, %v2618
    %2620 = vmatmul.f32.gmra.mxu0 %v2587
    %v2621 = vpop.f32.mrf.mxu0
    %v2622 = vadd.f32 0.0, %v2621
    %2623 = vmatmul.f32.gmra.mxu0 %v2590
    %v2624 = vpop.f32.mrf.mxu0
    %v2625 = vadd.f32 0.0, %v2624
    %2626 = vdwg.mxu0
    %v2627 = vadd.f32 %v2530, %v2610
    %v2628 = vadd.f32 %v2531, %v2613
    %v2629 = vadd.f32 %v2532, %v2616
    %v2630 = vadd.f32 %v2533, %v2619
    %v2631 = vadd.f32 %v2534, %v2622
    %v2632 = vadd.f32 %v2535, %v2625
    %v2633 = vld [vmem:[%s37] sm:$0xff]
    %v2634 = vld [vmem:[%s37 + $0x8] sm:$0xff]
    %v2635 = vld [vmem:[%s37 + $0x10] sm:$0xff]
    %v2636 = vld [vmem:[%s37 + $0x18] sm:$0xff]
    %v2637 = vld [vmem:[%s37 + $0x20] sm:$0xff]
    %v2638 = vld [vmem:[%s37 + $0x28] sm:$0xff]
    %2640 = vset.pattern.permute.xlu0 0
    %2641 = vperm.xlu0 %2640, %v2633
    %v2642 = vpop.permute.xlu0 %2641
    %2645 = vset.pattern.permute.xlu0 0
    %2646 = vperm.xlu0 %2645, %v2634
    %v2647 = vpop.permute.xlu0 %2646
    %2650 = vset.pattern.permute.xlu0 0
    %2651 = vperm.xlu0 %2650, %v2635
    %v2652 = vpop.permute.xlu0 %2651
    %2655 = vset.pattern.permute.xlu0 0
    %2656 = vperm.xlu0 %2655, %v2636
    %v2657 = vpop.permute.xlu0 %2656
    %2660 = vset.pattern.permute.xlu0 0
    %2661 = vperm.xlu0 %2660, %v2637
    %v2662 = vpop.permute.xlu0 %2661
    %2665 = vset.pattern.permute.xlu0 0
    %2666 = vperm.xlu0 %2665, %v2638
    %v2667 = vpop.permute.xlu0 %2666
    %v2669 = vadd.f32 %v2627, %v2642
    %v2670 = vadd.f32 %v2628, %v2647
    %v2671 = vadd.f32 %v2629, %v2652
    %v2672 = vadd.f32 %v2630, %v2657
    %v2673 = vadd.f32 %v2631, %v2662
    %v2674 = vadd.f32 %v2632, %v2667
    %v2675 = vmax.f32 %v2669, 0.0
    %v2676 = vmax.f32 %v2670, 0.0
    %v2677 = vmax.f32 %v2671, 0.0
    %v2678 = vmax.f32 %v2672, 0.0
    %v2679 = vmax.f32 %v2673, 0.0
    %v2680 = vmax.f32 %v2674, 0.0
    %v2681 = vld [vmem:[%s41] sm:$0xf]
    %v2683 = vsel %vm1966, %v2675, 0
    %v2686 = vsel %vm1966, %v2676, 0
    %v2689 = vsel %vm1966, %v2677, 0
    %v2692 = vsel %vm1966, %v2678, 0
    %v2695 = vsel %vm1966, %v2679, 0
    %v2698 = vsel %vm1966, %v2680, 0
    %v2701 = vsel %vm1985, %v2681, 0
    %2703 = vmatpush.msra.mxu0 0.0
    %2704 = vmatpush.msra.mxu0 0.0
    %2705 = vmatpush.msra.mxu0 0.0
    %2706 = vmatpush.msra.mxu0 0.0
    %2707 = vmatpush.msra.mxu0 0.0
    %2708 = vmatpush.msra.mxu0 0.0
    %2709 = vmatpush.msra.mxu0 0.0
    %2710 = vmatpush.msra.mxu0 0.0
    %2711 = vmatpush.msra.mxu0 0.0
    %2712 = vmatpush.msra.mxu0 0.0
    %2713 = vmatpush.msra.mxu0 0.0
    %2714 = vmatpush.msra.mxu0 0.0
    %2715 = vmatpush.msra.mxu0 0.0
    %2716 = vmatpush.msra.mxu0 0.0
    %2717 = vmatpush.msra.mxu0 0.0
    %2718 = vmatpush.msra.mxu0 %v2701
    %2719 = vmatmul.f32.gmra.mxu0 %v2683
    %v2720 = vpop.f32.mrf.mxu0
    %v2721 = vadd.f32 0.0, %v2720
    %2722 = vmatmul.f32.gmra.mxu0 %v2686
    %v2723 = vpop.f32.mrf.mxu0
    %v2724 = vadd.f32 0.0, %v2723
    %2725 = vmatmul.f32.gmra.mxu0 %v2689
    %v2726 = vpop.f32.mrf.mxu0
    %v2727 = vadd.f32 0.0, %v2726
    %2728 = vmatmul.f32.gmra.mxu0 %v2692
    %v2729 = vpop.f32.mrf.mxu0
    %v2730 = vadd.f32 0.0, %v2729
    %2731 = vmatmul.f32.gmra.mxu0 %v2695
    %v2732 = vpop.f32.mrf.mxu0
    %v2733 = vadd.f32 0.0, %v2732
    %2734 = vmatmul.f32.gmra.mxu0 %v2698
    %v2735 = vpop.f32.mrf.mxu0
    %v2736 = vadd.f32 0.0, %v2735
    %2737 = vdwg.mxu0
    %v2738 = vld [vmem:[%s39] sm:$0xff]
    %v2739 = vld [vmem:[%s39 + $0x8] sm:$0xff]
    %v2740 = vld [vmem:[%s39 + $0x10] sm:$0xff]
    %v2741 = vld [vmem:[%s39 + $0x18] sm:$0xff]
    %v2742 = vld [vmem:[%s39 + $0x20] sm:$0xff]
    %v2743 = vld [vmem:[%s39 + $0x28] sm:$0xff]
    %s2744 = scalar_lea.vmem %s41, 4
    %v2745 = vld [vmem:[%s2744] sm:$0xf]
    %v2747 = vsel %vm1985, %v2745, 0
    %2749 = vmatpush.msra.mxu0 0.0
    %2750 = vmatpush.msra.mxu0 0.0
    %2751 = vmatpush.msra.mxu0 0.0
    %2752 = vmatpush.msra.mxu0 0.0
    %2753 = vmatpush.msra.mxu0 0.0
    %2754 = vmatpush.msra.mxu0 0.0
    %2755 = vmatpush.msra.mxu0 0.0
    %2756 = vmatpush.msra.mxu0 0.0
    %2757 = vmatpush.msra.mxu0 0.0
    %2758 = vmatpush.msra.mxu0 0.0
    %2759 = vmatpush.msra.mxu0 0.0
    %2760 = vmatpush.msra.mxu0 0.0
    %2761 = vmatpush.msra.mxu0 0.0
    %2762 = vmatpush.msra.mxu0 0.0
    %2763 = vmatpush.msra.mxu0 0.0
    %2764 = vmatpush.msra.mxu0 %v2747
    %2765 = vmatmul.f32.gmra.mxu0 %v2683
    %v2766 = vpop.f32.mrf.mxu0
    %v2767 = vadd.f32 0.0, %v2766
    %2768 = vmatmul.f32.gmra.mxu0 %v2686
    %v2769 = vpop.f32.mrf.mxu0
    %v2770 = vadd.f32 0.0, %v2769
    %2771 = vmatmul.f32.gmra.mxu0 %v2689
    %v2772 = vpop.f32.mrf.mxu0
    %v2773 = vadd.f32 0.0, %v2772
    %2774 = vmatmul.f32.gmra.mxu0 %v2692
    %v2775 = vpop.f32.mrf.mxu0
    %v2776 = vadd.f32 0.0, %v2775
    %2777 = vmatmul.f32.gmra.mxu0 %v2695
    %v2778 = vpop.f32.mrf.mxu0
    %v2779 = vadd.f32 0.0, %v2778
    %2780 = vmatmul.f32.gmra.mxu0 %v2698
    %v2781 = vpop.f32.mrf.mxu0
    %v2782 = vadd.f32 0.0, %v2781
    %2783 = vdwg.mxu0
    %s2784 = scalar_lea.vmem %s39, 48
    %v2785 = vld [vmem:[%s2784] sm:$0xff]
    %v2786 = vld [vmem:[%s2784 + $0x8] sm:$0xff]
    %v2787 = vld [vmem:[%s2784 + $0x10] sm:$0xff]
    %v2788 = vld [vmem:[%s2784 + $0x18] sm:$0xff]
    %v2789 = vld [vmem:[%s2784 + $0x20] sm:$0xff]
    %v2790 = vld [vmem:[%s2784 + $0x28] sm:$0xff]
    %v2792 = vsel %vm1344, %v2785, 0
    %v2795 = vsel %vm1344, %v2786, 0
    %v2798 = vsel %vm1344, %v2787, 0
    %v2801 = vsel %vm1344, %v2788, 0
    %v2804 = vsel %vm1344, %v2789, 0
    %v2807 = vsel %vm1344, %v2790, 0
    %2809 = vmatpush.msra.mxu0 0.0
    %2810 = vmatpush.msra.mxu0 0.0
    %2811 = vmatpush.msra.mxu0 0.0
    %2812 = vmatpush.msra.mxu0 0.0
    %2813 = vmatpush.msra.mxu0 0.0
    %2814 = vmatpush.msra.mxu0 0.0
    %2815 = vmatpush.msra.mxu0 0.0
    %2816 = vmatpush.msra.mxu0 0.0
    %2817 = vmatpush.msra.mxu0 0.0
    %2818 = vmatpush.msra.mxu0 0.0
    %2819 = vmatpush.msra.mxu0 %v2782
    %2820 = vmatpush.msra.mxu0 %v2779
    %2821 = vmatpush.msra.mxu0 %v2776
    %2822 = vmatpush.msra.mxu0 %v2773
    %2823 = vmatpush.msra.mxu0 %v2770
    %2824 = vmatpush.msra.mxu0 %v2767
    %2825 = vmatmul.f32.gmra.mxu0 %v2792
    %v2826 = vpop.f32.mrf.mxu0
    %v2827 = vadd.f32 0.0, %v2826
    %2828 = vmatmul.f32.gmra.mxu0 %v2795
    %v2829 = vpop.f32.mrf.mxu0
    %v2830 = vadd.f32 0.0, %v2829
    %2831 = vmatmul.f32.gmra.mxu0 %v2798
    %v2832 = vpop.f32.mrf.mxu0
    %v2833 = vadd.f32 0.0, %v2832
    %2834 = vmatmul.f32.gmra.mxu0 %v2801
    %v2835 = vpop.f32.mrf.mxu0
    %v2836 = vadd.f32 0.0, %v2835
    %2837 = vmatmul.f32.gmra.mxu0 %v2804
    %v2838 = vpop.f32.mrf.mxu0
    %v2839 = vadd.f32 0.0, %v2838
    %2840 = vmatmul.f32.gmra.mxu0 %v2807
    %v2841 = vpop.f32.mrf.mxu0
    %v2842 = vadd.f32 0.0, %v2841
    %2843 = vdwg.mxu0
    %v2845 = vsel %vm1344, %v2738, 0
    %v2848 = vsel %vm1344, %v2739, 0
    %v2851 = vsel %vm1344, %v2740, 0
    %v2854 = vsel %vm1344, %v2741, 0
    %v2857 = vsel %vm1344, %v2742, 0
    %v2860 = vsel %vm1344, %v2743, 0
    %2862 = vmatpush.msra.mxu0 0.0
    %2863 = vmatpush.msra.mxu0 0.0
    %2864 = vmatpush.msra.mxu0 0.0
    %2865 = vmatpush.msra.mxu0 0.0
    %2866 = vmatpush.msra.mxu0 0.0
    %2867 = vmatpush.msra.mxu0 0.0
    %2868 = vmatpush.msra.mxu0 0.0
    %2869 = vmatpush.msra.mxu0 0.0
    %2870 = vmatpush.msra.mxu0 0.0
    %2871 = vmatpush.msra.mxu0 0.0
    %2872 = vmatpush.msra.mxu0 %v2736
    %2873 = vmatpush.msra.mxu0 %v2733
    %2874 = vmatpush.msra.mxu0 %v2730
    %2875 = vmatpush.msra.mxu0 %v2727
    %2876 = vmatpush.msra.mxu0 %v2724
    %2877 = vmatpush.msra.mxu0 %v2721
    %2878 = vmatmul.f32.gmra.mxu0 %v2845
    %v2879 = vpop.f32.mrf.mxu0
    %v2880 = vadd.f32 %v2827, %v2879
    %2881 = vmatmul.f32.gmra.mxu0 %v2848
    %v2882 = vpop.f32.mrf.mxu0
    %v2883 = vadd.f32 %v2830, %v2882
    %2884 = vmatmul.f32.gmra.mxu0 %v2851
    %v2885 = vpop.f32.mrf.mxu0
    %v2886 = vadd.f32 %v2833, %v2885
    %2887 = vmatmul.f32.gmra.mxu0 %v2854
    %v2888 = vpop.f32.mrf.mxu0
    %v2889 = vadd.f32 %v2836, %v2888
    %2890 = vmatmul.f32.gmra.mxu0 %v2857
    %v2891 = vpop.f32.mrf.mxu0
    %v2892 = vadd.f32 %v2839, %v2891
    %2893 = vmatmul.f32.gmra.mxu0 %v2860
    %v2894 = vpop.f32.mrf.mxu0
    %v2895 = vadd.f32 %v2842, %v2894
    %2896 = vdwg.mxu0
    %s2897 = scalar_lea.vmem %s41, 8
    %v2898 = vld [vmem:[%s2897] sm:$0xf]
    %v2900 = vsel %vm1985, %v2898, 0
    %2902 = vmatpush.msra.mxu0 0.0
    %2903 = vmatpush.msra.mxu0 0.0
    %2904 = vmatpush.msra.mxu0 0.0
    %2905 = vmatpush.msra.mxu0 0.0
    %2906 = vmatpush.msra.mxu0 0.0
    %2907 = vmatpush.msra.mxu0 0.0
    %2908 = vmatpush.msra.mxu0 0.0
    %2909 = vmatpush.msra.mxu0 0.0
    %2910 = vmatpush.msra.mxu0 0.0
    %2911 = vmatpush.msra.mxu0 0.0
    %2912 = vmatpush.msra.mxu0 0.0
    %2913 = vmatpush.msra.mxu0 0.0
    %2914 = vmatpush.msra.mxu0 0.0
    %2915 = vmatpush.msra.mxu0 0.0
    %2916 = vmatpush.msra.mxu0 0.0
    %2917 = vmatpush.msra.mxu0 %v2900
    %2918 = vmatmul.f32.gmra.mxu0 %v2683
    %v2919 = vpop.f32.mrf.mxu0
    %v2920 = vadd.f32 0.0, %v2919
    %2921 = vmatmul.f32.gmra.mxu0 %v2686
    %v2922 = vpop.f32.mrf.mxu0
    %v2923 = vadd.f32 0.0, %v2922
    %2924 = vmatmul.f32.gmra.mxu0 %v2689
    %v2925 = vpop.f32.mrf.mxu0
    %v2926 = vadd.f32 0.0, %v2925
    %2927 = vmatmul.f32.gmra.mxu0 %v2692
    %v2928 = vpop.f32.mrf.mxu0
    %v2929 = vadd.f32 0.0, %v2928
    %2930 = vmatmul.f32.gmra.mxu0 %v2695
    %v2931 = vpop.f32.mrf.mxu0
    %v2932 = vadd.f32 0.0, %v2931
    %2933 = vmatmul.f32.gmra.mxu0 %v2698
    %v2934 = vpop.f32.mrf.mxu0
    %v2935 = vadd.f32 0.0, %v2934
    %2936 = vdwg.mxu0
    %s2937 = scalar_lea.vmem %s39, 96
    %v2938 = vld [vmem:[%s2937] sm:$0xff]
    %v2939 = vld [vmem:[%s2937 + $0x8] sm:$0xff]
    %v2940 = vld [vmem:[%s2937 + $0x10] sm:$0xff]
    %v2941 = vld [vmem:[%s2937 + $0x18] sm:$0xff]
    %v2942 = vld [vmem:[%s2937 + $0x20] sm:$0xff]
    %v2943 = vld [vmem:[%s2937 + $0x28] sm:$0xff]
    %v2945 = vsel %vm1344, %v2938, 0
    %v2948 = vsel %vm1344, %v2939, 0
    %v2951 = vsel %vm1344, %v2940, 0
    %v2954 = vsel %vm1344, %v2941, 0
    %v2957 = vsel %vm1344, %v2942, 0
    %v2960 = vsel %vm1344, %v2943, 0
    %2962 = vmatpush.msra.mxu0 0.0
    %2963 = vmatpush.msra.mxu0 0.0
    %2964 = vmatpush.msra.mxu0 0.0
    %2965 = vmatpush.msra.mxu0 0.0
    %2966 = vmatpush.msra.mxu0 0.0
    %2967 = vmatpush.msra.mxu0 0.0
    %2968 = vmatpush.msra.mxu0 0.0
    %2969 = vmatpush.msra.mxu0 0.0
    %2970 = vmatpush.msra.mxu0 0.0
    %2971 = vmatpush.msra.mxu0 0.0
    %2972 = vmatpush.msra.mxu0 %v2935
    %2973 = vmatpush.msra.mxu0 %v2932
    %2974 = vmatpush.msra.mxu0 %v2929
    %2975 = vmatpush.msra.mxu0 %v2926
    %2976 = vmatpush.msra.mxu0 %v2923
    %2977 = vmatpush.msra.mxu0 %v2920
    %2978 = vmatmul.f32.gmra.mxu0 %v2945
    %v2979 = vpop.f32.mrf.mxu0
    %v2980 = vadd.f32 0.0, %v2979
    %2981 = vmatmul.f32.gmra.mxu0 %v2948
    %v2982 = vpop.f32.mrf.mxu0
    %v2983 = vadd.f32 0.0, %v2982
    %2984 = vmatmul.f32.gmra.mxu0 %v2951
    %v2985 = vpop.f32.mrf.mxu0
    %v2986 = vadd.f32 0.0, %v2985
    %2987 = vmatmul.f32.gmra.mxu0 %v2954
    %v2988 = vpop.f32.mrf.mxu0
    %v2989 = vadd.f32 0.0, %v2988
    %2990 = vmatmul.f32.gmra.mxu0 %v2957
    %v2991 = vpop.f32.mrf.mxu0
    %v2992 = vadd.f32 0.0, %v2991
    %2993 = vmatmul.f32.gmra.mxu0 %v2960
    %v2994 = vpop.f32.mrf.mxu0
    %v2995 = vadd.f32 0.0, %v2994
    %2996 = vdwg.mxu0
    %v2997 = vadd.f32 %v2880, %v2980
    %v2998 = vadd.f32 %v2883, %v2983
    %v2999 = vadd.f32 %v2886, %v2986
    %v3000 = vadd.f32 %v2889, %v2989
    %v3001 = vadd.f32 %v2892, %v2992
    %v3002 = vadd.f32 %v2895, %v2995
    %s3003 = scalar_lea.vmem %s41, 12
    %v3004 = vld [vmem:[%s3003] sm:$0xf]
    %v3006 = vsel %vm1985, %v3004, 0
    %3008 = vmatpush.msra.mxu0 0.0
    %3009 = vmatpush.msra.mxu0 0.0
    %3010 = vmatpush.msra.mxu0 0.0
    %3011 = vmatpush.msra.mxu0 0.0
    %3012 = vmatpush.msra.mxu0 0.0
    %3013 = vmatpush.msra.mxu0 0.0
    %3014 = vmatpush.msra.mxu0 0.0
    %3015 = vmatpush.msra.mxu0 0.0
    %3016 = vmatpush.msra.mxu0 0.0
    %3017 = vmatpush.msra.mxu0 0.0
    %3018 = vmatpush.msra.mxu0 0.0
    %3019 = vmatpush.msra.mxu0 0.0
    %3020 = vmatpush.msra.mxu0 0.0
    %3021 = vmatpush.msra.mxu0 0.0
    %3022 = vmatpush.msra.mxu0 0.0
    %3023 = vmatpush.msra.mxu0 %v3006
    %3024 = vmatmul.f32.gmra.mxu0 %v2683
    %v3025 = vpop.f32.mrf.mxu0
    %v3026 = vadd.f32 0.0, %v3025
    %3027 = vmatmul.f32.gmra.mxu0 %v2686
    %v3028 = vpop.f32.mrf.mxu0
    %v3029 = vadd.f32 0.0, %v3028
    %3030 = vmatmul.f32.gmra.mxu0 %v2689
    %v3031 = vpop.f32.mrf.mxu0
    %v3032 = vadd.f32 0.0, %v3031
    %3033 = vmatmul.f32.gmra.mxu0 %v2692
    %v3034 = vpop.f32.mrf.mxu0
    %v3035 = vadd.f32 0.0, %v3034
    %3036 = vmatmul.f32.gmra.mxu0 %v2695
    %v3037 = vpop.f32.mrf.mxu0
    %v3038 = vadd.f32 0.0, %v3037
    %3039 = vmatmul.f32.gmra.mxu0 %v2698
    %v3040 = vpop.f32.mrf.mxu0
    %v3041 = vadd.f32 0.0, %v3040
    %3042 = vdwg.mxu0
    %s3043 = scalar_lea.vmem %s39, 144
    %v3044 = vld [vmem:[%s3043] sm:$0xff]
    %v3045 = vld [vmem:[%s3043 + $0x8] sm:$0xff]
    %v3046 = vld [vmem:[%s3043 + $0x10] sm:$0xff]
    %v3047 = vld [vmem:[%s3043 + $0x18] sm:$0xff]
    %v3048 = vld [vmem:[%s3043 + $0x20] sm:$0xff]
    %v3049 = vld [vmem:[%s3043 + $0x28] sm:$0xff]
    %v3051 = vsel %vm1344, %v3044, 0
    %v3054 = vsel %vm1344, %v3045, 0
    %v3057 = vsel %vm1344, %v3046, 0
    %v3060 = vsel %vm1344, %v3047, 0
    %v3063 = vsel %vm1344, %v3048, 0
    %v3066 = vsel %vm1344, %v3049, 0
    %3068 = vmatpush.msra.mxu0 0.0
    %3069 = vmatpush.msra.mxu0 0.0
    %3070 = vmatpush.msra.mxu0 0.0
    %3071 = vmatpush.msra.mxu0 0.0
    %3072 = vmatpush.msra.mxu0 0.0
    %3073 = vmatpush.msra.mxu0 0.0
    %3074 = vmatpush.msra.mxu0 0.0
    %3075 = vmatpush.msra.mxu0 0.0
    %3076 = vmatpush.msra.mxu0 0.0
    %3077 = vmatpush.msra.mxu0 0.0
    %3078 = vmatpush.msra.mxu0 %v3041
    %3079 = vmatpush.msra.mxu0 %v3038
    %3080 = vmatpush.msra.mxu0 %v3035
    %3081 = vmatpush.msra.mxu0 %v3032
    %3082 = vmatpush.msra.mxu0 %v3029
    %3083 = vmatpush.msra.mxu0 %v3026
    %3084 = vmatmul.f32.gmra.mxu0 %v3051
    %v3085 = vpop.f32.mrf.mxu0
    %v3086 = vadd.f32 0.0, %v3085
    %3087 = vmatmul.f32.gmra.mxu0 %v3054
    %v3088 = vpop.f32.mrf.mxu0
    %v3089 = vadd.f32 0.0, %v3088
    %3090 = vmatmul.f32.gmra.mxu0 %v3057
    %v3091 = vpop.f32.mrf.mxu0
    %v3092 = vadd.f32 0.0, %v3091
    %3093 = vmatmul.f32.gmra.mxu0 %v3060
    %v3094 = vpop.f32.mrf.mxu0
    %v3095 = vadd.f32 0.0, %v3094
    %3096 = vmatmul.f32.gmra.mxu0 %v3063
    %v3097 = vpop.f32.mrf.mxu0
    %v3098 = vadd.f32 0.0, %v3097
    %3099 = vmatmul.f32.gmra.mxu0 %v3066
    %v3100 = vpop.f32.mrf.mxu0
    %v3101 = vadd.f32 0.0, %v3100
    %3102 = vdwg.mxu0
    %v3103 = vadd.f32 %v2997, %v3086
    %v3104 = vadd.f32 %v2998, %v3089
    %v3105 = vadd.f32 %v2999, %v3092
    %v3106 = vadd.f32 %v3000, %v3095
    %v3107 = vadd.f32 %v3001, %v3098
    %v3108 = vadd.f32 %v3002, %v3101
    %v3109 = vld [vmem:[%s43] sm:$0xff]
    %v3110 = vld [vmem:[%s43 + $0x8] sm:$0xff]
    %v3111 = vld [vmem:[%s43 + $0x10] sm:$0xff]
    %v3112 = vld [vmem:[%s43 + $0x18] sm:$0xff]
    %v3113 = vld [vmem:[%s43 + $0x20] sm:$0xff]
    %v3114 = vld [vmem:[%s43 + $0x28] sm:$0xff]
    %3116 = vset.pattern.permute.xlu0 0
    %3117 = vperm.xlu0 %3116, %v3109
    %v3118 = vpop.permute.xlu0 %3117
    %3121 = vset.pattern.permute.xlu0 0
    %3122 = vperm.xlu0 %3121, %v3110
    %v3123 = vpop.permute.xlu0 %3122
    %3126 = vset.pattern.permute.xlu0 0
    %3127 = vperm.xlu0 %3126, %v3111
    %v3128 = vpop.permute.xlu0 %3127
    %3131 = vset.pattern.permute.xlu0 0
    %3132 = vperm.xlu0 %3131, %v3112
    %v3133 = vpop.permute.xlu0 %3132
    %3136 = vset.pattern.permute.xlu0 0
    %3137 = vperm.xlu0 %3136, %v3113
    %v3138 = vpop.permute.xlu0 %3137
    %3141 = vset.pattern.permute.xlu0 0
    %3142 = vperm.xlu0 %3141, %v3114
    %v3143 = vpop.permute.xlu0 %3142
    %v3145 = vadd.f32 %v3103, %v3118
    %v3146 = vadd.f32 %v3104, %v3123
    %v3147 = vadd.f32 %v3105, %v3128
    %v3148 = vadd.f32 %v3106, %v3133
    %v3149 = vadd.f32 %v3107, %v3138
    %v3150 = vadd.f32 %v3108, %v3143
    %v3151 = vmax.f32 %v3145, 0.0
    %v3152 = vmax.f32 %v3146, 0.0
    %v3153 = vmax.f32 %v3147, 0.0
    %v3154 = vmax.f32 %v3148, 0.0
    %v3155 = vmax.f32 %v3149, 0.0
    %v3156 = vmax.f32 %v3150, 0.0
    %v3157 = vld [vmem:[%s47] sm:$0xff]
    %v3159 = vsel %vm1604, %v3151, 0
    %v3162 = vsel %vm1604, %v3152, 0
    %v3165 = vsel %vm1604, %v3153, 0
    %v3168 = vsel %vm1604, %v3154, 0
    %v3171 = vsel %vm1604, %v3155, 0
    %v3174 = vsel %vm1604, %v3156, 0
    %3176 = vmatpush.msra.mxu0 0.0
    %3177 = vmatpush.msra.mxu0 0.0
    %3178 = vmatpush.msra.mxu0 0.0
    %3179 = vmatpush.msra.mxu0 0.0
    %3180 = vmatpush.msra.mxu0 0.0
    %3181 = vmatpush.msra.mxu0 0.0
    %3182 = vmatpush.msra.mxu0 0.0
    %3183 = vmatpush.msra.mxu0 0.0
    %3184 = vmatpush.msra.mxu0 0.0
    %3185 = vmatpush.msra.mxu0 0.0
    %3186 = vmatpush.msra.mxu0 0.0
    %3187 = vmatpush.msra.mxu0 0.0
    %3188 = vmatpush.msra.mxu0 0.0
    %3189 = vmatpush.msra.mxu0 0.0
    %3190 = vmatpush.msra.mxu0 0.0
    %3191 = vmatpush.msra.mxu0 %v3157
    %3192 = vmatmul.f32.gmra.mxu0 %v3159
    %v3193 = vpop.f32.mrf.mxu0
    %v3194 = vadd.f32 0.0, %v3193
    %3195 = vmatmul.f32.gmra.mxu0 %v3162
    %v3196 = vpop.f32.mrf.mxu0
    %v3197 = vadd.f32 0.0, %v3196
    %3198 = vmatmul.f32.gmra.mxu0 %v3165
    %v3199 = vpop.f32.mrf.mxu0
    %v3200 = vadd.f32 0.0, %v3199
    %3201 = vmatmul.f32.gmra.mxu0 %v3168
    %v3202 = vpop.f32.mrf.mxu0
    %v3203 = vadd.f32 0.0, %v3202
    %3204 = vmatmul.f32.gmra.mxu0 %v3171
    %v3205 = vpop.f32.mrf.mxu0
    %v3206 = vadd.f32 0.0, %v3205
    %3207 = vmatmul.f32.gmra.mxu0 %v3174
    %v3208 = vpop.f32.mrf.mxu0
    %v3209 = vadd.f32 0.0, %v3208
    %3210 = vdwg.mxu0
    %v3211 = vld [vmem:[%s45] sm:$0xff]
    %v3212 = vld [vmem:[%s45 + $0x8] sm:$0xff]
    %v3213 = vld [vmem:[%s45 + $0x10] sm:$0xff]
    %v3214 = vld [vmem:[%s45 + $0x18] sm:$0xff]
    %v3215 = vld [vmem:[%s45 + $0x20] sm:$0xff]
    %v3216 = vld [vmem:[%s45 + $0x28] sm:$0xff]
    %s3217 = scalar_lea.vmem %s47, 8
    %v3218 = vld [vmem:[%s3217] sm:$0xff]
    %3219 = vmatpush.msra.mxu0 0.0
    %3220 = vmatpush.msra.mxu0 0.0
    %3221 = vmatpush.msra.mxu0 0.0
    %3222 = vmatpush.msra.mxu0 0.0
    %3223 = vmatpush.msra.mxu0 0.0
    %3224 = vmatpush.msra.mxu0 0.0
    %3225 = vmatpush.msra.mxu0 0.0
    %3226 = vmatpush.msra.mxu0 0.0
    %3227 = vmatpush.msra.mxu0 0.0
    %3228 = vmatpush.msra.mxu0 0.0
    %3229 = vmatpush.msra.mxu0 0.0
    %3230 = vmatpush.msra.mxu0 0.0
    %3231 = vmatpush.msra.mxu0 0.0
    %3232 = vmatpush.msra.mxu0 0.0
    %3233 = vmatpush.msra.mxu0 0.0
    %3234 = vmatpush.msra.mxu0 %v3218
    %3235 = vmatmul.f32.gmra.mxu0 %v3159
    %v3236 = vpop.f32.mrf.mxu0
    %v3237 = vadd.f32 0.0, %v3236
    %3238 = vmatmul.f32.gmra.mxu0 %v3162
    %v3239 = vpop.f32.mrf.mxu0
    %v3240 = vadd.f32 0.0, %v3239
    %3241 = vmatmul.f32.gmra.mxu0 %v3165
    %v3242 = vpop.f32.mrf.mxu0
    %v3243 = vadd.f32 0.0, %v3242
    %3244 = vmatmul.f32.gmra.mxu0 %v3168
    %v3245 = vpop.f32.mrf.mxu0
    %v3246 = vadd.f32 0.0, %v3245
    %3247 = vmatmul.f32.gmra.mxu0 %v3171
    %v3248 = vpop.f32.mrf.mxu0
    %v3249 = vadd.f32 0.0, %v3248
    %3250 = vmatmul.f32.gmra.mxu0 %v3174
    %v3251 = vpop.f32.mrf.mxu0
    %v3252 = vadd.f32 0.0, %v3251
    %3253 = vdwg.mxu0
    %s3254 = scalar_lea.vmem %s45, 48
    %v3255 = vld [vmem:[%s3254] sm:$0xff]
    %v3256 = vld [vmem:[%s3254 + $0x8] sm:$0xff]
    %v3257 = vld [vmem:[%s3254 + $0x10] sm:$0xff]
    %v3258 = vld [vmem:[%s3254 + $0x18] sm:$0xff]
    %v3259 = vld [vmem:[%s3254 + $0x20] sm:$0xff]
    %v3260 = vld [vmem:[%s3254 + $0x28] sm:$0xff]
    %v3262 = vsel %vm1344, %v3255, 0
    %v3265 = vsel %vm1344, %v3256, 0
    %v3268 = vsel %vm1344, %v3257, 0
    %v3271 = vsel %vm1344, %v3258, 0
    %v3274 = vsel %vm1344, %v3259, 0
    %v3277 = vsel %vm1344, %v3260, 0
    %3279 = vmatpush.msra.mxu0 0.0
    %3280 = vmatpush.msra.mxu0 0.0
    %3281 = vmatpush.msra.mxu0 0.0
    %3282 = vmatpush.msra.mxu0 0.0
    %3283 = vmatpush.msra.mxu0 0.0
    %3284 = vmatpush.msra.mxu0 0.0
    %3285 = vmatpush.msra.mxu0 0.0
    %3286 = vmatpush.msra.mxu0 0.0
    %3287 = vmatpush.msra.mxu0 0.0
    %3288 = vmatpush.msra.mxu0 0.0
    %3289 = vmatpush.msra.mxu0 %v3252
    %3290 = vmatpush.msra.mxu0 %v3249
    %3291 = vmatpush.msra.mxu0 %v3246
    %3292 = vmatpush.msra.mxu0 %v3243
    %3293 = vmatpush.msra.mxu0 %v3240
    %3294 = vmatpush.msra.mxu0 %v3237
    %3295 = vmatmul.f32.gmra.mxu0 %v3262
    %v3296 = vpop.f32.mrf.mxu0
    %v3297 = vadd.f32 0.0, %v3296
    %3298 = vmatmul.f32.gmra.mxu0 %v3265
    %v3299 = vpop.f32.mrf.mxu0
    %v3300 = vadd.f32 0.0, %v3299
    %3301 = vmatmul.f32.gmra.mxu0 %v3268
    %v3302 = vpop.f32.mrf.mxu0
    %v3303 = vadd.f32 0.0, %v3302
    %3304 = vmatmul.f32.gmra.mxu0 %v3271
    %v3305 = vpop.f32.mrf.mxu0
    %v3306 = vadd.f32 0.0, %v3305
    %3307 = vmatmul.f32.gmra.mxu0 %v3274
    %v3308 = vpop.f32.mrf.mxu0
    %v3309 = vadd.f32 0.0, %v3308
    %3310 = vmatmul.f32.gmra.mxu0 %v3277
    %v3311 = vpop.f32.mrf.mxu0
    %v3312 = vadd.f32 0.0, %v3311
    %3313 = vdwg.mxu0
    %v3315 = vsel %vm1344, %v3211, 0
    %v3318 = vsel %vm1344, %v3212, 0
    %v3321 = vsel %vm1344, %v3213, 0
    %v3324 = vsel %vm1344, %v3214, 0
    %v3327 = vsel %vm1344, %v3215, 0
    %v3330 = vsel %vm1344, %v3216, 0
    %3332 = vmatpush.msra.mxu0 0.0
    %3333 = vmatpush.msra.mxu0 0.0
    %3334 = vmatpush.msra.mxu0 0.0
    %3335 = vmatpush.msra.mxu0 0.0
    %3336 = vmatpush.msra.mxu0 0.0
    %3337 = vmatpush.msra.mxu0 0.0
    %3338 = vmatpush.msra.mxu0 0.0
    %3339 = vmatpush.msra.mxu0 0.0
    %3340 = vmatpush.msra.mxu0 0.0
    %3341 = vmatpush.msra.mxu0 0.0
    %3342 = vmatpush.msra.mxu0 %v3209
    %3343 = vmatpush.msra.mxu0 %v3206
    %3344 = vmatpush.msra.mxu0 %v3203
    %3345 = vmatpush.msra.mxu0 %v3200
    %3346 = vmatpush.msra.mxu0 %v3197
    %3347 = vmatpush.msra.mxu0 %v3194
    %3348 = vmatmul.f32.gmra.mxu0 %v3315
    %v3349 = vpop.f32.mrf.mxu0
    %v3350 = vadd.f32 %v3297, %v3349
    %3351 = vmatmul.f32.gmra.mxu0 %v3318
    %v3352 = vpop.f32.mrf.mxu0
    %v3353 = vadd.f32 %v3300, %v3352
    %3354 = vmatmul.f32.gmra.mxu0 %v3321
    %v3355 = vpop.f32.mrf.mxu0
    %v3356 = vadd.f32 %v3303, %v3355
    %3357 = vmatmul.f32.gmra.mxu0 %v3324
    %v3358 = vpop.f32.mrf.mxu0
    %v3359 = vadd.f32 %v3306, %v3358
    %3360 = vmatmul.f32.gmra.mxu0 %v3327
    %v3361 = vpop.f32.mrf.mxu0
    %v3362 = vadd.f32 %v3309, %v3361
    %3363 = vmatmul.f32.gmra.mxu0 %v3330
    %v3364 = vpop.f32.mrf.mxu0
    %v3365 = vadd.f32 %v3312, %v3364
    %3366 = vdwg.mxu0
    %s3367 = scalar_lea.vmem %s47, 16
    %v3368 = vld [vmem:[%s3367] sm:$0xff]
    %3369 = vmatpush.msra.mxu0 0.0
    %3370 = vmatpush.msra.mxu0 0.0
    %3371 = vmatpush.msra.mxu0 0.0
    %3372 = vmatpush.msra.mxu0 0.0
    %3373 = vmatpush.msra.mxu0 0.0
    %3374 = vmatpush.msra.mxu0 0.0
    %3375 = vmatpush.msra.mxu0 0.0
    %3376 = vmatpush.msra.mxu0 0.0
    %3377 = vmatpush.msra.mxu0 0.0
    %3378 = vmatpush.msra.mxu0 0.0
    %3379 = vmatpush.msra.mxu0 0.0
    %3380 = vmatpush.msra.mxu0 0.0
    %3381 = vmatpush.msra.mxu0 0.0
    %3382 = vmatpush.msra.mxu0 0.0
    %3383 = vmatpush.msra.mxu0 0.0
    %3384 = vmatpush.msra.mxu0 %v3368
    %3385 = vmatmul.f32.gmra.mxu0 %v3159
    %v3386 = vpop.f32.mrf.mxu0
    %v3387 = vadd.f32 0.0, %v3386
    %3388 = vmatmul.f32.gmra.mxu0 %v3162
    %v3389 = vpop.f32.mrf.mxu0
    %v3390 = vadd.f32 0.0, %v3389
    %3391 = vmatmul.f32.gmra.mxu0 %v3165
    %v3392 = vpop.f32.mrf.mxu0
    %v3393 = vadd.f32 0.0, %v3392
    %3394 = vmatmul.f32.gmra.mxu0 %v3168
    %v3395 = vpop.f32.mrf.mxu0
    %v3396 = vadd.f32 0.0, %v3395
    %3397 = vmatmul.f32.gmra.mxu0 %v3171
    %v3398 = vpop.f32.mrf.mxu0
    %v3399 = vadd.f32 0.0, %v3398
    %3400 = vmatmul.f32.gmra.mxu0 %v3174
    %v3401 = vpop.f32.mrf.mxu0
    %v3402 = vadd.f32 0.0, %v3401
    %3403 = vdwg.mxu0
    %s3404 = scalar_lea.vmem %s45, 96
    %v3405 = vld [vmem:[%s3404] sm:$0xff]
    %v3406 = vld [vmem:[%s3404 + $0x8] sm:$0xff]
    %v3407 = vld [vmem:[%s3404 + $0x10] sm:$0xff]
    %v3408 = vld [vmem:[%s3404 + $0x18] sm:$0xff]
    %v3409 = vld [vmem:[%s3404 + $0x20] sm:$0xff]
    %v3410 = vld [vmem:[%s3404 + $0x28] sm:$0xff]
    %v3412 = vsel %vm1344, %v3405, 0
    %v3415 = vsel %vm1344, %v3406, 0
    %v3418 = vsel %vm1344, %v3407, 0
    %v3421 = vsel %vm1344, %v3408, 0
    %v3424 = vsel %vm1344, %v3409, 0
    %v3427 = vsel %vm1344, %v3410, 0
    %3429 = vmatpush.msra.mxu0 0.0
    %3430 = vmatpush.msra.mxu0 0.0
    %3431 = vmatpush.msra.mxu0 0.0
    %3432 = vmatpush.msra.mxu0 0.0
    %3433 = vmatpush.msra.mxu0 0.0
    %3434 = vmatpush.msra.mxu0 0.0
    %3435 = vmatpush.msra.mxu0 0.0
    %3436 = vmatpush.msra.mxu0 0.0
    %3437 = vmatpush.msra.mxu0 0.0
    %3438 = vmatpush.msra.mxu0 0.0
    %3439 = vmatpush.msra.mxu0 %v3402
    %3440 = vmatpush.msra.mxu0 %v3399
    %3441 = vmatpush.msra.mxu0 %v3396
    %3442 = vmatpush.msra.mxu0 %v3393
    %3443 = vmatpush.msra.mxu0 %v3390
    %3444 = vmatpush.msra.mxu0 %v3387
    %3445 = vmatmul.f32.gmra.mxu0 %v3412
    %v3446 = vpop.f32.mrf.mxu0
    %v3447 = vadd.f32 0.0, %v3446
    %3448 = vmatmul.f32.gmra.mxu0 %v3415
    %v3449 = vpop.f32.mrf.mxu0
    %v3450 = vadd.f32 0.0, %v3449
    %3451 = vmatmul.f32.gmra.mxu0 %v3418
    %v3452 = vpop.f32.mrf.mxu0
    %v3453 = vadd.f32 0.0, %v3452
    %3454 = vmatmul.f32.gmra.mxu0 %v3421
    %v3455 = vpop.f32.mrf.mxu0
    %v3456 = vadd.f32 0.0, %v3455
    %3457 = vmatmul.f32.gmra.mxu0 %v3424
    %v3458 = vpop.f32.mrf.mxu0
    %v3459 = vadd.f32 0.0, %v3458
    %3460 = vmatmul.f32.gmra.mxu0 %v3427
    %v3461 = vpop.f32.mrf.mxu0
    %v3462 = vadd.f32 0.0, %v3461
    %3463 = vdwg.mxu0
    %v3464 = vadd.f32 %v3350, %v3447
    %v3465 = vadd.f32 %v3353, %v3450
    %v3466 = vadd.f32 %v3356, %v3453
    %v3467 = vadd.f32 %v3359, %v3456
    %v3468 = vadd.f32 %v3362, %v3459
    %v3469 = vadd.f32 %v3365, %v3462
    %s3470 = scalar_lea.vmem %s47, 24
    %v3471 = vld [vmem:[%s3470] sm:$0xff]
    %3472 = vmatpush.msra.mxu0 0.0
    %3473 = vmatpush.msra.mxu0 0.0
    %3474 = vmatpush.msra.mxu0 0.0
    %3475 = vmatpush.msra.mxu0 0.0
    %3476 = vmatpush.msra.mxu0 0.0
    %3477 = vmatpush.msra.mxu0 0.0
    %3478 = vmatpush.msra.mxu0 0.0
    %3479 = vmatpush.msra.mxu0 0.0
    %3480 = vmatpush.msra.mxu0 0.0
    %3481 = vmatpush.msra.mxu0 0.0
    %3482 = vmatpush.msra.mxu0 0.0
    %3483 = vmatpush.msra.mxu0 0.0
    %3484 = vmatpush.msra.mxu0 0.0
    %3485 = vmatpush.msra.mxu0 0.0
    %3486 = vmatpush.msra.mxu0 0.0
    %3487 = vmatpush.msra.mxu0 %v3471
    %3488 = vmatmul.f32.gmra.mxu0 %v3159
    %v3489 = vpop.f32.mrf.mxu0
    %v3490 = vadd.f32 0.0, %v3489
    %3491 = vmatmul.f32.gmra.mxu0 %v3162
    %v3492 = vpop.f32.mrf.mxu0
    %v3493 = vadd.f32 0.0, %v3492
    %3494 = vmatmul.f32.gmra.mxu0 %v3165
    %v3495 = vpop.f32.mrf.mxu0
    %v3496 = vadd.f32 0.0, %v3495
    %3497 = vmatmul.f32.gmra.mxu0 %v3168
    %v3498 = vpop.f32.mrf.mxu0
    %v3499 = vadd.f32 0.0, %v3498
    %3500 = vmatmul.f32.gmra.mxu0 %v3171
    %v3501 = vpop.f32.mrf.mxu0
    %v3502 = vadd.f32 0.0, %v3501
    %3503 = vmatmul.f32.gmra.mxu0 %v3174
    %v3504 = vpop.f32.mrf.mxu0
    %v3505 = vadd.f32 0.0, %v3504
    %3506 = vdwg.mxu0
    %s3507 = scalar_lea.vmem %s45, 144
    %v3508 = vld [vmem:[%s3507] sm:$0xff]
    %v3509 = vld [vmem:[%s3507 + $0x8] sm:$0xff]
    %v3510 = vld [vmem:[%s3507 + $0x10] sm:$0xff]
    %v3511 = vld [vmem:[%s3507 + $0x18] sm:$0xff]
    %v3512 = vld [vmem:[%s3507 + $0x20] sm:$0xff]
    %v3513 = vld [vmem:[%s3507 + $0x28] sm:$0xff]
    %v3515 = vsel %vm1344, %v3508, 0
    %v3518 = vsel %vm1344, %v3509, 0
    %v3521 = vsel %vm1344, %v3510, 0
    %v3524 = vsel %vm1344, %v3511, 0
    %v3527 = vsel %vm1344, %v3512, 0
    %v3530 = vsel %vm1344, %v3513, 0
    %3532 = vmatpush.msra.mxu0 0.0
    %3533 = vmatpush.msra.mxu0 0.0
    %3534 = vmatpush.msra.mxu0 0.0
    %3535 = vmatpush.msra.mxu0 0.0
    %3536 = vmatpush.msra.mxu0 0.0
    %3537 = vmatpush.msra.mxu0 0.0
    %3538 = vmatpush.msra.mxu0 0.0
    %3539 = vmatpush.msra.mxu0 0.0
    %3540 = vmatpush.msra.mxu0 0.0
    %3541 = vmatpush.msra.mxu0 0.0
    %3542 = vmatpush.msra.mxu0 %v3505
    %3543 = vmatpush.msra.mxu0 %v3502
    %3544 = vmatpush.msra.mxu0 %v3499
    %3545 = vmatpush.msra.mxu0 %v3496
    %3546 = vmatpush.msra.mxu0 %v3493
    %3547 = vmatpush.msra.mxu0 %v3490
    %3548 = vmatmul.f32.gmra.mxu0 %v3515
    %v3549 = vpop.f32.mrf.mxu0
    %v3550 = vadd.f32 0.0, %v3549
    %3551 = vmatmul.f32.gmra.mxu0 %v3518
    %v3552 = vpop.f32.mrf.mxu0
    %v3553 = vadd.f32 0.0, %v3552
    %3554 = vmatmul.f32.gmra.mxu0 %v3521
    %v3555 = vpop.f32.mrf.mxu0
    %v3556 = vadd.f32 0.0, %v3555
    %3557 = vmatmul.f32.gmra.mxu0 %v3524
    %v3558 = vpop.f32.mrf.mxu0
    %v3559 = vadd.f32 0.0, %v3558
    %3560 = vmatmul.f32.gmra.mxu0 %v3527
    %v3561 = vpop.f32.mrf.mxu0
    %v3562 = vadd.f32 0.0, %v3561
    %3563 = vmatmul.f32.gmra.mxu0 %v3530
    %v3564 = vpop.f32.mrf.mxu0
    %v3565 = vadd.f32 0.0, %v3564
    %3566 = vdwg.mxu0
    %v3567 = vadd.f32 %v3464, %v3550
    %v3568 = vadd.f32 %v3465, %v3553
    %v3569 = vadd.f32 %v3466, %v3556
    %v3570 = vadd.f32 %v3467, %v3559
    %v3571 = vadd.f32 %v3468, %v3562
    %v3572 = vadd.f32 %v3469, %v3565
    %v3573 = vld [vmem:[%s49] sm:$0xff]
    %v3574 = vld [vmem:[%s49 + $0x8] sm:$0xff]
    %v3575 = vld [vmem:[%s49 + $0x10] sm:$0xff]
    %v3576 = vld [vmem:[%s49 + $0x18] sm:$0xff]
    %v3577 = vld [vmem:[%s49 + $0x20] sm:$0xff]
    %v3578 = vld [vmem:[%s49 + $0x28] sm:$0xff]
    %3580 = vset.pattern.permute.xlu0 0
    %3581 = vperm.xlu0 %3580, %v3573
    %v3582 = vpop.permute.xlu0 %3581
    %3585 = vset.pattern.permute.xlu0 0
    %3586 = vperm.xlu0 %3585, %v3574
    %v3587 = vpop.permute.xlu0 %3586
    %3590 = vset.pattern.permute.xlu0 0
    %3591 = vperm.xlu0 %3590, %v3575
    %v3592 = vpop.permute.xlu0 %3591
    %3595 = vset.pattern.permute.xlu0 0
    %3596 = vperm.xlu0 %3595, %v3576
    %v3597 = vpop.permute.xlu0 %3596
    %3600 = vset.pattern.permute.xlu0 0
    %3601 = vperm.xlu0 %3600, %v3577
    %v3602 = vpop.permute.xlu0 %3601
    %3605 = vset.pattern.permute.xlu0 0
    %3606 = vperm.xlu0 %3605, %v3578
    %v3607 = vpop.permute.xlu0 %3606
    %v3609 = vadd.f32 %v3567, %v3582
    %v3610 = vadd.f32 %v3568, %v3587
    %v3611 = vadd.f32 %v3569, %v3592
    %v3612 = vadd.f32 %v3570, %v3597
    %v3613 = vadd.f32 %v3571, %v3602
    %v3614 = vadd.f32 %v3572, %v3607
    %v3615 = vmax.f32 %v3609, 0.0
    %v3616 = vmax.f32 %v3610, 0.0
    %v3617 = vmax.f32 %v3611, 0.0
    %v3618 = vmax.f32 %v3612, 0.0
    %v3619 = vmax.f32 %v3613, 0.0
    %v3620 = vmax.f32 %v3614, 0.0
    %v3621 = vld [vmem:[%s53] sm:$0xff]
    %v3622 = vld [vmem:[%s53 + $0x8] sm:$0xff]
    %v3624 = vsel %vm1239, %v3615, 0
    %v3627 = vsel %vm1239, %v3616, 0
    %v3630 = vsel %vm1239, %v3617, 0
    %v3633 = vsel %vm1239, %v3618, 0
    %v3636 = vsel %vm1239, %v3619, 0
    %v3639 = vsel %vm1239, %v3620, 0
    %3641 = vmatpush.msra.mxu0 0.0
    %3642 = vmatpush.msra.mxu0 0.0
    %3643 = vmatpush.msra.mxu0 0.0
    %3644 = vmatpush.msra.mxu0 0.0
    %3645 = vmatpush.msra.mxu0 0.0
    %3646 = vmatpush.msra.mxu0 0.0
    %3647 = vmatpush.msra.mxu0 0.0
    %3648 = vmatpush.msra.mxu0 0.0
    %3649 = vmatpush.msra.mxu0 0.0
    %3650 = vmatpush.msra.mxu0 0.0
    %3651 = vmatpush.msra.mxu0 0.0
    %3652 = vmatpush.msra.mxu0 0.0
    %3653 = vmatpush.msra.mxu0 0.0
    %3654 = vmatpush.msra.mxu0 0.0
    %3655 = vmatpush.msra.mxu0 %v3622
    %3656 = vmatpush.msra.mxu0 %v3621
    %3657 = vmatmul.f32.gmra.mxu0 %v3624
    %v3658 = vpop.f32.mrf.mxu0
    %v3659 = vadd.f32 0.0, %v3658
    %3660 = vmatmul.f32.gmra.mxu0 %v3627
    %v3661 = vpop.f32.mrf.mxu0
    %v3662 = vadd.f32 0.0, %v3661
    %3663 = vmatmul.f32.gmra.mxu0 %v3630
    %v3664 = vpop.f32.mrf.mxu0
    %v3665 = vadd.f32 0.0, %v3664
    %3666 = vmatmul.f32.gmra.mxu0 %v3633
    %v3667 = vpop.f32.mrf.mxu0
    %v3668 = vadd.f32 0.0, %v3667
    %3669 = vmatmul.f32.gmra.mxu0 %v3636
    %v3670 = vpop.f32.mrf.mxu0
    %v3671 = vadd.f32 0.0, %v3670
    %3672 = vmatmul.f32.gmra.mxu0 %v3639
    %v3673 = vpop.f32.mrf.mxu0
    %v3674 = vadd.f32 0.0, %v3673
    %3675 = vdwg.mxu0
    %v3676 = vld [vmem:[%s51] sm:$0xff]
    %v3677 = vld [vmem:[%s51 + $0x8] sm:$0xff]
    %v3678 = vld [vmem:[%s51 + $0x10] sm:$0xff]
    %v3679 = vld [vmem:[%s51 + $0x18] sm:$0xff]
    %v3680 = vld [vmem:[%s51 + $0x20] sm:$0xff]
    %v3681 = vld [vmem:[%s51 + $0x28] sm:$0xff]
    %v3682 = vld [vmem:[%s51 + $0x30] sm:$0xff]
    %v3683 = vld [vmem:[%s51 + $0x38] sm:$0xff]
    %v3684 = vld [vmem:[%s51 + $0x40] sm:$0xff]
    %v3685 = vld [vmem:[%s51 + $0x48] sm:$0xff]
    %v3686 = vld [vmem:[%s51 + $0x50] sm:$0xff]
    %v3687 = vld [vmem:[%s51 + $0x58] sm:$0xff]
    %s3688 = scalar_lea.vmem %s53, 16
    %v3689 = vld [vmem:[%s3688] sm:$0xff]
    %v3690 = vld [vmem:[%s3688 + $0x8] sm:$0xff]
    %3691 = vmatpush.msra.mxu0 0.0
    %3692 = vmatpush.msra.mxu0 0.0
    %3693 = vmatpush.msra.mxu0 0.0
    %3694 = vmatpush.msra.mxu0 0.0
    %3695 = vmatpush.msra.mxu0 0.0
    %3696 = vmatpush.msra.mxu0 0.0
    %3697 = vmatpush.msra.mxu0 0.0
    %3698 = vmatpush.msra.mxu0 0.0
    %3699 = vmatpush.msra.mxu0 0.0
    %3700 = vmatpush.msra.mxu0 0.0
    %3701 = vmatpush.msra.mxu0 0.0
    %3702 = vmatpush.msra.mxu0 0.0
    %3703 = vmatpush.msra.mxu0 0.0
    %3704 = vmatpush.msra.mxu0 0.0
    %3705 = vmatpush.msra.mxu0 %v3690
    %3706 = vmatpush.msra.mxu0 %v3689
    %3707 = vmatmul.f32.gmra.mxu0 %v3624
    %v3708 = vpop.f32.mrf.mxu0
    %v3709 = vadd.f32 0.0, %v3708
    %3710 = vmatmul.f32.gmra.mxu0 %v3627
    %v3711 = vpop.f32.mrf.mxu0
    %v3712 = vadd.f32 0.0, %v3711
    %3713 = vmatmul.f32.gmra.mxu0 %v3630
    %v3714 = vpop.f32.mrf.mxu0
    %v3715 = vadd.f32 0.0, %v3714
    %3716 = vmatmul.f32.gmra.mxu0 %v3633
    %v3717 = vpop.f32.mrf.mxu0
    %v3718 = vadd.f32 0.0, %v3717
    %3719 = vmatmul.f32.gmra.mxu0 %v3636
    %v3720 = vpop.f32.mrf.mxu0
    %v3721 = vadd.f32 0.0, %v3720
    %3722 = vmatmul.f32.gmra.mxu0 %v3639
    %v3723 = vpop.f32.mrf.mxu0
    %v3724 = vadd.f32 0.0, %v3723
    %3725 = vdwg.mxu0
    %s3726 = scalar_lea.vmem %s51, 96
    %v3727 = vld [vmem:[%s3726] sm:$0xff]
    %v3728 = vld [vmem:[%s3726 + $0x8] sm:$0xff]
    %v3729 = vld [vmem:[%s3726 + $0x10] sm:$0xff]
    %v3730 = vld [vmem:[%s3726 + $0x18] sm:$0xff]
    %v3731 = vld [vmem:[%s3726 + $0x20] sm:$0xff]
    %v3732 = vld [vmem:[%s3726 + $0x28] sm:$0xff]
    %v3733 = vld [vmem:[%s3726 + $0x30] sm:$0xff]
    %v3734 = vld [vmem:[%s3726 + $0x38] sm:$0xff]
    %v3735 = vld [vmem:[%s3726 + $0x40] sm:$0xff]
    %v3736 = vld [vmem:[%s3726 + $0x48] sm:$0xff]
    %v3737 = vld [vmem:[%s3726 + $0x50] sm:$0xff]
    %v3738 = vld [vmem:[%s3726 + $0x58] sm:$0xff]
    %v3740 = vsel %vm1344, %v3727, 0
    %v3743 = vsel %vm1344, %v3728, 0
    %v3746 = vsel %vm1344, %v3729, 0
    %v3749 = vsel %vm1344, %v3730, 0
    %v3752 = vsel %vm1344, %v3731, 0
    %v3755 = vsel %vm1344, %v3732, 0
    %v3758 = vsel %vm1344, %v3733, 0
    %v3761 = vsel %vm1344, %v3734, 0
    %v3764 = vsel %vm1344, %v3735, 0
    %v3767 = vsel %vm1344, %v3736, 0
    %v3770 = vsel %vm1344, %v3737, 0
    %v3773 = vsel %vm1344, %v3738, 0
    %3775 = vmatpush.msra.mxu0 0.0
    %3776 = vmatpush.msra.mxu0 0.0
    %3777 = vmatpush.msra.mxu0 0.0
    %3778 = vmatpush.msra.mxu0 0.0
    %3779 = vmatpush.msra.mxu0 0.0
    %3780 = vmatpush.msra.mxu0 0.0
    %3781 = vmatpush.msra.mxu0 0.0
    %3782 = vmatpush.msra.mxu0 0.0
    %3783 = vmatpush.msra.mxu0 0.0
    %3784 = vmatpush.msra.mxu0 0.0
    %3785 = vmatpush.msra.mxu0 %v3724
    %3786 = vmatpush.msra.mxu0 %v3721
    %3787 = vmatpush.msra.mxu0 %v3718
    %3788 = vmatpush.msra.mxu0 %v3715
    %3789 = vmatpush.msra.mxu0 %v3712
    %3790 = vmatpush.msra.mxu0 %v3709
    %3791 = vmatmul.f32.gmra.mxu0 %v3740
    %v3792 = vpop.f32.mrf.mxu0
    %v3793 = vadd.f32 0.0, %v3792
    %3794 = vmatmul.f32.gmra.mxu0 %v3743
    %v3795 = vpop.f32.mrf.mxu0
    %v3796 = vadd.f32 0.0, %v3795
    %3797 = vmatmul.f32.gmra.mxu0 %v3746
    %v3798 = vpop.f32.mrf.mxu0
    %v3799 = vadd.f32 0.0, %v3798
    %3800 = vmatmul.f32.gmra.mxu0 %v3749
    %v3801 = vpop.f32.mrf.mxu0
    %v3802 = vadd.f32 0.0, %v3801
    %3803 = vmatmul.f32.gmra.mxu0 %v3752
    %v3804 = vpop.f32.mrf.mxu0
    %v3805 = vadd.f32 0.0, %v3804
    %3806 = vmatmul.f32.gmra.mxu0 %v3755
    %v3807 = vpop.f32.mrf.mxu0
    %v3808 = vadd.f32 0.0, %v3807
    %3809 = vmatmul.f32.gmra.mxu0 %v3758
    %v3810 = vpop.f32.mrf.mxu0
    %v3811 = vadd.f32 0.0, %v3810
    %3812 = vmatmul.f32.gmra.mxu0 %v3761
    %v3813 = vpop.f32.mrf.mxu0
    %v3814 = vadd.f32 0.0, %v3813
    %3815 = vmatmul.f32.gmra.mxu0 %v3764
    %v3816 = vpop.f32.mrf.mxu0
    %v3817 = vadd.f32 0.0, %v3816
    %3818 = vmatmul.f32.gmra.mxu0 %v3767
    %v3819 = vpop.f32.mrf.mxu0
    %v3820 = vadd.f32 0.0, %v3819
    %3821 = vmatmul.f32.gmra.mxu0 %v3770
    %v3822 = vpop.f32.mrf.mxu0
    %v3823 = vadd.f32 0.0, %v3822
    %3824 = vmatmul.f32.gmra.mxu0 %v3773
    %v3825 = vpop.f32.mrf.mxu0
    %v3826 = vadd.f32 0.0, %v3825
    %3827 = vdwg.mxu0
    %v3829 = vsel %vm1344, %v3676, 0
    %v3832 = vsel %vm1344, %v3677, 0
    %v3835 = vsel %vm1344, %v3678, 0
    %v3838 = vsel %vm1344, %v3679, 0
    %v3841 = vsel %vm1344, %v3680, 0
    %v3844 = vsel %vm1344, %v3681, 0
    %v3847 = vsel %vm1344, %v3682, 0
    %v3850 = vsel %vm1344, %v3683, 0
    %v3853 = vsel %vm1344, %v3684, 0
    %v3856 = vsel %vm1344, %v3685, 0
    %v3859 = vsel %vm1344, %v3686, 0
    %v3862 = vsel %vm1344, %v3687, 0
    %3864 = vmatpush.msra.mxu0 0.0
    %3865 = vmatpush.msra.mxu0 0.0
    %3866 = vmatpush.msra.mxu0 0.0
    %3867 = vmatpush.msra.mxu0 0.0
    %3868 = vmatpush.msra.mxu0 0.0
    %3869 = vmatpush.msra.mxu0 0.0
    %3870 = vmatpush.msra.mxu0 0.0
    %3871 = vmatpush.msra.mxu0 0.0
    %3872 = vmatpush.msra.mxu0 0.0
    %3873 = vmatpush.msra.mxu0 0.0
    %3874 = vmatpush.msra.mxu0 %v3674
    %3875 = vmatpush.msra.mxu0 %v3671
    %3876 = vmatpush.msra.mxu0 %v3668
    %3877 = vmatpush.msra.mxu0 %v3665
    %3878 = vmatpush.msra.mxu0 %v3662
    %3879 = vmatpush.msra.mxu0 %v3659
    %3880 = vmatmul.f32.gmra.mxu0 %v3829
    %v3881 = vpop.f32.mrf.mxu0
    %v3882 = vadd.f32 %v3793, %v3881
    %3883 = vmatmul.f32.gmra.mxu0 %v3832
    %v3884 = vpop.f32.mrf.mxu0
    %v3885 = vadd.f32 %v3796, %v3884
    %3886 = vmatmul.f32.gmra.mxu0 %v3835
    %v3887 = vpop.f32.mrf.mxu0
    %v3888 = vadd.f32 %v3799, %v3887
    %3889 = vmatmul.f32.gmra.mxu0 %v3838
    %v3890 = vpop.f32.mrf.mxu0
    %v3891 = vadd.f32 %v3802, %v3890
    %3892 = vmatmul.f32.gmra.mxu0 %v3841
    %v3893 = vpop.f32.mrf.mxu0
    %v3894 = vadd.f32 %v3805, %v3893
    %3895 = vmatmul.f32.gmra.mxu0 %v3844
    %v3896 = vpop.f32.mrf.mxu0
    %v3897 = vadd.f32 %v3808, %v3896
    %3898 = vmatmul.f32.gmra.mxu0 %v3847
    %v3899 = vpop.f32.mrf.mxu0
    %v3900 = vadd.f32 %v3811, %v3899
    %3901 = vmatmul.f32.gmra.mxu0 %v3850
    %v3902 = vpop.f32.mrf.mxu0
    %v3903 = vadd.f32 %v3814, %v3902
    %3904 = vmatmul.f32.gmra.mxu0 %v3853
    %v3905 = vpop.f32.mrf.mxu0
    %v3906 = vadd.f32 %v3817, %v3905
    %3907 = vmatmul.f32.gmra.mxu0 %v3856
    %v3908 = vpop.f32.mrf.mxu0
    %v3909 = vadd.f32 %v3820, %v3908
    %3910 = vmatmul.f32.gmra.mxu0 %v3859
    %v3911 = vpop.f32.mrf.mxu0
    %v3912 = vadd.f32 %v3823, %v3911
    %3913 = vmatmul.f32.gmra.mxu0 %v3862
    %v3914 = vpop.f32.mrf.mxu0
    %v3915 = vadd.f32 %v3826, %v3914
    %3916 = vdwg.mxu0
    %s3917 = scalar_lea.vmem %s53, 32
    %v3918 = vld [vmem:[%s3917] sm:$0xff]
    %v3919 = vld [vmem:[%s3917 + $0x8] sm:$0xff]
    %3920 = vmatpush.msra.mxu0 0.0
    %3921 = vmatpush.msra.mxu0 0.0
    %3922 = vmatpush.msra.mxu0 0.0
    %3923 = vmatpush.msra.mxu0 0.0
    %3924 = vmatpush.msra.mxu0 0.0
    %3925 = vmatpush.msra.mxu0 0.0
    %3926 = vmatpush.msra.mxu0 0.0
    %3927 = vmatpush.msra.mxu0 0.0
    %3928 = vmatpush.msra.mxu0 0.0
    %3929 = vmatpush.msra.mxu0 0.0
    %3930 = vmatpush.msra.mxu0 0.0
    %3931 = vmatpush.msra.mxu0 0.0
    %3932 = vmatpush.msra.mxu0 0.0
    %3933 = vmatpush.msra.mxu0 0.0
    %3934 = vmatpush.msra.mxu0 %v3919
    %3935 = vmatpush.msra.mxu0 %v3918
    %3936 = vmatmul.f32.gmra.mxu0 %v3624
    %v3937 = vpop.f32.mrf.mxu0
    %v3938 = vadd.f32 0.0, %v3937
    %3939 = vmatmul.f32.gmra.mxu0 %v3627
    %v3940 = vpop.f32.mrf.mxu0
    %v3941 = vadd.f32 0.0, %v3940
    %3942 = vmatmul.f32.gmra.mxu0 %v3630
    %v3943 = vpop.f32.mrf.mxu0
    %v3944 = vadd.f32 0.0, %v3943
    %3945 = vmatmul.f32.gmra.mxu0 %v3633
    %v3946 = vpop.f32.mrf.mxu0
    %v3947 = vadd.f32 0.0, %v3946
    %3948 = vmatmul.f32.gmra.mxu0 %v3636
    %v3949 = vpop.f32.mrf.mxu0
    %v3950 = vadd.f32 0.0, %v3949
    %3951 = vmatmul.f32.gmra.mxu0 %v3639
    %v3952 = vpop.f32.mrf.mxu0
    %v3953 = vadd.f32 0.0, %v3952
    %3954 = vdwg.mxu0
    %s3955 = scalar_lea.vmem %s51, 192
    %v3956 = vld [vmem:[%s3955] sm:$0xff]
    %v3957 = vld [vmem:[%s3955 + $0x8] sm:$0xff]
    %v3958 = vld [vmem:[%s3955 + $0x10] sm:$0xff]
    %v3959 = vld [vmem:[%s3955 + $0x18] sm:$0xff]
    %v3960 = vld [vmem:[%s3955 + $0x20] sm:$0xff]
    %v3961 = vld [vmem:[%s3955 + $0x28] sm:$0xff]
    %v3962 = vld [vmem:[%s3955 + $0x30] sm:$0xff]
    %v3963 = vld [vmem:[%s3955 + $0x38] sm:$0xff]
    %v3964 = vld [vmem:[%s3955 + $0x40] sm:$0xff]
    %v3965 = vld [vmem:[%s3955 + $0x48] sm:$0xff]
    %v3966 = vld [vmem:[%s3955 + $0x50] sm:$0xff]
    %v3967 = vld [vmem:[%s3955 + $0x58] sm:$0xff]
    %v3969 = vsel %vm1344, %v3956, 0
    %v3972 = vsel %vm1344, %v3957, 0
    %v3975 = vsel %vm1344, %v3958, 0
    %v3978 = vsel %vm1344, %v3959, 0
    %v3981 = vsel %vm1344, %v3960, 0
    %v3984 = vsel %vm1344, %v3961, 0
    %v3987 = vsel %vm1344, %v3962, 0
    %v3990 = vsel %vm1344, %v3963, 0
    %v3993 = vsel %vm1344, %v3964, 0
    %v3996 = vsel %vm1344, %v3965, 0
    %v3999 = vsel %vm1344, %v3966, 0
    %v4002 = vsel %vm1344, %v3967, 0
    %4004 = vmatpush.msra.mxu0 0.0
    %4005 = vmatpush.msra.mxu0 0.0
    %4006 = vmatpush.msra.mxu0 0.0
    %4007 = vmatpush.msra.mxu0 0.0
    %4008 = vmatpush.msra.mxu0 0.0
    %4009 = vmatpush.msra.mxu0 0.0
    %4010 = vmatpush.msra.mxu0 0.0
    %4011 = vmatpush.msra.mxu0 0.0
    %4012 = vmatpush.msra.mxu0 0.0
    %4013 = vmatpush.msra.mxu0 0.0
    %4014 = vmatpush.msra.mxu0 %v3953
    %4015 = vmatpush.msra.mxu0 %v3950
    %4016 = vmatpush.msra.mxu0 %v3947
    %4017 = vmatpush.msra.mxu0 %v3944
    %4018 = vmatpush.msra.mxu0 %v3941
    %4019 = vmatpush.msra.mxu0 %v3938
    %4020 = vmatmul.f32.gmra.mxu0 %v3969
    %v4021 = vpop.f32.mrf.mxu0
    %v4022 = vadd.f32 0.0, %v4021
    %4023 = vmatmul.f32.gmra.mxu0 %v3972
    %v4024 = vpop.f32.mrf.mxu0
    %v4025 = vadd.f32 0.0, %v4024
    %4026 = vmatmul.f32.gmra.mxu0 %v3975
    %v4027 = vpop.f32.mrf.mxu0
    %v4028 = vadd.f32 0.0, %v4027
    %4029 = vmatmul.f32.gmra.mxu0 %v3978
    %v4030 = vpop.f32.mrf.mxu0
    %v4031 = vadd.f32 0.0, %v4030
    %4032 = vmatmul.f32.gmra.mxu0 %v3981
    %v4033 = vpop.f32.mrf.mxu0
    %v4034 = vadd.f32 0.0, %v4033
    %4035 = vmatmul.f32.gmra.mxu0 %v3984
    %v4036 = vpop.f32.mrf.mxu0
    %v4037 = vadd.f32 0.0, %v4036
    %4038 = vmatmul.f32.gmra.mxu0 %v3987
    %v4039 = vpop.f32.mrf.mxu0
    %v4040 = vadd.f32 0.0, %v4039
    %4041 = vmatmul.f32.gmra.mxu0 %v3990
    %v4042 = vpop.f32.mrf.mxu0
    %v4043 = vadd.f32 0.0, %v4042
    %4044 = vmatmul.f32.gmra.mxu0 %v3993
    %v4045 = vpop.f32.mrf.mxu0
    %v4046 = vadd.f32 0.0, %v4045
    %4047 = vmatmul.f32.gmra.mxu0 %v3996
    %v4048 = vpop.f32.mrf.mxu0
    %v4049 = vadd.f32 0.0, %v4048
    %4050 = vmatmul.f32.gmra.mxu0 %v3999
    %v4051 = vpop.f32.mrf.mxu0
    %v4052 = vadd.f32 0.0, %v4051
    %4053 = vmatmul.f32.gmra.mxu0 %v4002
    %v4054 = vpop.f32.mrf.mxu0
    %v4055 = vadd.f32 0.0, %v4054
    %4056 = vdwg.mxu0
    %v4057 = vadd.f32 %v3882, %v4022
    %v4058 = vadd.f32 %v3885, %v4025
    %v4059 = vadd.f32 %v3888, %v4028
    %v4060 = vadd.f32 %v3891, %v4031
    %v4061 = vadd.f32 %v3894, %v4034
    %v4062 = vadd.f32 %v3897, %v4037
    %v4063 = vadd.f32 %v3900, %v4040
    %v4064 = vadd.f32 %v3903, %v4043
    %v4065 = vadd.f32 %v3906, %v4046
    %v4066 = vadd.f32 %v3909, %v4049
    %v4067 = vadd.f32 %v3912, %v4052
    %v4068 = vadd.f32 %v3915, %v4055
    %s4069 = scalar_lea.vmem %s53, 48
    %v4070 = vld [vmem:[%s4069] sm:$0xff]
    %v4071 = vld [vmem:[%s4069 + $0x8] sm:$0xff]
    %4072 = vmatpush.msra.mxu0 0.0
    %4073 = vmatpush.msra.mxu0 0.0
    %4074 = vmatpush.msra.mxu0 0.0
    %4075 = vmatpush.msra.mxu0 0.0
    %4076 = vmatpush.msra.mxu0 0.0
    %4077 = vmatpush.msra.mxu0 0.0
    %4078 = vmatpush.msra.mxu0 0.0
    %4079 = vmatpush.msra.mxu0 0.0
    %4080 = vmatpush.msra.mxu0 0.0
    %4081 = vmatpush.msra.mxu0 0.0
    %4082 = vmatpush.msra.mxu0 0.0
    %4083 = vmatpush.msra.mxu0 0.0
    %4084 = vmatpush.msra.mxu0 0.0
    %4085 = vmatpush.msra.mxu0 0.0
    %4086 = vmatpush.msra.mxu0 %v4071
    %4087 = vmatpush.msra.mxu0 %v4070
    %4088 = vmatmul.f32.gmra.mxu0 %v3624
    %v4089 = vpop.f32.mrf.mxu0
    %v4090 = vadd.f32 0.0, %v4089
    %4091 = vmatmul.f32.gmra.mxu0 %v3627
    %v4092 = vpop.f32.mrf.mxu0
    %v4093 = vadd.f32 0.0, %v4092
    %4094 = vmatmul.f32.gmra.mxu0 %v3630
    %v4095 = vpop.f32.mrf.mxu0
    %v4096 = vadd.f32 0.0, %v4095
    %4097 = vmatmul.f32.gmra.mxu0 %v3633
    %v4098 = vpop.f32.mrf.mxu0
    %v4099 = vadd.f32 0.0, %v4098
    %4100 = vmatmul.f32.gmra.mxu0 %v3636
    %v4101 = vpop.f32.mrf.mxu0
    %v4102 = vadd.f32 0.0, %v4101
    %4103 = vmatmul.f32.gmra.mxu0 %v3639
    %v4104 = vpop.f32.mrf.mxu0
    %v4105 = vadd.f32 0.0, %v4104
    %4106 = vdwg.mxu0
    %s4107 = scalar_lea.vmem %s51, 288
    %v4108 = vld [vmem:[%s4107] sm:$0xff]
    %v4109 = vld [vmem:[%s4107 + $0x8] sm:$0xff]
    %v4110 = vld [vmem:[%s4107 + $0x10] sm:$0xff]
    %v4111 = vld [vmem:[%s4107 + $0x18] sm:$0xff]
    %v4112 = vld [vmem:[%s4107 + $0x20] sm:$0xff]
    %v4113 = vld [vmem:[%s4107 + $0x28] sm:$0xff]
    %v4114 = vld [vmem:[%s4107 + $0x30] sm:$0xff]
    %v4115 = vld [vmem:[%s4107 + $0x38] sm:$0xff]
    %v4116 = vld [vmem:[%s4107 + $0x40] sm:$0xff]
    %v4117 = vld [vmem:[%s4107 + $0x48] sm:$0xff]
    %v4118 = vld [vmem:[%s4107 + $0x50] sm:$0xff]
    %v4119 = vld [vmem:[%s4107 + $0x58] sm:$0xff]
    %v4121 = vsel %vm1344, %v4108, 0
    %v4124 = vsel %vm1344, %v4109, 0
    %v4127 = vsel %vm1344, %v4110, 0
    %v4130 = vsel %vm1344, %v4111, 0
    %v4133 = vsel %vm1344, %v4112, 0
    %v4136 = vsel %vm1344, %v4113, 0
    %v4139 = vsel %vm1344, %v4114, 0
    %v4142 = vsel %vm1344, %v4115, 0
    %v4145 = vsel %vm1344, %v4116, 0
    %v4148 = vsel %vm1344, %v4117, 0
    %v4151 = vsel %vm1344, %v4118, 0
    %v4154 = vsel %vm1344, %v4119, 0
    %4156 = vmatpush.msra.mxu0 0.0
    %4157 = vmatpush.msra.mxu0 0.0
    %4158 = vmatpush.msra.mxu0 0.0
    %4159 = vmatpush.msra.mxu0 0.0
    %4160 = vmatpush.msra.mxu0 0.0
    %4161 = vmatpush.msra.mxu0 0.0
    %4162 = vmatpush.msra.mxu0 0.0
    %4163 = vmatpush.msra.mxu0 0.0
    %4164 = vmatpush.msra.mxu0 0.0
    %4165 = vmatpush.msra.mxu0 0.0
    %4166 = vmatpush.msra.mxu0 %v4105
    %4167 = vmatpush.msra.mxu0 %v4102
    %4168 = vmatpush.msra.mxu0 %v4099
    %4169 = vmatpush.msra.mxu0 %v4096
    %4170 = vmatpush.msra.mxu0 %v4093
    %4171 = vmatpush.msra.mxu0 %v4090
    %4172 = vmatmul.f32.gmra.mxu0 %v4121
    %v4173 = vpop.f32.mrf.mxu0
    %v4174 = vadd.f32 0.0, %v4173
    %4175 = vmatmul.f32.gmra.mxu0 %v4124
    %v4176 = vpop.f32.mrf.mxu0
    %v4177 = vadd.f32 0.0, %v4176
    %4178 = vmatmul.f32.gmra.mxu0 %v4127
    %v4179 = vpop.f32.mrf.mxu0
    %v4180 = vadd.f32 0.0, %v4179
    %4181 = vmatmul.f32.gmra.mxu0 %v4130
    %v4182 = vpop.f32.mrf.mxu0
    %v4183 = vadd.f32 0.0, %v4182
    %4184 = vmatmul.f32.gmra.mxu0 %v4133
    %v4185 = vpop.f32.mrf.mxu0
    %v4186 = vadd.f32 0.0, %v4185
    %4187 = vmatmul.f32.gmra.mxu0 %v4136
    %v4188 = vpop.f32.mrf.mxu0
    %v4189 = vadd.f32 0.0, %v4188
    %4190 = vmatmul.f32.gmra.mxu0 %v4139
    %v4191 = vpop.f32.mrf.mxu0
    %v4192 = vadd.f32 0.0, %v4191
    %4193 = vmatmul.f32.gmra.mxu0 %v4142
    %v4194 = vpop.f32.mrf.mxu0
    %v4195 = vadd.f32 0.0, %v4194
    %4196 = vmatmul.f32.gmra.mxu0 %v4145
    %v4197 = vpop.f32.mrf.mxu0
    %v4198 = vadd.f32 0.0, %v4197
    %4199 = vmatmul.f32.gmra.mxu0 %v4148
    %v4200 = vpop.f32.mrf.mxu0
    %v4201 = vadd.f32 0.0, %v4200
    %4202 = vmatmul.f32.gmra.mxu0 %v4151
    %v4203 = vpop.f32.mrf.mxu0
    %v4204 = vadd.f32 0.0, %v4203
    %4205 = vmatmul.f32.gmra.mxu0 %v4154
    %v4206 = vpop.f32.mrf.mxu0
    %v4207 = vadd.f32 0.0, %v4206
    %4208 = vdwg.mxu0
    %v4209 = vadd.f32 %v4057, %v4174
    %v4210 = vadd.f32 %v4058, %v4177
    %v4211 = vadd.f32 %v4059, %v4180
    %v4212 = vadd.f32 %v4060, %v4183
    %v4213 = vadd.f32 %v4061, %v4186
    %v4214 = vadd.f32 %v4062, %v4189
    %v4215 = vadd.f32 %v4063, %v4192
    %v4216 = vadd.f32 %v4064, %v4195
    %v4217 = vadd.f32 %v4065, %v4198
    %v4218 = vadd.f32 %v4066, %v4201
    %v4219 = vadd.f32 %v4067, %v4204
    %v4220 = vadd.f32 %v4068, %v4207
    %v4221 = vld [vmem:[%s55] sm:$0xff]
    %v4222 = vld [vmem:[%s55 + $0x8] sm:$0xff]
    %v4223 = vld [vmem:[%s55 + $0x10] sm:$0xff]
    %v4224 = vld [vmem:[%s55 + $0x18] sm:$0xff]
    %v4225 = vld [vmem:[%s55 + $0x20] sm:$0xff]
    %v4226 = vld [vmem:[%s55 + $0x28] sm:$0xff]
    %v4227 = vld [vmem:[%s55 + $0x30] sm:$0xff]
    %v4228 = vld [vmem:[%s55 + $0x38] sm:$0xff]
    %v4229 = vld [vmem:[%s55 + $0x40] sm:$0xff]
    %v4230 = vld [vmem:[%s55 + $0x48] sm:$0xff]
    %v4231 = vld [vmem:[%s55 + $0x50] sm:$0xff]
    %v4232 = vld [vmem:[%s55 + $0x58] sm:$0xff]
    %4234 = vset.pattern.permute.xlu0 0
    %4235 = vperm.xlu0 %4234, %v4221
    %v4236 = vpop.permute.xlu0 %4235
    %4239 = vset.pattern.permute.xlu0 0
    %4240 = vperm.xlu0 %4239, %v4222
    %v4241 = vpop.permute.xlu0 %4240
    %4244 = vset.pattern.permute.xlu0 0
    %4245 = vperm.xlu0 %4244, %v4223
    %v4246 = vpop.permute.xlu0 %4245
    %4249 = vset.pattern.permute.xlu0 0
    %4250 = vperm.xlu0 %4249, %v4224
    %v4251 = vpop.permute.xlu0 %4250
    %4254 = vset.pattern.permute.xlu0 0
    %4255 = vperm.xlu0 %4254, %v4225
    %v4256 = vpop.permute.xlu0 %4255
    %4259 = vset.pattern.permute.xlu0 0
    %4260 = vperm.xlu0 %4259, %v4226
    %v4261 = vpop.permute.xlu0 %4260
    %4264 = vset.pattern.permute.xlu0 0
    %4265 = vperm.xlu0 %4264, %v4227
    %v4266 = vpop.permute.xlu0 %4265
    %4269 = vset.pattern.permute.xlu0 0
    %4270 = vperm.xlu0 %4269, %v4228
    %v4271 = vpop.permute.xlu0 %4270
    %4274 = vset.pattern.permute.xlu0 0
    %4275 = vperm.xlu0 %4274, %v4229
    %v4276 = vpop.permute.xlu0 %4275
    %4279 = vset.pattern.permute.xlu0 0
    %4280 = vperm.xlu0 %4279, %v4230
    %v4281 = vpop.permute.xlu0 %4280
    %4284 = vset.pattern.permute.xlu0 0
    %4285 = vperm.xlu0 %4284, %v4231
    %v4286 = vpop.permute.xlu0 %4285
    %4289 = vset.pattern.permute.xlu0 0
    %4290 = vperm.xlu0 %4289, %v4232
    %v4291 = vpop.permute.xlu0 %4290
    %v4293 = vadd.f32 %v4209, %v4236
    %v4294 = vadd.f32 %v4210, %v4241
    %v4295 = vadd.f32 %v4211, %v4246
    %v4296 = vadd.f32 %v4212, %v4251
    %v4297 = vadd.f32 %v4213, %v4256
    %v4298 = vadd.f32 %v4214, %v4261
    %v4299 = vadd.f32 %v4215, %v4266
    %v4300 = vadd.f32 %v4216, %v4271
    %v4301 = vadd.f32 %v4217, %v4276
    %v4302 = vadd.f32 %v4218, %v4281
    %v4303 = vadd.f32 %v4219, %v4286
    %v4304 = vadd.f32 %v4220, %v4291
    %v4305 = vmax.f32 %v4293, 0.0
    %v4306 = vmax.f32 %v4294, 0.0
    %v4307 = vmax.f32 %v4295, 0.0
    %v4308 = vmax.f32 %v4296, 0.0
    %v4309 = vmax.f32 %v4297, 0.0
    %v4310 = vmax.f32 %v4298, 0.0
    %v4311 = vmax.f32 %v4299, 0.0
    %v4312 = vmax.f32 %v4300, 0.0
    %v4313 = vmax.f32 %v4301, 0.0
    %v4314 = vmax.f32 %v4302, 0.0
    %v4315 = vmax.f32 %v4303, 0.0
    %v4316 = vmax.f32 %v4304, 0.0
    %v4317 = vld [vmem:[#allocation2] sm:$0xff]
    %v4318 = vld [vmem:[#allocation2 + $0x8] sm:$0xff]
    %v4319 = vld [vmem:[#allocation2 + $0x10] sm:$0xff]
    %v4320 = vld [vmem:[#allocation2 + $0x18] sm:$0xff]
    %v4322 = vsel %vm798, %v4305, 0
    %v4325 = vsel %vm798, %v4306, 0
    %v4328 = vsel %vm798, %v4307, 0
    %v4331 = vsel %vm798, %v4308, 0
    %v4334 = vsel %vm798, %v4309, 0
    %v4337 = vsel %vm798, %v4310, 0
    %v4340 = vsel %vm798, %v4311, 0
    %v4343 = vsel %vm798, %v4312, 0
    %v4346 = vsel %vm798, %v4313, 0
    %v4349 = vsel %vm798, %v4314, 0
    %v4352 = vsel %vm798, %v4315, 0
    %v4355 = vsel %vm798, %v4316, 0
    %4357 = vmatpush.msra.mxu0 0.0
    %4358 = vmatpush.msra.mxu0 0.0
    %4359 = vmatpush.msra.mxu0 0.0
    %4360 = vmatpush.msra.mxu0 0.0
    %4361 = vmatpush.msra.mxu0 0.0
    %4362 = vmatpush.msra.mxu0 0.0
    %4363 = vmatpush.msra.mxu0 0.0
    %4364 = vmatpush.msra.mxu0 0.0
    %4365 = vmatpush.msra.mxu0 0.0
    %4366 = vmatpush.msra.mxu0 0.0
    %4367 = vmatpush.msra.mxu0 0.0
    %4368 = vmatpush.msra.mxu0 0.0
    %4369 = vmatpush.msra.mxu0 %v4320
    %4370 = vmatpush.msra.mxu0 %v4319
    %4371 = vmatpush.msra.mxu0 %v4318
    %4372 = vmatpush.msra.mxu0 %v4317
    %4373 = vmatmul.f32.gmra.mxu0 %v4322
    %v4374 = vpop.f32.mrf.mxu0
    %v4375 = vadd.f32 0.0, %v4374
    %4376 = vmatmul.f32.gmra.mxu0 %v4325
    %v4377 = vpop.f32.mrf.mxu0
    %v4378 = vadd.f32 0.0, %v4377
    %4379 = vmatmul.f32.gmra.mxu0 %v4328
    %v4380 = vpop.f32.mrf.mxu0
    %v4381 = vadd.f32 0.0, %v4380
    %4382 = vmatmul.f32.gmra.mxu0 %v4331
    %v4383 = vpop.f32.mrf.mxu0
    %v4384 = vadd.f32 0.0, %v4383
    %4385 = vmatmul.f32.gmra.mxu0 %v4334
    %v4386 = vpop.f32.mrf.mxu0
    %v4387 = vadd.f32 0.0, %v4386
    %4388 = vmatmul.f32.gmra.mxu0 %v4337
    %v4389 = vpop.f32.mrf.mxu0
    %v4390 = vadd.f32 0.0, %v4389
    %4391 = vmatmul.f32.gmra.mxu0 %v4340
    %v4392 = vpop.f32.mrf.mxu0
    %v4393 = vadd.f32 0.0, %v4392
    %4394 = vmatmul.f32.gmra.mxu0 %v4343
    %v4395 = vpop.f32.mrf.mxu0
    %v4396 = vadd.f32 0.0, %v4395
    %4397 = vmatmul.f32.gmra.mxu0 %v4346
    %v4398 = vpop.f32.mrf.mxu0
    %v4399 = vadd.f32 0.0, %v4398
    %4400 = vmatmul.f32.gmra.mxu0 %v4349
    %v4401 = vpop.f32.mrf.mxu0
    %v4402 = vadd.f32 0.0, %v4401
    %4403 = vmatmul.f32.gmra.mxu0 %v4352
    %v4404 = vpop.f32.mrf.mxu0
    %v4405 = vadd.f32 0.0, %v4404
    %4406 = vmatmul.f32.gmra.mxu0 %v4355
    %v4407 = vpop.f32.mrf.mxu0
    %v4408 = vadd.f32 0.0, %v4407
    %4409 = vdwg.mxu0
    %v4410 = vld [vmem:[%s57] sm:$0xff]
    %v4411 = vld [vmem:[%s57 + $0x8] sm:$0xff]
    %v4412 = vld [vmem:[%s57 + $0x10] sm:$0xff]
    %v4413 = vld [vmem:[%s57 + $0x18] sm:$0xff]
    %v4414 = vld [vmem:[%s57 + $0x20] sm:$0xff]
    %v4415 = vld [vmem:[%s57 + $0x28] sm:$0xff]
    %v4416 = vld [vmem:[%s57 + $0x30] sm:$0xff]
    %v4417 = vld [vmem:[%s57 + $0x38] sm:$0xff]
    %v4418 = vld [vmem:[%s57 + $0x40] sm:$0xff]
    %v4419 = vld [vmem:[%s57 + $0x48] sm:$0xff]
    %v4420 = vld [vmem:[%s57 + $0x50] sm:$0xff]
    %v4421 = vld [vmem:[%s57 + $0x58] sm:$0xff]
    %s4422 = scalar_lea.vmem [#allocation2], 32
    %v4423 = vld [vmem:[%s4422] sm:$0xff]
    %v4424 = vld [vmem:[%s4422 + $0x8] sm:$0xff]
    %v4425 = vld [vmem:[%s4422 + $0x10] sm:$0xff]
    %v4426 = vld [vmem:[%s4422 + $0x18] sm:$0xff]
    %4427 = vmatpush.msra.mxu0 0.0
    %4428 = vmatpush.msra.mxu0 0.0
    %4429 = vmatpush.msra.mxu0 0.0
    %4430 = vmatpush.msra.mxu0 0.0
    %4431 = vmatpush.msra.mxu0 0.0
    %4432 = vmatpush.msra.mxu0 0.0
    %4433 = vmatpush.msra.mxu0 0.0
    %4434 = vmatpush.msra.mxu0 0.0
    %4435 = vmatpush.msra.mxu0 0.0
    %4436 = vmatpush.msra.mxu0 0.0
    %4437 = vmatpush.msra.mxu0 0.0
    %4438 = vmatpush.msra.mxu0 0.0
    %4439 = vmatpush.msra.mxu0 %v4426
    %4440 = vmatpush.msra.mxu0 %v4425
    %4441 = vmatpush.msra.mxu0 %v4424
    %4442 = vmatpush.msra.mxu0 %v4423
    %4443 = vmatmul.f32.gmra.mxu0 %v4322
    %v4444 = vpop.f32.mrf.mxu0
    %v4445 = vadd.f32 0.0, %v4444
    %4446 = vmatmul.f32.gmra.mxu0 %v4325
    %v4447 = vpop.f32.mrf.mxu0
    %v4448 = vadd.f32 0.0, %v4447
    %4449 = vmatmul.f32.gmra.mxu0 %v4328
    %v4450 = vpop.f32.mrf.mxu0
    %v4451 = vadd.f32 0.0, %v4450
    %4452 = vmatmul.f32.gmra.mxu0 %v4331
    %v4453 = vpop.f32.mrf.mxu0
    %v4454 = vadd.f32 0.0, %v4453
    %4455 = vmatmul.f32.gmra.mxu0 %v4334
    %v4456 = vpop.f32.mrf.mxu0
    %v4457 = vadd.f32 0.0, %v4456
    %4458 = vmatmul.f32.gmra.mxu0 %v4337
    %v4459 = vpop.f32.mrf.mxu0
    %v4460 = vadd.f32 0.0, %v4459
    %4461 = vmatmul.f32.gmra.mxu0 %v4340
    %v4462 = vpop.f32.mrf.mxu0
    %v4463 = vadd.f32 0.0, %v4462
    %4464 = vmatmul.f32.gmra.mxu0 %v4343
    %v4465 = vpop.f32.mrf.mxu0
    %v4466 = vadd.f32 0.0, %v4465
    %4467 = vmatmul.f32.gmra.mxu0 %v4346
    %v4468 = vpop.f32.mrf.mxu0
    %v4469 = vadd.f32 0.0, %v4468
    %4470 = vmatmul.f32.gmra.mxu0 %v4349
    %v4471 = vpop.f32.mrf.mxu0
    %v4472 = vadd.f32 0.0, %v4471
    %4473 = vmatmul.f32.gmra.mxu0 %v4352
    %v4474 = vpop.f32.mrf.mxu0
    %v4475 = vadd.f32 0.0, %v4474
    %4476 = vmatmul.f32.gmra.mxu0 %v4355
    %v4477 = vpop.f32.mrf.mxu0
    %v4478 = vadd.f32 0.0, %v4477
    %4479 = vdwg.mxu0
    %s4480 = scalar_lea.vmem %s57, 96
    %v4481 = vld [vmem:[%s4480] sm:$0xff]
    %v4482 = vld [vmem:[%s4480 + $0x8] sm:$0xff]
    %v4483 = vld [vmem:[%s4480 + $0x10] sm:$0xff]
    %v4484 = vld [vmem:[%s4480 + $0x18] sm:$0xff]
    %v4485 = vld [vmem:[%s4480 + $0x20] sm:$0xff]
    %v4486 = vld [vmem:[%s4480 + $0x28] sm:$0xff]
    %v4487 = vld [vmem:[%s4480 + $0x30] sm:$0xff]
    %v4488 = vld [vmem:[%s4480 + $0x38] sm:$0xff]
    %v4489 = vld [vmem:[%s4480 + $0x40] sm:$0xff]
    %v4490 = vld [vmem:[%s4480 + $0x48] sm:$0xff]
    %v4491 = vld [vmem:[%s4480 + $0x50] sm:$0xff]
    %v4492 = vld [vmem:[%s4480 + $0x58] sm:$0xff]
    %v4494 = vsel %vm343, %v4481, 0
    %v4497 = vsel %vm343, %v4482, 0
    %v4500 = vsel %vm343, %v4483, 0
    %v4503 = vsel %vm343, %v4484, 0
    %v4506 = vsel %vm343, %v4485, 0
    %v4509 = vsel %vm343, %v4486, 0
    %v4512 = vsel %vm343, %v4487, 0
    %v4515 = vsel %vm343, %v4488, 0
    %v4518 = vsel %vm343, %v4489, 0
    %v4521 = vsel %vm343, %v4490, 0
    %v4524 = vsel %vm343, %v4491, 0
    %v4527 = vsel %vm343, %v4492, 0
    %4529 = vmatpush.msra.mxu0 0.0
    %4530 = vmatpush.msra.mxu0 0.0
    %4531 = vmatpush.msra.mxu0 0.0
    %4532 = vmatpush.msra.mxu0 0.0
    %4533 = vmatpush.msra.mxu0 %v4478
    %4534 = vmatpush.msra.mxu0 %v4475
    %4535 = vmatpush.msra.mxu0 %v4472
    %4536 = vmatpush.msra.mxu0 %v4469
    %4537 = vmatpush.msra.mxu0 %v4466
    %4538 = vmatpush.msra.mxu0 %v4463
    %4539 = vmatpush.msra.mxu0 %v4460
    %4540 = vmatpush.msra.mxu0 %v4457
    %4541 = vmatpush.msra.mxu0 %v4454
    %4542 = vmatpush.msra.mxu0 %v4451
    %4543 = vmatpush.msra.mxu0 %v4448
    %4544 = vmatpush.msra.mxu0 %v4445
    %4545 = vmatmul.f32.gmra.mxu0 %v4494
    %v4546 = vpop.f32.mrf.mxu0
    %v4547 = vadd.f32 0.0, %v4546
    %4548 = vmatmul.f32.gmra.mxu0 %v4497
    %v4549 = vpop.f32.mrf.mxu0
    %v4550 = vadd.f32 0.0, %v4549
    %4551 = vmatmul.f32.gmra.mxu0 %v4500
    %v4552 = vpop.f32.mrf.mxu0
    %v4553 = vadd.f32 0.0, %v4552
    %4554 = vmatmul.f32.gmra.mxu0 %v4503
    %v4555 = vpop.f32.mrf.mxu0
    %v4556 = vadd.f32 0.0, %v4555
    %4557 = vmatmul.f32.gmra.mxu0 %v4506
    %v4558 = vpop.f32.mrf.mxu0
    %v4559 = vadd.f32 0.0, %v4558
    %4560 = vmatmul.f32.gmra.mxu0 %v4509
    %v4561 = vpop.f32.mrf.mxu0
    %v4562 = vadd.f32 0.0, %v4561
    %4563 = vmatmul.f32.gmra.mxu0 %v4512
    %v4564 = vpop.f32.mrf.mxu0
    %v4565 = vadd.f32 0.0, %v4564
    %4566 = vmatmul.f32.gmra.mxu0 %v4515
    %v4567 = vpop.f32.mrf.mxu0
    %v4568 = vadd.f32 0.0, %v4567
    %4569 = vmatmul.f32.gmra.mxu0 %v4518
    %v4570 = vpop.f32.mrf.mxu0
    %v4571 = vadd.f32 0.0, %v4570
    %4572 = vmatmul.f32.gmra.mxu0 %v4521
    %v4573 = vpop.f32.mrf.mxu0
    %v4574 = vadd.f32 0.0, %v4573
    %4575 = vmatmul.f32.gmra.mxu0 %v4524
    %v4576 = vpop.f32.mrf.mxu0
    %v4577 = vadd.f32 0.0, %v4576
    %4578 = vmatmul.f32.gmra.mxu0 %v4527
    %v4579 = vpop.f32.mrf.mxu0
    %v4580 = vadd.f32 0.0, %v4579
    %4581 = vdwg.mxu0
    %v4583 = vsel %vm343, %v4410, 0
    %v4586 = vsel %vm343, %v4411, 0
    %v4589 = vsel %vm343, %v4412, 0
    %v4592 = vsel %vm343, %v4413, 0
    %v4595 = vsel %vm343, %v4414, 0
    %v4598 = vsel %vm343, %v4415, 0
    %v4601 = vsel %vm343, %v4416, 0
    %v4604 = vsel %vm343, %v4417, 0
    %v4607 = vsel %vm343, %v4418, 0
    %v4610 = vsel %vm343, %v4419, 0
    %v4613 = vsel %vm343, %v4420, 0
    %v4616 = vsel %vm343, %v4421, 0
    %4618 = vmatpush.msra.mxu0 0.0
    %4619 = vmatpush.msra.mxu0 0.0
    %4620 = vmatpush.msra.mxu0 0.0
    %4621 = vmatpush.msra.mxu0 0.0
    %4622 = vmatpush.msra.mxu0 %v4408
    %4623 = vmatpush.msra.mxu0 %v4405
    %4624 = vmatpush.msra.mxu0 %v4402
    %4625 = vmatpush.msra.mxu0 %v4399
    %4626 = vmatpush.msra.mxu0 %v4396
    %4627 = vmatpush.msra.mxu0 %v4393
    %4628 = vmatpush.msra.mxu0 %v4390
    %4629 = vmatpush.msra.mxu0 %v4387
    %4630 = vmatpush.msra.mxu0 %v4384
    %4631 = vmatpush.msra.mxu0 %v4381
    %4632 = vmatpush.msra.mxu0 %v4378
    %4633 = vmatpush.msra.mxu0 %v4375
    %4634 = vmatmul.f32.gmra.mxu0 %v4583
    %v4635 = vpop.f32.mrf.mxu0
    %v4636 = vadd.f32 %v4547, %v4635
    %4637 = vmatmul.f32.gmra.mxu0 %v4586
    %v4638 = vpop.f32.mrf.mxu0
    %v4639 = vadd.f32 %v4550, %v4638
    %4640 = vmatmul.f32.gmra.mxu0 %v4589
    %v4641 = vpop.f32.mrf.mxu0
    %v4642 = vadd.f32 %v4553, %v4641
    %4643 = vmatmul.f32.gmra.mxu0 %v4592
    %v4644 = vpop.f32.mrf.mxu0
    %v4645 = vadd.f32 %v4556, %v4644
    %4646 = vmatmul.f32.gmra.mxu0 %v4595
    %v4647 = vpop.f32.mrf.mxu0
    %v4648 = vadd.f32 %v4559, %v4647
    %4649 = vmatmul.f32.gmra.mxu0 %v4598
    %v4650 = vpop.f32.mrf.mxu0
    %v4651 = vadd.f32 %v4562, %v4650
    %4652 = vmatmul.f32.gmra.mxu0 %v4601
    %v4653 = vpop.f32.mrf.mxu0
    %v4654 = vadd.f32 %v4565, %v4653
    %4655 = vmatmul.f32.gmra.mxu0 %v4604
    %v4656 = vpop.f32.mrf.mxu0
    %v4657 = vadd.f32 %v4568, %v4656
    %4658 = vmatmul.f32.gmra.mxu0 %v4607
    %v4659 = vpop.f32.mrf.mxu0
    %v4660 = vadd.f32 %v4571, %v4659
    %4661 = vmatmul.f32.gmra.mxu0 %v4610
    %v4662 = vpop.f32.mrf.mxu0
    %v4663 = vadd.f32 %v4574, %v4662
    %4664 = vmatmul.f32.gmra.mxu0 %v4613
    %v4665 = vpop.f32.mrf.mxu0
    %v4666 = vadd.f32 %v4577, %v4665
    %4667 = vmatmul.f32.gmra.mxu0 %v4616
    %v4668 = vpop.f32.mrf.mxu0
    %v4669 = vadd.f32 %v4580, %v4668
    %4670 = vdwg.mxu0
    %s4671 = scalar_lea.vmem [#allocation2], 64
    %v4672 = vld [vmem:[%s4671] sm:$0xff]
    %v4673 = vld [vmem:[%s4671 + $0x8] sm:$0xff]
    %v4674 = vld [vmem:[%s4671 + $0x10] sm:$0xff]
    %v4675 = vld [vmem:[%s4671 + $0x18] sm:$0xff]
    %4676 = vmatpush.msra.mxu0 0.0
    %4677 = vmatpush.msra.mxu0 0.0
    %4678 = vmatpush.msra.mxu0 0.0
    %4679 = vmatpush.msra.mxu0 0.0
    %4680 = vmatpush.msra.mxu0 0.0
    %4681 = vmatpush.msra.mxu0 0.0
    %4682 = vmatpush.msra.mxu0 0.0
    %4683 = vmatpush.msra.mxu0 0.0
    %4684 = vmatpush.msra.mxu0 0.0
    %4685 = vmatpush.msra.mxu0 0.0
    %4686 = vmatpush.msra.mxu0 0.0
    %4687 = vmatpush.msra.mxu0 0.0
    %4688 = vmatpush.msra.mxu0 %v4675
    %4689 = vmatpush.msra.mxu0 %v4674
    %4690 = vmatpush.msra.mxu0 %v4673
    %4691 = vmatpush.msra.mxu0 %v4672
    %4692 = vmatmul.f32.gmra.mxu0 %v4322
    %v4693 = vpop.f32.mrf.mxu0
    %v4694 = vadd.f32 0.0, %v4693
    %4695 = vmatmul.f32.gmra.mxu0 %v4325
    %v4696 = vpop.f32.mrf.mxu0
    %v4697 = vadd.f32 0.0, %v4696
    %4698 = vmatmul.f32.gmra.mxu0 %v4328
    %v4699 = vpop.f32.mrf.mxu0
    %v4700 = vadd.f32 0.0, %v4699
    %4701 = vmatmul.f32.gmra.mxu0 %v4331
    %v4702 = vpop.f32.mrf.mxu0
    %v4703 = vadd.f32 0.0, %v4702
    %4704 = vmatmul.f32.gmra.mxu0 %v4334
    %v4705 = vpop.f32.mrf.mxu0
    %v4706 = vadd.f32 0.0, %v4705
    %4707 = vmatmul.f32.gmra.mxu0 %v4337
    %v4708 = vpop.f32.mrf.mxu0
    %v4709 = vadd.f32 0.0, %v4708
    %4710 = vmatmul.f32.gmra.mxu0 %v4340
    %v4711 = vpop.f32.mrf.mxu0
    %v4712 = vadd.f32 0.0, %v4711
    %4713 = vmatmul.f32.gmra.mxu0 %v4343
    %v4714 = vpop.f32.mrf.mxu0
    %v4715 = vadd.f32 0.0, %v4714
    %4716 = vmatmul.f32.gmra.mxu0 %v4346
    %v4717 = vpop.f32.mrf.mxu0
    %v4718 = vadd.f32 0.0, %v4717
    %4719 = vmatmul.f32.gmra.mxu0 %v4349
    %v4720 = vpop.f32.mrf.mxu0
    %v4721 = vadd.f32 0.0, %v4720
    %4722 = vmatmul.f32.gmra.mxu0 %v4352
    %v4723 = vpop.f32.mrf.mxu0
    %v4724 = vadd.f32 0.0, %v4723
    %4725 = vmatmul.f32.gmra.mxu0 %v4355
    %v4726 = vpop.f32.mrf.mxu0
    %v4727 = vadd.f32 0.0, %v4726
    %4728 = vdwg.mxu0
    %s4729 = scalar_lea.vmem %s57, 192
    %v4730 = vld [vmem:[%s4729] sm:$0xff]
    %v4731 = vld [vmem:[%s4729 + $0x8] sm:$0xff]
    %v4732 = vld [vmem:[%s4729 + $0x10] sm:$0xff]
    %v4733 = vld [vmem:[%s4729 + $0x18] sm:$0xff]
    %v4734 = vld [vmem:[%s4729 + $0x20] sm:$0xff]
    %v4735 = vld [vmem:[%s4729 + $0x28] sm:$0xff]
    %v4736 = vld [vmem:[%s4729 + $0x30] sm:$0xff]
    %v4737 = vld [vmem:[%s4729 + $0x38] sm:$0xff]
    %v4738 = vld [vmem:[%s4729 + $0x40] sm:$0xff]
    %v4739 = vld [vmem:[%s4729 + $0x48] sm:$0xff]
    %v4740 = vld [vmem:[%s4729 + $0x50] sm:$0xff]
    %v4741 = vld [vmem:[%s4729 + $0x58] sm:$0xff]
    %v4743 = vsel %vm343, %v4730, 0
    %v4746 = vsel %vm343, %v4731, 0
    %v4749 = vsel %vm343, %v4732, 0
    %v4752 = vsel %vm343, %v4733, 0
    %v4755 = vsel %vm343, %v4734, 0
    %v4758 = vsel %vm343, %v4735, 0
    %v4761 = vsel %vm343, %v4736, 0
    %v4764 = vsel %vm343, %v4737, 0
    %v4767 = vsel %vm343, %v4738, 0
    %v4770 = vsel %vm343, %v4739, 0
    %v4773 = vsel %vm343, %v4740, 0
    %v4776 = vsel %vm343, %v4741, 0
    %4778 = vmatpush.msra.mxu0 0.0
    %4779 = vmatpush.msra.mxu0 0.0
    %4780 = vmatpush.msra.mxu0 0.0
    %4781 = vmatpush.msra.mxu0 0.0
    %4782 = vmatpush.msra.mxu0 %v4727
    %4783 = vmatpush.msra.mxu0 %v4724
    %4784 = vmatpush.msra.mxu0 %v4721
    %4785 = vmatpush.msra.mxu0 %v4718
    %4786 = vmatpush.msra.mxu0 %v4715
    %4787 = vmatpush.msra.mxu0 %v4712
    %4788 = vmatpush.msra.mxu0 %v4709
    %4789 = vmatpush.msra.mxu0 %v4706
    %4790 = vmatpush.msra.mxu0 %v4703
    %4791 = vmatpush.msra.mxu0 %v4700
    %4792 = vmatpush.msra.mxu0 %v4697
    %4793 = vmatpush.msra.mxu0 %v4694
    %4794 = vmatmul.f32.gmra.mxu0 %v4743
    %v4795 = vpop.f32.mrf.mxu0
    %v4796 = vadd.f32 0.0, %v4795
    %4797 = vmatmul.f32.gmra.mxu0 %v4746
    %v4798 = vpop.f32.mrf.mxu0
    %v4799 = vadd.f32 0.0, %v4798
    %4800 = vmatmul.f32.gmra.mxu0 %v4749
    %v4801 = vpop.f32.mrf.mxu0
    %v4802 = vadd.f32 0.0, %v4801
    %4803 = vmatmul.f32.gmra.mxu0 %v4752
    %v4804 = vpop.f32.mrf.mxu0
    %v4805 = vadd.f32 0.0, %v4804
    %4806 = vmatmul.f32.gmra.mxu0 %v4755
    %v4807 = vpop.f32.mrf.mxu0
    %v4808 = vadd.f32 0.0, %v4807
    %4809 = vmatmul.f32.gmra.mxu0 %v4758
    %v4810 = vpop.f32.mrf.mxu0
    %v4811 = vadd.f32 0.0, %v4810
    %4812 = vmatmul.f32.gmra.mxu0 %v4761
    %v4813 = vpop.f32.mrf.mxu0
    %v4814 = vadd.f32 0.0, %v4813
    %4815 = vmatmul.f32.gmra.mxu0 %v4764
    %v4816 = vpop.f32.mrf.mxu0
    %v4817 = vadd.f32 0.0, %v4816
    %4818 = vmatmul.f32.gmra.mxu0 %v4767
    %v4819 = vpop.f32.mrf.mxu0
    %v4820 = vadd.f32 0.0, %v4819
    %4821 = vmatmul.f32.gmra.mxu0 %v4770
    %v4822 = vpop.f32.mrf.mxu0
    %v4823 = vadd.f32 0.0, %v4822
    %4824 = vmatmul.f32.gmra.mxu0 %v4773
    %v4825 = vpop.f32.mrf.mxu0
    %v4826 = vadd.f32 0.0, %v4825
    %4827 = vmatmul.f32.gmra.mxu0 %v4776
    %v4828 = vpop.f32.mrf.mxu0
    %v4829 = vadd.f32 0.0, %v4828
    %4830 = vdwg.mxu0
    %v4831 = vadd.f32 %v4636, %v4796
    %v4832 = vadd.f32 %v4639, %v4799
    %v4833 = vadd.f32 %v4642, %v4802
    %v4834 = vadd.f32 %v4645, %v4805
    %v4835 = vadd.f32 %v4648, %v4808
    %v4836 = vadd.f32 %v4651, %v4811
    %v4837 = vadd.f32 %v4654, %v4814
    %v4838 = vadd.f32 %v4657, %v4817
    %v4839 = vadd.f32 %v4660, %v4820
    %v4840 = vadd.f32 %v4663, %v4823
    %v4841 = vadd.f32 %v4666, %v4826
    %v4842 = vadd.f32 %v4669, %v4829
    %s4843 = scalar_lea.vmem [#allocation2], 96
    %v4844 = vld [vmem:[%s4843] sm:$0xff]
    %v4845 = vld [vmem:[%s4843 + $0x8] sm:$0xff]
    %v4846 = vld [vmem:[%s4843 + $0x10] sm:$0xff]
    %v4847 = vld [vmem:[%s4843 + $0x18] sm:$0xff]
    %4848 = vmatpush.msra.mxu0 0.0
    %4849 = vmatpush.msra.mxu0 0.0
    %4850 = vmatpush.msra.mxu0 0.0
    %4851 = vmatpush.msra.mxu0 0.0
    %4852 = vmatpush.msra.mxu0 0.0
    %4853 = vmatpush.msra.mxu0 0.0
    %4854 = vmatpush.msra.mxu0 0.0
    %4855 = vmatpush.msra.mxu0 0.0
    %4856 = vmatpush.msra.mxu0 0.0
    %4857 = vmatpush.msra.mxu0 0.0
    %4858 = vmatpush.msra.mxu0 0.0
    %4859 = vmatpush.msra.mxu0 0.0
    %4860 = vmatpush.msra.mxu0 %v4847
    %4861 = vmatpush.msra.mxu0 %v4846
    %4862 = vmatpush.msra.mxu0 %v4845
    %4863 = vmatpush.msra.mxu0 %v4844
    %4864 = vmatmul.f32.gmra.mxu0 %v4322
    %v4865 = vpop.f32.mrf.mxu0
    %v4866 = vadd.f32 0.0, %v4865
    %4867 = vmatmul.f32.gmra.mxu0 %v4325
    %v4868 = vpop.f32.mrf.mxu0
    %v4869 = vadd.f32 0.0, %v4868
    %4870 = vmatmul.f32.gmra.mxu0 %v4328
    %v4871 = vpop.f32.mrf.mxu0
    %v4872 = vadd.f32 0.0, %v4871
    %4873 = vmatmul.f32.gmra.mxu0 %v4331
    %v4874 = vpop.f32.mrf.mxu0
    %v4875 = vadd.f32 0.0, %v4874
    %4876 = vmatmul.f32.gmra.mxu0 %v4334
    %v4877 = vpop.f32.mrf.mxu0
    %v4878 = vadd.f32 0.0, %v4877
    %4879 = vmatmul.f32.gmra.mxu0 %v4337
    %v4880 = vpop.f32.mrf.mxu0
    %v4881 = vadd.f32 0.0, %v4880
    %4882 = vmatmul.f32.gmra.mxu0 %v4340
    %v4883 = vpop.f32.mrf.mxu0
    %v4884 = vadd.f32 0.0, %v4883
    %4885 = vmatmul.f32.gmra.mxu0 %v4343
    %v4886 = vpop.f32.mrf.mxu0
    %v4887 = vadd.f32 0.0, %v4886
    %4888 = vmatmul.f32.gmra.mxu0 %v4346
    %v4889 = vpop.f32.mrf.mxu0
    %v4890 = vadd.f32 0.0, %v4889
    %4891 = vmatmul.f32.gmra.mxu0 %v4349
    %v4892 = vpop.f32.mrf.mxu0
    %v4893 = vadd.f32 0.0, %v4892
    %4894 = vmatmul.f32.gmra.mxu0 %v4352
    %v4895 = vpop.f32.mrf.mxu0
    %v4896 = vadd.f32 0.0, %v4895
    %4897 = vmatmul.f32.gmra.mxu0 %v4355
    %v4898 = vpop.f32.mrf.mxu0
    %v4899 = vadd.f32 0.0, %v4898
    %4900 = vdwg.mxu0
    %s4901 = scalar_lea.vmem %s57, 288
    %v4902 = vld [vmem:[%s4901] sm:$0xff]
    %v4903 = vld [vmem:[%s4901 + $0x8] sm:$0xff]
    %v4904 = vld [vmem:[%s4901 + $0x10] sm:$0xff]
    %v4905 = vld [vmem:[%s4901 + $0x18] sm:$0xff]
    %v4906 = vld [vmem:[%s4901 + $0x20] sm:$0xff]
    %v4907 = vld [vmem:[%s4901 + $0x28] sm:$0xff]
    %v4908 = vld [vmem:[%s4901 + $0x30] sm:$0xff]
    %v4909 = vld [vmem:[%s4901 + $0x38] sm:$0xff]
    %v4910 = vld [vmem:[%s4901 + $0x40] sm:$0xff]
    %v4911 = vld [vmem:[%s4901 + $0x48] sm:$0xff]
    %v4912 = vld [vmem:[%s4901 + $0x50] sm:$0xff]
    %v4913 = vld [vmem:[%s4901 + $0x58] sm:$0xff]
    %v4915 = vsel %vm343, %v4902, 0
    %v4918 = vsel %vm343, %v4903, 0
    %v4921 = vsel %vm343, %v4904, 0
    %v4924 = vsel %vm343, %v4905, 0
    %v4927 = vsel %vm343, %v4906, 0
    %v4930 = vsel %vm343, %v4907, 0
    %v4933 = vsel %vm343, %v4908, 0
    %v4936 = vsel %vm343, %v4909, 0
    %v4939 = vsel %vm343, %v4910, 0
    %v4942 = vsel %vm343, %v4911, 0
    %v4945 = vsel %vm343, %v4912, 0
    %v4948 = vsel %vm343, %v4913, 0
    %4950 = vmatpush.msra.mxu0 0.0
    %4951 = vmatpush.msra.mxu0 0.0
    %4952 = vmatpush.msra.mxu0 0.0
    %4953 = vmatpush.msra.mxu0 0.0
    %4954 = vmatpush.msra.mxu0 %v4899
    %4955 = vmatpush.msra.mxu0 %v4896
    %4956 = vmatpush.msra.mxu0 %v4893
    %4957 = vmatpush.msra.mxu0 %v4890
    %4958 = vmatpush.msra.mxu0 %v4887
    %4959 = vmatpush.msra.mxu0 %v4884
    %4960 = vmatpush.msra.mxu0 %v4881
    %4961 = vmatpush.msra.mxu0 %v4878
    %4962 = vmatpush.msra.mxu0 %v4875
    %4963 = vmatpush.msra.mxu0 %v4872
    %4964 = vmatpush.msra.mxu0 %v4869
    %4965 = vmatpush.msra.mxu0 %v4866
    %4966 = vmatmul.f32.gmra.mxu0 %v4915
    %v4967 = vpop.f32.mrf.mxu0
    %v4968 = vadd.f32 0.0, %v4967
    %4969 = vmatmul.f32.gmra.mxu0 %v4918
    %v4970 = vpop.f32.mrf.mxu0
    %v4971 = vadd.f32 0.0, %v4970
    %4972 = vmatmul.f32.gmra.mxu0 %v4921
    %v4973 = vpop.f32.mrf.mxu0
    %v4974 = vadd.f32 0.0, %v4973
    %4975 = vmatmul.f32.gmra.mxu0 %v4924
    %v4976 = vpop.f32.mrf.mxu0
    %v4977 = vadd.f32 0.0, %v4976
    %4978 = vmatmul.f32.gmra.mxu0 %v4927
    %v4979 = vpop.f32.mrf.mxu0
    %v4980 = vadd.f32 0.0, %v4979
    %4981 = vmatmul.f32.gmra.mxu0 %v4930
    %v4982 = vpop.f32.mrf.mxu0
    %v4983 = vadd.f32 0.0, %v4982
    %4984 = vmatmul.f32.gmra.mxu0 %v4933
    %v4985 = vpop.f32.mrf.mxu0
    %v4986 = vadd.f32 0.0, %v4985
    %4987 = vmatmul.f32.gmra.mxu0 %v4936
    %v4988 = vpop.f32.mrf.mxu0
    %v4989 = vadd.f32 0.0, %v4988
    %4990 = vmatmul.f32.gmra.mxu0 %v4939
    %v4991 = vpop.f32.mrf.mxu0
    %v4992 = vadd.f32 0.0, %v4991
    %4993 = vmatmul.f32.gmra.mxu0 %v4942
    %v4994 = vpop.f32.mrf.mxu0
    %v4995 = vadd.f32 0.0, %v4994
    %4996 = vmatmul.f32.gmra.mxu0 %v4945
    %v4997 = vpop.f32.mrf.mxu0
    %v4998 = vadd.f32 0.0, %v4997
    %4999 = vmatmul.f32.gmra.mxu0 %v4948
    %v5000 = vpop.f32.mrf.mxu0
    %v5001 = vadd.f32 0.0, %v5000
    %5002 = vdwg.mxu0
    %v5003 = vadd.f32 %v4831, %v4968
    %v5004 = vadd.f32 %v4832, %v4971
    %v5005 = vadd.f32 %v4833, %v4974
    %v5006 = vadd.f32 %v4834, %v4977
    %v5007 = vadd.f32 %v4835, %v4980
    %v5008 = vadd.f32 %v4836, %v4983
    %v5009 = vadd.f32 %v4837, %v4986
    %v5010 = vadd.f32 %v4838, %v4989
    %v5011 = vadd.f32 %v4839, %v4992
    %v5012 = vadd.f32 %v4840, %v4995
    %v5013 = vadd.f32 %v4841, %v4998
    %v5014 = vadd.f32 %v4842, %v5001
    %v5015 = vld [vmem:[%s61] sm:$0xff]
    %v5016 = vld [vmem:[%s61 + $0x8] sm:$0xff]
    %v5017 = vld [vmem:[%s61 + $0x10] sm:$0xff]
    %v5018 = vld [vmem:[%s61 + $0x18] sm:$0xff]
    %v5019 = vld [vmem:[%s61 + $0x20] sm:$0xff]
    %v5020 = vld [vmem:[%s61 + $0x28] sm:$0xff]
    %v5021 = vld [vmem:[%s61 + $0x30] sm:$0xff]
    %v5022 = vld [vmem:[%s61 + $0x38] sm:$0xff]
    %v5023 = vld [vmem:[%s61 + $0x40] sm:$0xff]
    %v5024 = vld [vmem:[%s61 + $0x48] sm:$0xff]
    %v5025 = vld [vmem:[%s61 + $0x50] sm:$0xff]
    %v5026 = vld [vmem:[%s61 + $0x58] sm:$0xff]
    %5028 = vset.pattern.permute.xlu0 0
    %5029 = vperm.xlu0 %5028, %v5015
    %v5030 = vpop.permute.xlu0 %5029
    %5033 = vset.pattern.permute.xlu0 0
    %5034 = vperm.xlu0 %5033, %v5016
    %v5035 = vpop.permute.xlu0 %5034
    %5038 = vset.pattern.permute.xlu0 0
    %5039 = vperm.xlu0 %5038, %v5017
    %v5040 = vpop.permute.xlu0 %5039
    %5043 = vset.pattern.permute.xlu0 0
    %5044 = vperm.xlu0 %5043, %v5018
    %v5045 = vpop.permute.xlu0 %5044
    %5048 = vset.pattern.permute.xlu0 0
    %5049 = vperm.xlu0 %5048, %v5019
    %v5050 = vpop.permute.xlu0 %5049
    %5053 = vset.pattern.permute.xlu0 0
    %5054 = vperm.xlu0 %5053, %v5020
    %v5055 = vpop.permute.xlu0 %5054
    %5058 = vset.pattern.permute.xlu0 0
    %5059 = vperm.xlu0 %5058, %v5021
    %v5060 = vpop.permute.xlu0 %5059
    %5063 = vset.pattern.permute.xlu0 0
    %5064 = vperm.xlu0 %5063, %v5022
    %v5065 = vpop.permute.xlu0 %5064
    %5068 = vset.pattern.permute.xlu0 0
    %5069 = vperm.xlu0 %5068, %v5023
    %v5070 = vpop.permute.xlu0 %5069
    %5073 = vset.pattern.permute.xlu0 0
    %5074 = vperm.xlu0 %5073, %v5024
    %v5075 = vpop.permute.xlu0 %5074
    %5078 = vset.pattern.permute.xlu0 0
    %5079 = vperm.xlu0 %5078, %v5025
    %v5080 = vpop.permute.xlu0 %5079
    %5083 = vset.pattern.permute.xlu0 0
    %5084 = vperm.xlu0 %5083, %v5026
    %v5085 = vpop.permute.xlu0 %5084
    %v5087 = vadd.f32 %v5003, %v5030
    %v5088 = vadd.f32 %v5004, %v5035
    %v5089 = vadd.f32 %v5005, %v5040
    %v5090 = vadd.f32 %v5006, %v5045
    %v5091 = vadd.f32 %v5007, %v5050
    %v5092 = vadd.f32 %v5008, %v5055
    %v5093 = vadd.f32 %v5009, %v5060
    %v5094 = vadd.f32 %v5010, %v5065
    %v5095 = vadd.f32 %v5011, %v5070
    %v5096 = vadd.f32 %v5012, %v5075
    %v5097 = vadd.f32 %v5013, %v5080
    %v5098 = vadd.f32 %v5014, %v5085
    %v5099 = vmax.f32 %v5087, 0.0
    %v5100 = vmax.f32 %v5088, 0.0
    %v5101 = vmax.f32 %v5089, 0.0
    %v5102 = vmax.f32 %v5090, 0.0
    %v5103 = vmax.f32 %v5091, 0.0
    %v5104 = vmax.f32 %v5092, 0.0
    %v5105 = vmax.f32 %v5093, 0.0
    %v5106 = vmax.f32 %v5094, 0.0
    %v5107 = vmax.f32 %v5095, 0.0
    %v5108 = vmax.f32 %v5096, 0.0
    %v5109 = vmax.f32 %v5097, 0.0
    %v5110 = vmax.f32 %v5098, 0.0
    %v5111 = vsub.f32 0.0, %v5099
    %v5112 = vsub.f32 0.0, %v5100
    %v5113 = vsub.f32 0.0, %v5101
    %v5114 = vsub.f32 0.0, %v5102
    %v5115 = vsub.f32 0.0, %v5103
    %v5116 = vsub.f32 0.0, %v5104
    %v5117 = vsub.f32 0.0, %v5105
    %v5118 = vsub.f32 0.0, %v5106
    %v5119 = vsub.f32 0.0, %v5107
    %v5120 = vsub.f32 0.0, %v5108
    %v5121 = vsub.f32 0.0, %v5109
    %v5122 = vsub.f32 0.0, %v5110
    %v5123 = vmul.f32 %v5111, 1.442695
    %v5124 = vpow.pop %v5123
    %v5125 = vmul.f32 %v5112, 1.442695
    %v5126 = vpow.pop %v5125
    %v5127 = vmul.f32 %v5113, 1.442695
    %v5128 = vpow.pop %v5127
    %v5129 = vmul.f32 %v5114, 1.442695
    %v5130 = vpow.pop %v5129
    %v5131 = vmul.f32 %v5115, 1.442695
    %v5132 = vpow.pop %v5131
    %v5133 = vmul.f32 %v5116, 1.442695
    %v5134 = vpow.pop %v5133
    %v5135 = vmul.f32 %v5117, 1.442695
    %v5136 = vpow.pop %v5135
    %v5137 = vmul.f32 %v5118, 1.442695
    %v5138 = vpow.pop %v5137
    %v5139 = vmul.f32 %v5119, 1.442695
    %v5140 = vpow.pop %v5139
    %v5141 = vmul.f32 %v5120, 1.442695
    %v5142 = vpow.pop %v5141
    %v5143 = vmul.f32 %v5121, 1.442695
    %v5144 = vpow.pop %v5143
    %v5145 = vmul.f32 %v5122, 1.442695
    %v5146 = vpow.pop %v5145
    %v5147 = vadd.f32 %v5124, 1.0
    %v5148 = vadd.f32 %v5126, 1.0
    %v5149 = vadd.f32 %v5128, 1.0
    %v5150 = vadd.f32 %v5130, 1.0
    %v5151 = vadd.f32 %v5132, 1.0
    %v5152 = vadd.f32 %v5134, 1.0
    %v5153 = vadd.f32 %v5136, 1.0
    %v5154 = vadd.f32 %v5138, 1.0
    %v5155 = vadd.f32 %v5140, 1.0
    %v5156 = vadd.f32 %v5142, 1.0
    %v5157 = vadd.f32 %v5144, 1.0
    %v5158 = vadd.f32 %v5146, 1.0
    %v5159 = vrcp.pop %v5147
    %v5160 = vrcp.pop %v5148
    %v5161 = vrcp.pop %v5149
    %v5162 = vrcp.pop %v5150
    %v5163 = vrcp.pop %v5151
    %v5164 = vrcp.pop %v5152
    %v5165 = vrcp.pop %v5153
    %v5166 = vrcp.pop %v5154
    %v5167 = vrcp.pop %v5155
    %v5168 = vrcp.pop %v5156
    %v5169 = vrcp.pop %v5157
    %v5170 = vrcp.pop %v5158
    %5171 = vst.msk [vmem:[%s63] sm:$0xff] %vm166, %v5159
    %5172 = vst.msk [vmem:[%s63 + $0x8] sm:$0xff] %vm166, %v5160
    %5173 = vst.msk [vmem:[%s63 + $0x10] sm:$0xff] %vm166, %v5161
    %5174 = vst.msk [vmem:[%s63 + $0x18] sm:$0xff] %vm166, %v5162
    %5175 = vst.msk [vmem:[%s63 + $0x20] sm:$0xff] %vm166, %v5163
    %5176 = vst.msk [vmem:[%s63 + $0x28] sm:$0xff] %vm166, %v5164
    %5177 = vst.msk [vmem:[%s63 + $0x30] sm:$0xff] %vm166, %v5165
    %5178 = vst.msk [vmem:[%s63 + $0x38] sm:$0xff] %vm166, %v5166
    %5179 = vst.msk [vmem:[%s63 + $0x40] sm:$0xff] %vm166, %v5167
    %5180 = vst.msk [vmem:[%s63 + $0x48] sm:$0xff] %vm166, %v5168
    %5181 = vst.msk [vmem:[%s63 + $0x50] sm:$0xff] %vm166, %v5169
    %5182 = vst.msk [vmem:[%s63 + $0x58] sm:$0xff] %vm166, %v5170
    // Predicated region
    $region130: #{mask_forward.1} parent=1 // pred_check
      _
    $region131: #{mask_forward.1} parent=1 // pred_check_branch
      %5184 = sbr.rel (0) target = $region133
    $region132: #{mask_forward.1} parent=1 // pred_region
      _
    $region133: #{mask_forward.1} parent=1 // pred_fallthru
      _
    // Predicated region
    $region134: #{mask_forward.1} parent=1 // pred_check
      _
    $region135: #{mask_forward.1} parent=1 // pred_check_branch
      %5186 = sbr.rel (0) target = $region137
    $region136: #{mask_forward.1} parent=1 // pred_region
      _
    $region137: #{mask_forward.1} parent=1 // pred_fallthru
      _
    %5187 = vsyncpa [#allocation3], 1

</llo_original>
